<compile_context>
chip_gen: v6e
topology: v6e:2x2x1
jax: 0.10.0
libtpu: 0.0.40
codegen_flags: <defaults>
</compile_context>

<pallas_src>
import functools

import jax
import jax.numpy as jnp
from jax.experimental import pallas as pl
from jax.experimental.pallas import tpu as pltpu


def _round_up(n, m):
    return ((n + m - 1) // m) * m


def _pad_to(a, shape):
    return jnp.pad(a, [(0, t - s) for s, t in zip(a.shape, shape)])


def _pick_chunk(total, preferred, align):
    """Largest chunk <= preferred that divides `total` and is a multiple of
    `align`; falls back to a single chunk of `total`."""
    if total <= preferred:
        return total
    c = (preferred // align) * align
    while c >= align:
        if total % c == 0:
            return c
        c -= align
    return total


def _layernorm_masked(z, gamma, beta, true_dim, eps=1e-5):
    """PyTorch LayerNorm (biased var, eps inside rsqrt) over the first `true_dim`
    lanes of z. Invariant: padded lanes of z are exactly zero on entry, and
    gamma/beta are zero-padded, so padded output lanes stay zero."""
    padded = z.shape[-1] != true_dim
    inv_n = 1.0 / float(true_dim)
    mu = jnp.sum(z, axis=-1, keepdims=True) * inv_n          # pad lanes are 0
    centered = z - mu
    if padded:
        lane = jax.lax.broadcasted_iota(jnp.int32, z.shape, dimension=z.ndim - 1)
        centered = jnp.where(lane < true_dim, centered, 0.0)
    var = jnp.sum(centered * centered, axis=-1, keepdims=True) * inv_n
    return centered * jax.lax.rsqrt(var + eps) * gamma + beta


def encoder_block_kernel(
    x_ref,
    wqkv_ref, bqkv_ref,
    wo_ref, bo_ref,
    g1_ref, be1_ref,
    w1_ref, b1_ref, w2_ref, b2_ref,
    g2_ref, be2_ref,
    out_ref,
    *, num_heads, head_dim, dh_pad, hidden_dim, q_chunk, f_chunk,
):
    x = x_ref[0]                          # (S, Hp) f32, padded lanes are zero
    S, Hp = x.shape
    Fp = w1_ref.shape[1]
    dh = num_heads * head_dim

    # --- Fused Q/K/V projection: one MXU matmul over the full sequence -------
    qkv = jnp.dot(x.astype(jnp.bfloat16), wqkv_ref[...],
                  preferred_element_type=jnp.float32) + bqkv_ref[0]
    qkv_bf = qkv.astype(jnp.bfloat16)     # cast once, then slice (no per-head casts)

    # Per-head K / V slices at natural head width (no per-head lane padding).
    k_heads = [qkv_bf[:, dh_pad + h * head_dim: dh_pad + (h + 1) * head_dim]
               for h in range(num_heads)]
    v_heads = [qkv_bf[:, 2 * dh_pad + h * head_dim: 2 * dh_pad + (h + 1) * head_dim]
               for h in range(num_heads)]

    nt_dims = (((1,), (1,)), ((), ()))    # q @ k^T (contract last dims)

    g1 = g1_ref[0]; be1 = be1_ref[0]
    g2 = g2_ref[0]; be2 = be2_ref[0]
    bo = bo_ref[0]; b2 = b2_ref[0]

    # Process the sequence in q-row chunks: bounds the (TQ, S) scores and the
    # (TQ, f_chunk) FFN intermediate regardless of S / F.
    for qc in range(S // q_chunk):
        r0 = qc * q_chunk
        x_q = x[r0:r0 + q_chunk, :]                 # (TQ, Hp) f32 residual

        # --- attention for this q-chunk --------------------------------------
        # TODO(synk): for very long S also tile the key axis with an online
        # softmax (m/l/acc scratch) and make the q-tile a parallel grid axis.
        ctxs = []
        for h in range(num_heads):
            q_h = qkv_bf[r0:r0 + q_chunk, h * head_dim:(h + 1) * head_dim]
            s = jax.lax.dot_general(q_h, k_heads[h], nt_dims,
                                    preferred_element_type=jnp.float32)
            # 1/sqrt(head_dim) is already folded into Wq / bq in the wrapper.
            s = s - jnp.max(s, axis=-1, keepdims=True)
            p = jnp.exp(s)
            p = p * pl.reciprocal(jnp.sum(p, axis=-1, keepdims=True), approx=True)
            ctxs.append(jnp.dot(p.astype(jnp.bfloat16), v_heads[h],
                                preferred_element_type=jnp.float32))  # (TQ, hd)
        if dh_pad > dh:
            ctxs.append(jnp.zeros((q_chunk, dh_pad - dh), jnp.float32))
        ctx_all = jnp.concatenate(ctxs, axis=-1).astype(jnp.bfloat16)  # (TQ, dh_pad)

        # Single output projection, contraction K = dh_pad (feeds the MXU fully).
        attn = jnp.dot(ctx_all, wo_ref[...],
                       preferred_element_type=jnp.float32) + bo        # (TQ, Hp)

        # --- Add & Norm #1 (f32) ---------------------------------------------
        y1 = _layernorm_masked(x_q + attn, g1, be1, hidden_dim)
        y1_bf = y1.astype(jnp.bfloat16)

        # --- Feed-forward, chunked over the F dimension (exact) ---------------
        ffn = None
        for c in range(Fp // f_chunk):
            c0 = c * f_chunk
            h1 = jnp.dot(y1_bf, w1_ref[:, c0:c0 + f_chunk],
                         preferred_element_type=jnp.float32) + b1_ref[0, c0:c0 + f_chunk]
            h1 = jnp.maximum(h1, 0.0).astype(jnp.bfloat16)              # ReLU
            part = jnp.dot(h1, w2_ref[c0:c0 + f_chunk, :],
                           preferred_element_type=jnp.float32)
            ffn = part if ffn is None else ffn + part
        ffn = ffn + b2

        # --- Add & Norm #2 (f32) ----------------------------------------------
        out_ref[0, r0:r0 + q_chunk, :] = _layernorm_masked(
            y1 + ffn, g2, be2, hidden_dim)


def _vmem_cap_bytes():
    """Physical per-core VMEM (64 MiB on v7x, 128 MiB on v5e/v6e)."""
    try:
        return int(pltpu.get_tpu_info().vmem_capacity_bytes)
    except Exception:
        return 64 * 1024 * 1024   # conservative (v7x)


def _vmem_limit_bytes(S, Hp, Fp, Dhp, q_chunk, f_chunk):
    """Footprint-based VMEM request (do not blanket-request all of v7x's VMEM)."""
    bf16, f32 = 2, 4
    weights = bf16 * (Hp * 3 * Dhp + Dhp * Hp + 2 * Hp * Fp)     # single-buffered
    scalars = f32 * (3 * Dhp + 6 * Hp + Fp)                      # biases + LN params
    io = 2 * 2 * f32 * S * Hp                                    # x + out, double-buffered
    acts = (f32 + bf16) * S * 3 * Dhp                            # qkv (f32 + bf16 copy)
    acts += f32 * q_chunk * (S + 3 * Hp + Dhp + f_chunk)         # per-chunk temporaries
    budget = int((weights + scalars + io + acts) * 1.5) + (4 << 20)
    cap = (_vmem_cap_bytes() * 3) // 4
    return max(16 << 20, min(budget, cap))


def _weight_spec_factory(single_buffer):
    """Specs for grid-invariant operands (constant block index across the grid).
    With single_buffer=True they request 1-deep buffering (no double buffer)."""
    def make(shape):
        if single_buffer:
            return pl.BlockSpec(shape, lambda b: (0, 0), pipeline_mode=pl.Buffered(1))
        return pl.BlockSpec(shape, lambda b: (0, 0))
    return make


def transformer_encoder_block(x, params, *, num_heads, head_dim):
    B, S, H = x.shape
    F = params["w1"].shape[1]
    Dh = num_heads * head_dim

    # Lane-density padding: pad H, F and the PACKED Dh (not per-head) to 128.
    Hp = _round_up(H, 128)
    Fp = _round_up(F, 128)
    Dhp = _round_up(Dh, 128)
    wdt = jnp.bfloat16   # MXU operand dtype for weights; biases / LN stay f32.

    # Static chunking constants (q rows / FFN columns).
    q_chunk = _pick_chunk(S, 256, 8)
    f_chunk = _pick_chunk(Fp, 512, 128)

    # Fused QKV weight/bias, attention scale folded into Wq/bq (exact).
    sq = 1.0 / (float(head_dim) ** 0.5)
    wqkv = jnp.concatenate(
        [_pad_to(params["wq"] * sq, (Hp, Dhp)),
         _pad_to(params["wk"], (Hp, Dhp)),
         _pad_to(params["wv"], (Hp, Dhp))], axis=1).astype(wdt)
    bqkv = jnp.concatenate(
        [_pad_to(params["bq"] * sq, (1, Dhp)),
         _pad_to(params["bk"], (1, Dhp)),
         _pad_to(params["bv"], (1, Dhp))], axis=1)

    wo = _pad_to(params["wo"], (Dhp, Hp)).astype(wdt)
    bo = _pad_to(params["bo"], (1, Hp))
    g1 = _pad_to(params["ln1_g"], (1, Hp))
    be1 = _pad_to(params["ln1_b"], (1, Hp))
    w1 = _pad_to(params["w1"], (Hp, Fp)).astype(wdt)
    bf1 = _pad_to(params["b1"], (1, Fp))
    w2 = _pad_to(params["w2"], (Fp, Hp)).astype(wdt)
    bf2 = _pad_to(params["b2"], (1, Hp))
    g2 = _pad_to(params["ln2_g"], (1, Hp))
    be2 = _pad_to(params["ln2_b"], (1, Hp))

    xp = jnp.pad(x, ((0, 0), (0, 0), (0, Hp - H))).astype(jnp.float32)

    kernel = functools.partial(
        encoder_block_kernel,
        num_heads=num_heads, head_dim=head_dim, dh_pad=Dhp,
        hidden_dim=H, q_chunk=q_chunk, f_chunk=f_chunk)

    vmem_bytes = _vmem_limit_bytes(S, Hp, Fp, Dhp, q_chunk, f_chunk)
    operands = (xp, wqkv, bqkv, wo, bo, g1, be1, w1, bf1, w2, bf2, g2, be2)

    def call(single_buffer_weights):
        wspec = _weight_spec_factory(single_buffer_weights)
        grid_spec = pltpu.PrefetchScalarGridSpec(
            num_scalar_prefetch=0,
            grid=(B,),
            in_specs=[
                pl.BlockSpec((1, S, Hp), lambda b: (b, 0, 0)),   # x (double-buffered)
                wspec((Hp, 3 * Dhp)), wspec((1, 3 * Dhp)),       # Wqkv, bqkv
                wspec((Dhp, Hp)), wspec((1, Hp)),                # Wo, bo
                wspec((1, Hp)), wspec((1, Hp)),                  # ln1 gamma, beta
                wspec((Hp, Fp)), wspec((1, Fp)),                 # W1, b1
                wspec((Fp, Hp)), wspec((1, Hp)),                 # W2, b2
                wspec((1, Hp)), wspec((1, Hp)),                  # ln2 gamma, beta
            ],
            out_specs=pl.BlockSpec((1, S, Hp), lambda b: (b, 0, 0)),
        )
        return pl.pallas_call(
            kernel,
            out_shape=jax.ShapeDtypeStruct((B, S, Hp), jnp.float32),
            grid_spec=grid_spec,
            compiler_params=pltpu.CompilerParams(
                dimension_semantics=("parallel",),
                vmem_limit_bytes=vmem_bytes,
            ),
        )(*operands)

    try:
        out = call(True)       # single-buffer the grid-invariant weights (v7x VMEM)
    except Exception:          # older JAX without BlockSpec pipeline_mode support
        out = call(False)

    return out[:, :, :H]


def init_params(key, hidden_dim, kqv_dim, num_heads, ff_dim):
    Dh = num_heads * kqv_dim
    keys = jax.random.split(key, 8)
    scale = 0.02
    return {
        "wq": scale * jax.random.normal(keys[0], (hidden_dim, Dh), jnp.float32),
        "bq": jnp.zeros((1, Dh), jnp.float32),
        "wk": scale * jax.random.normal(keys[1], (hidden_dim, Dh), jnp.float32),
        "bk": jnp.zeros((1, Dh), jnp.float32),
        "wv": scale * jax.random.normal(keys[2], (hidden_dim, Dh), jnp.float32),
        "bv": jnp.zeros((1, Dh), jnp.float32),
        "wo": scale * jax.random.normal(keys[3], (Dh, hidden_dim), jnp.float32),
        "bo": scale * jax.random.normal(keys[4], (1, hidden_dim), jnp.float32),
        "ln1_g": jnp.ones((1, hidden_dim), jnp.float32),
        "ln1_b": jnp.zeros((1, hidden_dim), jnp.float32),
        "w1": scale * jax.random.normal(keys[5], (hidden_dim, ff_dim), jnp.float32),
        "b1": scale * jax.random.normal(keys[6], (1, ff_dim), jnp.float32),
        "w2": scale * jax.random.normal(keys[7], (ff_dim, hidden_dim), jnp.float32),
        "b2": jnp.zeros((1, hidden_dim), jnp.float32),
        "ln2_g": jnp.ones((1, hidden_dim), jnp.float32),
        "ln2_b": jnp.zeros((1, hidden_dim), jnp.float32),
    }


def _reference_block(x, p, *, num_heads, head_dim):
    """Pure-JAX f32 reference matching the PyTorch module's forward."""
    def ln(z, g, b, eps=1e-5):
        mu = jnp.mean(z, axis=-1, keepdims=True)
        var = jnp.mean((z - mu) ** 2, axis=-1, keepdims=True)
        return (z - mu) * jax.lax.rsqrt(var + eps) * g + b

    B, S, _ = x.shape
    q = (x @ p["wq"] + p["bq"][0]).reshape(B, S, num_heads, head_dim)
    k = (x @ p["wk"] + p["bk"][0]).reshape(B, S, num_heads, head_dim)
    v = (x @ p["wv"] + p["bv"][0]).reshape(B, S, num_heads, head_dim)
    s = jnp.einsum("bqhd,bkhd->bhqk", q, k) / (head_dim ** 0.5)
    a = jax.nn.softmax(s, axis=-1)
    ctx = jnp.einsum("bhqk,bkhd->bqhd", a, v).reshape(B, S, -1)
    attn = ctx @ p["wo"] + p["bo"][0]
    y1 = ln(x + attn, p["ln1_g"][0], p["ln1_b"][0])
    ffn = jnp.maximum(y1 @ p["w1"] + p["b1"][0], 0.0) @ p["w2"] + p["b2"][0]
    return ln(y1 + ffn, p["ln2_g"][0], p["ln2_b"][0])


if __name__ == "__main__":
    # Small deterministic config (module defaults scaled down for a quick run).
    B, S = 2, 8
    hidden_dim = 32
    kqv_dim = 16
    num_heads = 4
    ff_dim = 64

    key = jax.random.PRNGKey(0)
    kx, kp = jax.random.split(key)
    x = jax.random.normal(kx, (B, S, hidden_dim), jnp.float32)
    params = init_params(kp, hidden_dim, kqv_dim, num_heads, ff_dim)

    out = transformer_encoder_block(x, params, num_heads=num_heads, head_dim=kqv_dim)
    out = jax.block_until_ready(out)
    assert out.shape == (B, S, hidden_dim)
    assert bool(jnp.all(jnp.isfinite(out)))

    # bf16 MXU operands + approx reciprocal => small deviation vs f32 reference.
    ref = _reference_block(x, params, num_heads=num_heads, head_dim=kqv_dim)
    max_err = float(jnp.max(jnp.abs(out - ref)))
    assert max_err < 5e-2, f"max |out - ref| = {max_err}"

    print("KERNEL_OK")
</pallas_src>

<mosaic_0001>
module attributes {stable_mosaic.version = 11 : i64} {
  func.func @encoder_block_kernel(%arg0: i32, %arg1: memref<1x8x128xf32, #tpu.memory_space<vmem>>, %arg2: memref<128x384xbf16, #tpu.memory_space<vmem>>, %arg3: memref<1x384xf32, #tpu.memory_space<vmem>>, %arg4: memref<128x128xbf16, #tpu.memory_space<vmem>>, %arg5: memref<1x128xf32, #tpu.memory_space<vmem>>, %arg6: memref<1x128xf32, #tpu.memory_space<vmem>>, %arg7: memref<1x128xf32, #tpu.memory_space<vmem>>, %arg8: memref<128x128xbf16, #tpu.memory_space<vmem>>, %arg9: memref<1x128xf32, #tpu.memory_space<vmem>>, %arg10: memref<128x128xbf16, #tpu.memory_space<vmem>>, %arg11: memref<1x128xf32, #tpu.memory_space<vmem>>, %arg12: memref<1x128xf32, #tpu.memory_space<vmem>>, %arg13: memref<1x128xf32, #tpu.memory_space<vmem>>, %arg14: memref<1x8x128xf32, #tpu.memory_space<vmem>>) attributes {dimension_semantics = [#tpu.dimension_semantics<parallel>], iteration_bounds = array<i64: 2>, scalar_prefetch = 0 : i64, scratch_operands = 0 : i64, tpu.core_type = #tpu.core_type<tc>, window_params = [{transform_indices = @transform_0, window_bounds = array<i64: 1, 8, 128>}, {pipeline_mode = #tpu.pipeline_mode<synchronous>, transform_indices = @transform_1, window_bounds = array<i64: 128, 384>}, {pipeline_mode = #tpu.pipeline_mode<synchronous>, transform_indices = @transform_2, window_bounds = array<i64: 1, 384>}, {pipeline_mode = #tpu.pipeline_mode<synchronous>, transform_indices = @transform_3, window_bounds = array<i64: 128, 128>}, {pipeline_mode = #tpu.pipeline_mode<synchronous>, transform_indices = @transform_4, window_bounds = array<i64: 1, 128>}, {pipeline_mode = #tpu.pipeline_mode<synchronous>, transform_indices = @transform_5, window_bounds = array<i64: 1, 128>}, {pipeline_mode = #tpu.pipeline_mode<synchronous>, transform_indices = @transform_6, window_bounds = array<i64: 1, 128>}, {pipeline_mode = #tpu.pipeline_mode<synchronous>, transform_indices = @transform_7, window_bounds = array<i64: 128, 128>}, {pipeline_mode = #tpu.pipeline_mode<synchronous>, transform_indices = @transform_8, window_bounds = array<i64: 1, 128>}, {pipeline_mode = #tpu.pipeline_mode<synchronous>, transform_indices = @transform_9, window_bounds = array<i64: 128, 128>}, {pipeline_mode = #tpu.pipeline_mode<synchronous>, transform_indices = @transform_10, window_bounds = array<i64: 1, 128>}, {pipeline_mode = #tpu.pipeline_mode<synchronous>, transform_indices = @transform_11, window_bounds = array<i64: 1, 128>}, {pipeline_mode = #tpu.pipeline_mode<synchronous>, transform_indices = @transform_12, window_bounds = array<i64: 1, 128>}, {transform_indices = @transform_13, window_bounds = array<i64: 1, 8, 128>}]} {
    %c0 = arith.constant 0 : index
    %c0_0 = arith.constant 0 : index
    %c0_1 = arith.constant 0 : index
    %0 = vector.load %arg1[%c0, %c0_0, %c0_1] : memref<1x8x128xf32, #tpu.memory_space<vmem>>, vector<1x8x128xf32>
    %1 = vector.shape_cast %0 : vector<1x8x128xf32> to vector<8x128xf32>
    %2 = arith.truncf %1 : vector<8x128xf32> to vector<8x128xbf16>
    %c0_2 = arith.constant 0 : index
    %c0_3 = arith.constant 0 : index
    %3 = vector.load %arg2[%c0_2, %c0_3] : memref<128x384xbf16, #tpu.memory_space<vmem>>, vector<128x384xbf16>
    %cst = arith.constant dense<0.000000e+00> : vector<8x384xf32>
    %4 = tpu.matmul %2, %3, %cst {dimension_numbers = #tpu.dot_dimension_numbers<[1], [0], [0], [1], [0, 0, 1, 1], [], []>} : vector<8x128xbf16>, vector<128x384xbf16>, vector<8x384xf32> -> vector<8x384xf32>
    %c0_4 = arith.constant 0 : index
    %c0_5 = arith.constant 0 : index
    %5 = vector.load %arg3[%c0_4, %c0_5] : memref<1x384xf32, #tpu.memory_space<vmem>>, vector<1x384xf32>
    %6 = vector.shape_cast %5 : vector<1x384xf32> to vector<384xf32>
    %7 = vector.shape_cast %6 : vector<384xf32> to vector<1x384xf32>
    %8 = vector.broadcast %7 : vector<1x384xf32> to vector<8x384xf32>
    %9 = arith.addf %4, %8 : vector<8x384xf32>
    %10 = arith.truncf %9 : vector<8x384xf32> to vector<8x384xbf16>
    %11 = vector.extract_strided_slice %10 {offsets = [0, 128], sizes = [8, 16], strides = [1, 1]} : vector<8x384xbf16> to vector<8x16xbf16>
    %12 = vector.extract_strided_slice %10 {offsets = [0, 144], sizes = [8, 16], strides = [1, 1]} : vector<8x384xbf16> to vector<8x16xbf16>
    %13 = vector.extract_strided_slice %10 {offsets = [0, 160], sizes = [8, 16], strides = [1, 1]} : vector<8x384xbf16> to vector<8x16xbf16>
    %14 = vector.extract_strided_slice %10 {offsets = [0, 176], sizes = [8, 16], strides = [1, 1]} : vector<8x384xbf16> to vector<8x16xbf16>
    %15 = vector.extract_strided_slice %10 {offsets = [0, 256], sizes = [8, 16], strides = [1, 1]} : vector<8x384xbf16> to vector<8x16xbf16>
    %16 = vector.extract_strided_slice %10 {offsets = [0, 272], sizes = [8, 16], strides = [1, 1]} : vector<8x384xbf16> to vector<8x16xbf16>
    %17 = vector.extract_strided_slice %10 {offsets = [0, 288], sizes = [8, 16], strides = [1, 1]} : vector<8x384xbf16> to vector<8x16xbf16>
    %18 = vector.extract_strided_slice %10 {offsets = [0, 304], sizes = [8, 16], strides = [1, 1]} : vector<8x384xbf16> to vector<8x16xbf16>
    %c0_6 = arith.constant 0 : index
    %c0_7 = arith.constant 0 : index
    %19 = vector.load %arg6[%c0_6, %c0_7] : memref<1x128xf32, #tpu.memory_space<vmem>>, vector<1x128xf32>
    %20 = vector.shape_cast %19 : vector<1x128xf32> to vector<128xf32>
    %c0_8 = arith.constant 0 : index
    %c0_9 = arith.constant 0 : index
    %21 = vector.load %arg7[%c0_8, %c0_9] : memref<1x128xf32, #tpu.memory_space<vmem>>, vector<1x128xf32>
    %22 = vector.shape_cast %21 : vector<1x128xf32> to vector<128xf32>
    %c0_10 = arith.constant 0 : index
    %c0_11 = arith.constant 0 : index
    %23 = vector.load %arg12[%c0_10, %c0_11] : memref<1x128xf32, #tpu.memory_space<vmem>>, vector<1x128xf32>
    %24 = vector.shape_cast %23 : vector<1x128xf32> to vector<128xf32>
    %c0_12 = arith.constant 0 : index
    %c0_13 = arith.constant 0 : index
    %25 = vector.load %arg13[%c0_12, %c0_13] : memref<1x128xf32, #tpu.memory_space<vmem>>, vector<1x128xf32>
    %26 = vector.shape_cast %25 : vector<1x128xf32> to vector<128xf32>
    %c0_14 = arith.constant 0 : index
    %c0_15 = arith.constant 0 : index
    %27 = vector.load %arg5[%c0_14, %c0_15] : memref<1x128xf32, #tpu.memory_space<vmem>>, vector<1x128xf32>
    %28 = vector.shape_cast %27 : vector<1x128xf32> to vector<128xf32>
    %c0_16 = arith.constant 0 : index
    %c0_17 = arith.constant 0 : index
    %29 = vector.load %arg11[%c0_16, %c0_17] : memref<1x128xf32, #tpu.memory_space<vmem>>, vector<1x128xf32>
    %30 = vector.shape_cast %29 : vector<1x128xf32> to vector<128xf32>
    %31 = vector.extract_strided_slice %10 {offsets = [0, 0], sizes = [8, 16], strides = [1, 1]} : vector<8x384xbf16> to vector<8x16xbf16>
    %cst_18 = arith.constant dense<0.000000e+00> : vector<8x8xf32>
    %32 = tpu.matmul %31, %11, %cst_18 {dimension_numbers = #tpu.dot_dimension_numbers<[1], [1], [0], [0], [0, 0, 1, 0], [], []>} : vector<8x16xbf16>, vector<8x16xbf16>, vector<8x8xf32> -> vector<8x8xf32>
    %cst_19 = arith.constant dense<0xFF800000> : vector<8xf32>
    %33 = vector.multi_reduction <maximumf>, %32, %cst_19 [1] : vector<8x8xf32> to vector<8xf32>
    %34 = vector.shape_cast %33 : vector<8xf32> to vector<8x1xf32>
    %35 = vector.broadcast %34 : vector<8x1xf32> to vector<8x8xf32>
    %36 = arith.subf %32, %35 : vector<8x8xf32>
    %37 = math.exp %36 : vector<8x8xf32>
    %cst_20 = arith.constant dense<0.000000e+00> : vector<8xf32>
    %38 = vector.multi_reduction <add>, %37, %cst_20 [1] : vector<8x8xf32> to vector<8xf32>
    %39 = vector.shape_cast %38 : vector<8xf32> to vector<8x1xf32>
    %40 = tpu.reciprocal %39 {approx = true} : vector<8x1xf32> -> vector<8x1xf32>
    %41 = vector.broadcast %40 : vector<8x1xf32> to vector<8x8xf32>
    %42 = arith.mulf %37, %41 : vector<8x8xf32>
    %43 = arith.truncf %42 : vector<8x8xf32> to vector<8x8xbf16>
    %cst_21 = arith.constant dense<0.000000e+00> : vector<8x16xf32>
    %44 = tpu.matmul %43, %15, %cst_21 {dimension_numbers = #tpu.dot_dimension_numbers<[1], [0], [0], [1], [0, 0, 1, 1], [], []>} : vector<8x8xbf16>, vector<8x16xbf16>, vector<8x16xf32> -> vector<8x16xf32>
    %45 = vector.extract_strided_slice %10 {offsets = [0, 16], sizes = [8, 16], strides = [1, 1]} : vector<8x384xbf16> to vector<8x16xbf16>
    %cst_22 = arith.constant dense<0.000000e+00> : vector<8x8xf32>
    %46 = tpu.matmul %45, %12, %cst_22 {dimension_numbers = #tpu.dot_dimension_numbers<[1], [1], [0], [0], [0, 0, 1, 0], [], []>} : vector<8x16xbf16>, vector<8x16xbf16>, vector<8x8xf32> -> vector<8x8xf32>
    %cst_23 = arith.constant dense<0xFF800000> : vector<8xf32>
    %47 = vector.multi_reduction <maximumf>, %46, %cst_23 [1] : vector<8x8xf32> to vector<8xf32>
    %48 = vector.shape_cast %47 : vector<8xf32> to vector<8x1xf32>
    %49 = vector.broadcast %48 : vector<8x1xf32> to vector<8x8xf32>
    %50 = arith.subf %46, %49 : vector<8x8xf32>
    %51 = math.exp %50 : vector<8x8xf32>
    %cst_24 = arith.constant dense<0.000000e+00> : vector<8xf32>
    %52 = vector.multi_reduction <add>, %51, %cst_24 [1] : vector<8x8xf32> to vector<8xf32>
    %53 = vector.shape_cast %52 : vector<8xf32> to vector<8x1xf32>
    %54 = tpu.reciprocal %53 {approx = true} : vector<8x1xf32> -> vector<8x1xf32>
    %55 = vector.broadcast %54 : vector<8x1xf32> to vector<8x8xf32>
    %56 = arith.mulf %51, %55 : vector<8x8xf32>
    %57 = arith.truncf %56 : vector<8x8xf32> to vector<8x8xbf16>
    %cst_25 = arith.constant dense<0.000000e+00> : vector<8x16xf32>
    %58 = tpu.matmul %57, %16, %cst_25 {dimension_numbers = #tpu.dot_dimension_numbers<[1], [0], [0], [1], [0, 0, 1, 1], [], []>} : vector<8x8xbf16>, vector<8x16xbf16>, vector<8x16xf32> -> vector<8x16xf32>
    %59 = vector.extract_strided_slice %10 {offsets = [0, 32], sizes = [8, 16], strides = [1, 1]} : vector<8x384xbf16> to vector<8x16xbf16>
    %cst_26 = arith.constant dense<0.000000e+00> : vector<8x8xf32>
    %60 = tpu.matmul %59, %13, %cst_26 {dimension_numbers = #tpu.dot_dimension_numbers<[1], [1], [0], [0], [0, 0, 1, 0], [], []>} : vector<8x16xbf16>, vector<8x16xbf16>, vector<8x8xf32> -> vector<8x8xf32>
    %cst_27 = arith.constant dense<0xFF800000> : vector<8xf32>
    %61 = vector.multi_reduction <maximumf>, %60, %cst_27 [1] : vector<8x8xf32> to vector<8xf32>
    %62 = vector.shape_cast %61 : vector<8xf32> to vector<8x1xf32>
    %63 = vector.broadcast %62 : vector<8x1xf32> to vector<8x8xf32>
    %64 = arith.subf %60, %63 : vector<8x8xf32>
    %65 = math.exp %64 : vector<8x8xf32>
    %cst_28 = arith.constant dense<0.000000e+00> : vector<8xf32>
    %66 = vector.multi_reduction <add>, %65, %cst_28 [1] : vector<8x8xf32> to vector<8xf32>
    %67 = vector.shape_cast %66 : vector<8xf32> to vector<8x1xf32>
    %68 = tpu.reciprocal %67 {approx = true} : vector<8x1xf32> -> vector<8x1xf32>
    %69 = vector.broadcast %68 : vector<8x1xf32> to vector<8x8xf32>
    %70 = arith.mulf %65, %69 : vector<8x8xf32>
    %71 = arith.truncf %70 : vector<8x8xf32> to vector<8x8xbf16>
    %cst_29 = arith.constant dense<0.000000e+00> : vector<8x16xf32>
    %72 = tpu.matmul %71, %17, %cst_29 {dimension_numbers = #tpu.dot_dimension_numbers<[1], [0], [0], [1], [0, 0, 1, 1], [], []>} : vector<8x8xbf16>, vector<8x16xbf16>, vector<8x16xf32> -> vector<8x16xf32>
    %73 = vector.extract_strided_slice %10 {offsets = [0, 48], sizes = [8, 16], strides = [1, 1]} : vector<8x384xbf16> to vector<8x16xbf16>
    %cst_30 = arith.constant dense<0.000000e+00> : vector<8x8xf32>
    %74 = tpu.matmul %73, %14, %cst_30 {dimension_numbers = #tpu.dot_dimension_numbers<[1], [1], [0], [0], [0, 0, 1, 0], [], []>} : vector<8x16xbf16>, vector<8x16xbf16>, vector<8x8xf32> -> vector<8x8xf32>
    %cst_31 = arith.constant dense<0xFF800000> : vector<8xf32>
    %75 = vector.multi_reduction <maximumf>, %74, %cst_31 [1] : vector<8x8xf32> to vector<8xf32>
    %76 = vector.shape_cast %75 : vector<8xf32> to vector<8x1xf32>
    %77 = vector.broadcast %76 : vector<8x1xf32> to vector<8x8xf32>
    %78 = arith.subf %74, %77 : vector<8x8xf32>
    %79 = math.exp %78 : vector<8x8xf32>
    %cst_32 = arith.constant dense<0.000000e+00> : vector<8xf32>
    %80 = vector.multi_reduction <add>, %79, %cst_32 [1] : vector<8x8xf32> to vector<8xf32>
    %81 = vector.shape_cast %80 : vector<8xf32> to vector<8x1xf32>
    %82 = tpu.reciprocal %81 {approx = true} : vector<8x1xf32> -> vector<8x1xf32>
    %83 = vector.broadcast %82 : vector<8x1xf32> to vector<8x8xf32>
    %84 = arith.mulf %79, %83 : vector<8x8xf32>
    %85 = arith.truncf %84 : vector<8x8xf32> to vector<8x8xbf16>
    %cst_33 = arith.constant dense<0.000000e+00> : vector<8x16xf32>
    %86 = tpu.matmul %85, %18, %cst_33 {dimension_numbers = #tpu.dot_dimension_numbers<[1], [0], [0], [1], [0, 0, 1, 1], [], []>} : vector<8x8xbf16>, vector<8x16xbf16>, vector<8x16xf32> -> vector<8x16xf32>
    %cst_34 = arith.constant 0.000000e+00 : f32
    %87 = vector.broadcast %cst_34 : f32 to vector<8x64xf32>
    %88 = tpu.concatenate %44, %58, %72, %86, %87 in 1 : vector<8x16xf32>, vector<8x16xf32>, vector<8x16xf32>, vector<8x16xf32>, vector<8x64xf32> -> vector<8x128xf32>
    %89 = arith.truncf %88 : vector<8x128xf32> to vector<8x128xbf16>
    %c0_35 = arith.constant 0 : index
    %c0_36 = arith.constant 0 : index
    %90 = vector.load %arg4[%c0_35, %c0_36] : memref<128x128xbf16, #tpu.memory_space<vmem>>, vector<128x128xbf16>
    %cst_37 = arith.constant dense<0.000000e+00> : vector<8x128xf32>
    %91 = tpu.matmul %89, %90, %cst_37 {dimension_numbers = #tpu.dot_dimension_numbers<[1], [0], [0], [1], [0, 0, 1, 1], [], []>} : vector<8x128xbf16>, vector<128x128xbf16>, vector<8x128xf32> -> vector<8x128xf32>
    %92 = vector.shape_cast %28 : vector<128xf32> to vector<1x128xf32>
    %93 = vector.broadcast %92 : vector<1x128xf32> to vector<8x128xf32>
    %94 = arith.addf %91, %93 : vector<8x128xf32>
    %95 = arith.addf %1, %94 : vector<8x128xf32>
    %cst_38 = arith.constant dense<0.000000e+00> : vector<8xf32>
    %96 = vector.multi_reduction <add>, %95, %cst_38 [1] : vector<8x128xf32> to vector<8xf32>
    %97 = vector.shape_cast %96 : vector<8xf32> to vector<8x1xf32>
    %cst_39 = arith.constant 3.125000e-02 : f32
    %98 = vector.broadcast %cst_39 : f32 to vector<8x1xf32>
    %99 = arith.mulf %97, %98 : vector<8x1xf32>
    %100 = vector.broadcast %99 : vector<8x1xf32> to vector<8x128xf32>
    %101 = arith.subf %95, %100 : vector<8x128xf32>
    %102 = tpu.iota {dimensions = array<i32: 1>} : vector<8x128xi32>
    %c32_i32 = arith.constant 32 : i32
    %103 = vector.broadcast %c32_i32 : i32 to vector<8x128xi32>
    %104 = arith.cmpi slt, %102, %103 : vector<8x128xi32>
    %cst_40 = arith.constant 0.000000e+00 : f32
    %105 = vector.broadcast %cst_40 : f32 to vector<8x128xf32>
    %106 = arith.select %104, %101, %105 : vector<8x128xi1>, vector<8x128xf32>
    %107 = arith.mulf %106, %106 : vector<8x128xf32>
    %cst_41 = arith.constant dense<0.000000e+00> : vector<8xf32>
    %108 = vector.multi_reduction <add>, %107, %cst_41 [1] : vector<8x128xf32> to vector<8xf32>
    %109 = vector.shape_cast %108 : vector<8xf32> to vector<8x1xf32>
    %cst_42 = arith.constant 3.125000e-02 : f32
    %110 = vector.broadcast %cst_42 : f32 to vector<8x1xf32>
    %111 = arith.mulf %109, %110 : vector<8x1xf32>
    %cst_43 = arith.constant 9.99999974E-6 : f32
    %112 = vector.broadcast %cst_43 : f32 to vector<8x1xf32>
    %113 = arith.addf %111, %112 : vector<8x1xf32>
    %114 = math.rsqrt %113 : vector<8x1xf32>
    %115 = vector.broadcast %114 : vector<8x1xf32> to vector<8x128xf32>
    %116 = arith.mulf %106, %115 : vector<8x128xf32>
    %117 = vector.shape_cast %20 : vector<128xf32> to vector<1x128xf32>
    %118 = vector.broadcast %117 : vector<1x128xf32> to vector<8x128xf32>
    %119 = arith.mulf %116, %118 : vector<8x128xf32>
    %120 = vector.shape_cast %22 : vector<128xf32> to vector<1x128xf32>
    %121 = vector.broadcast %120 : vector<1x128xf32> to vector<8x128xf32>
    %122 = arith.addf %119, %121 : vector<8x128xf32>
    %123 = arith.truncf %122 : vector<8x128xf32> to vector<8x128xbf16>
    %c0_44 = arith.constant 0 : index
    %c0_45 = arith.constant 0 : index
    %124 = vector.load %arg8[%c0_44, %c0_45] : memref<128x128xbf16, #tpu.memory_space<vmem>>, vector<128x128xbf16>
    %cst_46 = arith.constant dense<0.000000e+00> : vector<8x128xf32>
    %125 = tpu.matmul %123, %124, %cst_46 {dimension_numbers = #tpu.dot_dimension_numbers<[1], [0], [0], [1], [0, 0, 1, 1], [], []>} : vector<8x128xbf16>, vector<128x128xbf16>, vector<8x128xf32> -> vector<8x128xf32>
    %c0_47 = arith.constant 0 : index
    %c0_48 = arith.constant 0 : index
    %126 = vector.load %arg9[%c0_47, %c0_48] : memref<1x128xf32, #tpu.memory_space<vmem>>, vector<1x128xf32>
    %127 = vector.shape_cast %126 : vector<1x128xf32> to vector<128xf32>
    %128 = vector.shape_cast %127 : vector<128xf32> to vector<1x128xf32>
    %129 = vector.broadcast %128 : vector<1x128xf32> to vector<8x128xf32>
    %130 = arith.addf %125, %129 : vector<8x128xf32>
    %cst_49 = arith.constant 0.000000e+00 : f32
    %131 = vector.broadcast %cst_49 : f32 to vector<8x128xf32>
    %132 = arith.maximumf %130, %131 : vector<8x128xf32>
    %133 = arith.truncf %132 : vector<8x128xf32> to vector<8x128xbf16>
    %c0_50 = arith.constant 0 : index
    %c0_51 = arith.constant 0 : index
    %134 = vector.load %arg10[%c0_50, %c0_51] : memref<128x128xbf16, #tpu.memory_space<vmem>>, vector<128x128xbf16>
    %cst_52 = arith.constant dense<0.000000e+00> : vector<8x128xf32>
    %135 = tpu.matmul %133, %134, %cst_52 {dimension_numbers = #tpu.dot_dimension_numbers<[1], [0], [0], [1], [0, 0, 1, 1], [], []>} : vector<8x128xbf16>, vector<128x128xbf16>, vector<8x128xf32> -> vector<8x128xf32>
    %136 = vector.shape_cast %30 : vector<128xf32> to vector<1x128xf32>
    %137 = vector.broadcast %136 : vector<1x128xf32> to vector<8x128xf32>
    %138 = arith.addf %135, %137 : vector<8x128xf32>
    %139 = arith.addf %122, %138 : vector<8x128xf32>
    %cst_53 = arith.constant dense<0.000000e+00> : vector<8xf32>
    %140 = vector.multi_reduction <add>, %139, %cst_53 [1] : vector<8x128xf32> to vector<8xf32>
    %141 = vector.shape_cast %140 : vector<8xf32> to vector<8x1xf32>
    %cst_54 = arith.constant 3.125000e-02 : f32
    %142 = vector.broadcast %cst_54 : f32 to vector<8x1xf32>
    %143 = arith.mulf %141, %142 : vector<8x1xf32>
    %144 = vector.broadcast %143 : vector<8x1xf32> to vector<8x128xf32>
    %145 = arith.subf %139, %144 : vector<8x128xf32>
    %146 = tpu.iota {dimensions = array<i32: 1>} : vector<8x128xi32>
    %c32_i32_55 = arith.constant 32 : i32
    %147 = vector.broadcast %c32_i32_55 : i32 to vector<8x128xi32>
    %148 = arith.cmpi slt, %146, %147 : vector<8x128xi32>
    %cst_56 = arith.constant 0.000000e+00 : f32
    %149 = vector.broadcast %cst_56 : f32 to vector<8x128xf32>
    %150 = arith.select %148, %145, %149 : vector<8x128xi1>, vector<8x128xf32>
    %151 = arith.mulf %150, %150 : vector<8x128xf32>
    %cst_57 = arith.constant dense<0.000000e+00> : vector<8xf32>
    %152 = vector.multi_reduction <add>, %151, %cst_57 [1] : vector<8x128xf32> to vector<8xf32>
    %153 = vector.shape_cast %152 : vector<8xf32> to vector<8x1xf32>
    %cst_58 = arith.constant 3.125000e-02 : f32
    %154 = vector.broadcast %cst_58 : f32 to vector<8x1xf32>
    %155 = arith.mulf %153, %154 : vector<8x1xf32>
    %cst_59 = arith.constant 9.99999974E-6 : f32
    %156 = vector.broadcast %cst_59 : f32 to vector<8x1xf32>
    %157 = arith.addf %155, %156 : vector<8x1xf32>
    %158 = math.rsqrt %157 : vector<8x1xf32>
    %159 = vector.broadcast %158 : vector<8x1xf32> to vector<8x128xf32>
    %160 = arith.mulf %150, %159 : vector<8x128xf32>
    %161 = vector.shape_cast %24 : vector<128xf32> to vector<1x128xf32>
    %162 = vector.broadcast %161 : vector<1x128xf32> to vector<8x128xf32>
    %163 = arith.mulf %160, %162 : vector<8x128xf32>
    %164 = vector.shape_cast %26 : vector<128xf32> to vector<1x128xf32>
    %165 = vector.broadcast %164 : vector<1x128xf32> to vector<8x128xf32>
    %166 = arith.addf %163, %165 : vector<8x128xf32>
    %c0_60 = arith.constant 0 : index
    %c0_61 = arith.constant 0 : index
    %c0_62 = arith.constant 0 : index
    %167 = vector.load %arg14[%c0_60, %c0_61, %c0_62] : memref<1x8x128xf32, #tpu.memory_space<vmem>>, vector<1x8x128xf32>
    %168 = vector.shape_cast %167 : vector<1x8x128xf32> to vector<8x128xf32>
    %169 = vector.shape_cast %166 : vector<8x128xf32> to vector<1x8x128xf32>
    tpu.vector_store %arg14[%c0_60, %c0_61, %c0_62], %169 {strides = array<i32>} : memref<1x8x128xf32, #tpu.memory_space<vmem>>, vector<1x8x128xf32>,
    return
  }
  func.func @transform_0(%arg0: i32) -> (i32, i32, i32) {
    %c0_i32 = arith.constant 0 : i32
    %c0_i32_0 = arith.constant 0 : i32
    %c0_i32_1 = arith.constant 0 : i32
    return %arg0, %c0_i32, %c0_i32_0 : i32, i32, i32
  }
  func.func @transform_1(%arg0: i32) -> (i32, i32) {
    %c0_i32 = arith.constant 0 : i32
    %c0_i32_0 = arith.constant 0 : i32
    %c0_i32_1 = arith.constant 0 : i32
    return %c0_i32, %c0_i32_0 : i32, i32
  }
  func.func @transform_2(%arg0: i32) -> (i32, i32) {
    %c0_i32 = arith.constant 0 : i32
    %c0_i32_0 = arith.constant 0 : i32
    %c0_i32_1 = arith.constant 0 : i32
    return %c0_i32, %c0_i32_0 : i32, i32
  }
  func.func @transform_3(%arg0: i32) -> (i32, i32) {
    %c0_i32 = arith.constant 0 : i32
    %c0_i32_0 = arith.constant 0 : i32
    %c0_i32_1 = arith.constant 0 : i32
    return %c0_i32, %c0_i32_0 : i32, i32
  }
  func.func @transform_4(%arg0: i32) -> (i32, i32) {
    %c0_i32 = arith.constant 0 : i32
    %c0_i32_0 = arith.constant 0 : i32
    %c0_i32_1 = arith.constant 0 : i32
    return %c0_i32, %c0_i32_0 : i32, i32
  }
  func.func @transform_5(%arg0: i32) -> (i32, i32) {
    %c0_i32 = arith.constant 0 : i32
    %c0_i32_0 = arith.constant 0 : i32
    %c0_i32_1 = arith.constant 0 : i32
    return %c0_i32, %c0_i32_0 : i32, i32
  }
  func.func @transform_6(%arg0: i32) -> (i32, i32) {
    %c0_i32 = arith.constant 0 : i32
    %c0_i32_0 = arith.constant 0 : i32
    %c0_i32_1 = arith.constant 0 : i32
    return %c0_i32, %c0_i32_0 : i32, i32
  }
  func.func @transform_7(%arg0: i32) -> (i32, i32) {
    %c0_i32 = arith.constant 0 : i32
    %c0_i32_0 = arith.constant 0 : i32
    %c0_i32_1 = arith.constant 0 : i32
    return %c0_i32, %c0_i32_0 : i32, i32
  }
  func.func @transform_8(%arg0: i32) -> (i32, i32) {
    %c0_i32 = arith.constant 0 : i32
    %c0_i32_0 = arith.constant 0 : i32
    %c0_i32_1 = arith.constant 0 : i32
    return %c0_i32, %c0_i32_0 : i32, i32
  }
  func.func @transform_9(%arg0: i32) -> (i32, i32) {
    %c0_i32 = arith.constant 0 : i32
    %c0_i32_0 = arith.constant 0 : i32
    %c0_i32_1 = arith.constant 0 : i32
    return %c0_i32, %c0_i32_0 : i32, i32
  }
  func.func @transform_10(%arg0: i32) -> (i32, i32) {
    %c0_i32 = arith.constant 0 : i32
    %c0_i32_0 = arith.constant 0 : i32
    %c0_i32_1 = arith.constant 0 : i32
    return %c0_i32, %c0_i32_0 : i32, i32
  }
  func.func @transform_11(%arg0: i32) -> (i32, i32) {
    %c0_i32 = arith.constant 0 : i32
    %c0_i32_0 = arith.constant 0 : i32
    %c0_i32_1 = arith.constant 0 : i32
    return %c0_i32, %c0_i32_0 : i32, i32
  }
  func.func @transform_12(%arg0: i32) -> (i32, i32) {
    %c0_i32 = arith.constant 0 : i32
    %c0_i32_0 = arith.constant 0 : i32
    %c0_i32_1 = arith.constant 0 : i32
    return %c0_i32, %c0_i32_0 : i32, i32
  }
  func.func @transform_13(%arg0: i32) -> (i32, i32, i32) {
    %c0_i32 = arith.constant 0 : i32
    %c0_i32_0 = arith.constant 0 : i32
    %c0_i32_1 = arith.constant 0 : i32
    return %arg0, %c0_i32, %c0_i32_0 : i32, i32, i32
  }
}

module attributes {stable_mosaic.version = 11 : i64} {
  func.func @encoder_block_kernel(%arg0: i32, %arg1: memref<1x8x128xf32, #tpu.memory_space<vmem>>, %arg2: memref<128x384xbf16, #tpu.memory_space<vmem>>, %arg3: memref<1x384xf32, #tpu.memory_space<vmem>>, %arg4: memref<128x128xbf16, #tpu.memory_space<vmem>>, %arg5: memref<1x128xf32, #tpu.memory_space<vmem>>, %arg6: memref<1x128xf32, #tpu.memory_space<vmem>>, %arg7: memref<1x128xf32, #tpu.memory_space<vmem>>, %arg8: memref<128x128xbf16, #tpu.memory_space<vmem>>, %arg9: memref<1x128xf32, #tpu.memory_space<vmem>>, %arg10: memref<128x128xbf16, #tpu.memory_space<vmem>>, %arg11: memref<1x128xf32, #tpu.memory_space<vmem>>, %arg12: memref<1x128xf32, #tpu.memory_space<vmem>>, %arg13: memref<1x128xf32, #tpu.memory_space<vmem>>, %arg14: memref<1x8x128xf32, #tpu.memory_space<vmem>>) attributes {dimension_semantics = [#tpu.dimension_semantics<parallel>], iteration_bounds = array<i64: 2>, scalar_prefetch = 0 : i64, scratch_operands = 0 : i64, tpu.core_type = #tpu.core_type<tc>, window_params = [{transform_indices = @transform_0, window_bounds = array<i64: 1, 8, 128>}, {pipeline_mode = #tpu.pipeline_mode<synchronous>, transform_indices = @transform_1, window_bounds = array<i64: 128, 384>}, {pipeline_mode = #tpu.pipeline_mode<synchronous>, transform_indices = @transform_2, window_bounds = array<i64: 1, 384>}, {pipeline_mode = #tpu.pipeline_mode<synchronous>, transform_indices = @transform_3, window_bounds = array<i64: 128, 128>}, {pipeline_mode = #tpu.pipeline_mode<synchronous>, transform_indices = @transform_4, window_bounds = array<i64: 1, 128>}, {pipeline_mode = #tpu.pipeline_mode<synchronous>, transform_indices = @transform_5, window_bounds = array<i64: 1, 128>}, {pipeline_mode = #tpu.pipeline_mode<synchronous>, transform_indices = @transform_6, window_bounds = array<i64: 1, 128>}, {pipeline_mode = #tpu.pipeline_mode<synchronous>, transform_indices = @transform_7, window_bounds = array<i64: 128, 128>}, {pipeline_mode = #tpu.pipeline_mode<synchronous>, transform_indices = @transform_8, window_bounds = array<i64: 1, 128>}, {pipeline_mode = #tpu.pipeline_mode<synchronous>, transform_indices = @transform_9, window_bounds = array<i64: 128, 128>}, {pipeline_mode = #tpu.pipeline_mode<synchronous>, transform_indices = @transform_10, window_bounds = array<i64: 1, 128>}, {pipeline_mode = #tpu.pipeline_mode<synchronous>, transform_indices = @transform_11, window_bounds = array<i64: 1, 128>}, {pipeline_mode = #tpu.pipeline_mode<synchronous>, transform_indices = @transform_12, window_bounds = array<i64: 1, 128>}, {transform_indices = @transform_13, window_bounds = array<i64: 1, 8, 128>}]} {
    %c0 = arith.constant 0 : index
    %c0_0 = arith.constant 0 : index
    %c0_1 = arith.constant 0 : index
    %0 = vector.load %arg1[%c0, %c0_0, %c0_1] : memref<1x8x128xf32, #tpu.memory_space<vmem>>, vector<1x8x128xf32>
    %1 = vector.shape_cast %0 : vector<1x8x128xf32> to vector<8x128xf32>
    %2 = arith.truncf %1 : vector<8x128xf32> to vector<8x128xbf16>
    %c0_2 = arith.constant 0 : index
    %c0_3 = arith.constant 0 : index
    %3 = vector.load %arg2[%c0_2, %c0_3] : memref<128x384xbf16, #tpu.memory_space<vmem>>, vector<128x384xbf16>
    %cst = arith.constant dense<0.000000e+00> : vector<8x384xf32>
    %4 = tpu.matmul %2, %3, %cst {dimension_numbers = #tpu.dot_dimension_numbers<[1], [0], [0], [1], [0, 0, 1, 1], [], []>} : vector<8x128xbf16>, vector<128x384xbf16>, vector<8x384xf32> -> vector<8x384xf32>
    %c0_4 = arith.constant 0 : index
    %c0_5 = arith.constant 0 : index
    %5 = vector.load %arg3[%c0_4, %c0_5] : memref<1x384xf32, #tpu.memory_space<vmem>>, vector<1x384xf32>
    %6 = vector.shape_cast %5 : vector<1x384xf32> to vector<384xf32>
    %7 = vector.shape_cast %6 : vector<384xf32> to vector<1x384xf32>
    %8 = vector.broadcast %7 : vector<1x384xf32> to vector<8x384xf32>
    %9 = arith.addf %4, %8 : vector<8x384xf32>
    %10 = arith.truncf %9 : vector<8x384xf32> to vector<8x384xbf16>
    %11 = vector.extract_strided_slice %10 {offsets = [0, 128], sizes = [8, 16], strides = [1, 1]} : vector<8x384xbf16> to vector<8x16xbf16>
    %12 = vector.extract_strided_slice %10 {offsets = [0, 144], sizes = [8, 16], strides = [1, 1]} : vector<8x384xbf16> to vector<8x16xbf16>
    %13 = vector.extract_strided_slice %10 {offsets = [0, 160], sizes = [8, 16], strides = [1, 1]} : vector<8x384xbf16> to vector<8x16xbf16>
    %14 = vector.extract_strided_slice %10 {offsets = [0, 176], sizes = [8, 16], strides = [1, 1]} : vector<8x384xbf16> to vector<8x16xbf16>
    %15 = vector.extract_strided_slice %10 {offsets = [0, 256], sizes = [8, 16], strides = [1, 1]} : vector<8x384xbf16> to vector<8x16xbf16>
    %16 = vector.extract_strided_slice %10 {offsets = [0, 272], sizes = [8, 16], strides = [1, 1]} : vector<8x384xbf16> to vector<8x16xbf16>
    %17 = vector.extract_strided_slice %10 {offsets = [0, 288], sizes = [8, 16], strides = [1, 1]} : vector<8x384xbf16> to vector<8x16xbf16>
    %18 = vector.extract_strided_slice %10 {offsets = [0, 304], sizes = [8, 16], strides = [1, 1]} : vector<8x384xbf16> to vector<8x16xbf16>
    %c0_6 = arith.constant 0 : index
    %c0_7 = arith.constant 0 : index
    %19 = vector.load %arg6[%c0_6, %c0_7] : memref<1x128xf32, #tpu.memory_space<vmem>>, vector<1x128xf32>
    %20 = vector.shape_cast %19 : vector<1x128xf32> to vector<128xf32>
    %c0_8 = arith.constant 0 : index
    %c0_9 = arith.constant 0 : index
    %21 = vector.load %arg7[%c0_8, %c0_9] : memref<1x128xf32, #tpu.memory_space<vmem>>, vector<1x128xf32>
    %22 = vector.shape_cast %21 : vector<1x128xf32> to vector<128xf32>
    %c0_10 = arith.constant 0 : index
    %c0_11 = arith.constant 0 : index
    %23 = vector.load %arg12[%c0_10, %c0_11] : memref<1x128xf32, #tpu.memory_space<vmem>>, vector<1x128xf32>
    %24 = vector.shape_cast %23 : vector<1x128xf32> to vector<128xf32>
    %c0_12 = arith.constant 0 : index
    %c0_13 = arith.constant 0 : index
    %25 = vector.load %arg13[%c0_12, %c0_13] : memref<1x128xf32, #tpu.memory_space<vmem>>, vector<1x128xf32>
    %26 = vector.shape_cast %25 : vector<1x128xf32> to vector<128xf32>
    %c0_14 = arith.constant 0 : index
    %c0_15 = arith.constant 0 : index
    %27 = vector.load %arg5[%c0_14, %c0_15] : memref<1x128xf32, #tpu.memory_space<vmem>>, vector<1x128xf32>
    %28 = vector.shape_cast %27 : vector<1x128xf32> to vector<128xf32>
    %c0_16 = arith.constant 0 : index
    %c0_17 = arith.constant 0 : index
    %29 = vector.load %arg11[%c0_16, %c0_17] : memref<1x128xf32, #tpu.memory_space<vmem>>, vector<1x128xf32>
    %30 = vector.shape_cast %29 : vector<1x128xf32> to vector<128xf32>
    %31 = vector.extract_strided_slice %10 {offsets = [0, 0], sizes = [8, 16], strides = [1, 1]} : vector<8x384xbf16> to vector<8x16xbf16>
    %cst_18 = arith.constant dense<0.000000e+00> : vector<8x8xf32>
    %32 = tpu.matmul %31, %11, %cst_18 {dimension_numbers = #tpu.dot_dimension_numbers<[1], [1], [0], [0], [0, 0, 1, 0], [], []>} : vector<8x16xbf16>, vector<8x16xbf16>, vector<8x8xf32> -> vector<8x8xf32>
    %cst_19 = arith.constant dense<0xFF800000> : vector<8xf32>
    %33 = vector.multi_reduction <maximumf>, %32, %cst_19 [1] : vector<8x8xf32> to vector<8xf32>
    %34 = vector.shape_cast %33 : vector<8xf32> to vector<8x1xf32>
    %35 = vector.broadcast %34 : vector<8x1xf32> to vector<8x8xf32>
    %36 = arith.subf %32, %35 : vector<8x8xf32>
    %37 = math.exp %36 : vector<8x8xf32>
    %cst_20 = arith.constant dense<0.000000e+00> : vector<8xf32>
    %38 = vector.multi_reduction <add>, %37, %cst_20 [1] : vector<8x8xf32> to vector<8xf32>
    %39 = vector.shape_cast %38 : vector<8xf32> to vector<8x1xf32>
    %40 = tpu.reciprocal %39 {approx = true} : vector<8x1xf32> -> vector<8x1xf32>
    %41 = vector.broadcast %40 : vector<8x1xf32> to vector<8x8xf32>
    %42 = arith.mulf %37, %41 : vector<8x8xf32>
    %43 = arith.truncf %42 : vector<8x8xf32> to vector<8x8xbf16>
    %cst_21 = arith.constant dense<0.000000e+00> : vector<8x16xf32>
    %44 = tpu.matmul %43, %15, %cst_21 {dimension_numbers = #tpu.dot_dimension_numbers<[1], [0], [0], [1], [0, 0, 1, 1], [], []>} : vector<8x8xbf16>, vector<8x16xbf16>, vector<8x16xf32> -> vector<8x16xf32>
    %45 = vector.extract_strided_slice %10 {offsets = [0, 16], sizes = [8, 16], strides = [1, 1]} : vector<8x384xbf16> to vector<8x16xbf16>
    %cst_22 = arith.constant dense<0.000000e+00> : vector<8x8xf32>
    %46 = tpu.matmul %45, %12, %cst_22 {dimension_numbers = #tpu.dot_dimension_numbers<[1], [1], [0], [0], [0, 0, 1, 0], [], []>} : vector<8x16xbf16>, vector<8x16xbf16>, vector<8x8xf32> -> vector<8x8xf32>
    %cst_23 = arith.constant dense<0xFF800000> : vector<8xf32>
    %47 = vector.multi_reduction <maximumf>, %46, %cst_23 [1] : vector<8x8xf32> to vector<8xf32>
    %48 = vector.shape_cast %47 : vector<8xf32> to vector<8x1xf32>
    %49 = vector.broadcast %48 : vector<8x1xf32> to vector<8x8xf32>
    %50 = arith.subf %46, %49 : vector<8x8xf32>
    %51 = math.exp %50 : vector<8x8xf32>
    %cst_24 = arith.constant dense<0.000000e+00> : vector<8xf32>
    %52 = vector.multi_reduction <add>, %51, %cst_24 [1] : vector<8x8xf32> to vector<8xf32>
    %53 = vector.shape_cast %52 : vector<8xf32> to vector<8x1xf32>
    %54 = tpu.reciprocal %53 {approx = true} : vector<8x1xf32> -> vector<8x1xf32>
    %55 = vector.broadcast %54 : vector<8x1xf32> to vector<8x8xf32>
    %56 = arith.mulf %51, %55 : vector<8x8xf32>
    %57 = arith.truncf %56 : vector<8x8xf32> to vector<8x8xbf16>
    %cst_25 = arith.constant dense<0.000000e+00> : vector<8x16xf32>
    %58 = tpu.matmul %57, %16, %cst_25 {dimension_numbers = #tpu.dot_dimension_numbers<[1], [0], [0], [1], [0, 0, 1, 1], [], []>} : vector<8x8xbf16>, vector<8x16xbf16>, vector<8x16xf32> -> vector<8x16xf32>
    %59 = vector.extract_strided_slice %10 {offsets = [0, 32], sizes = [8, 16], strides = [1, 1]} : vector<8x384xbf16> to vector<8x16xbf16>
    %cst_26 = arith.constant dense<0.000000e+00> : vector<8x8xf32>
    %60 = tpu.matmul %59, %13, %cst_26 {dimension_numbers = #tpu.dot_dimension_numbers<[1], [1], [0], [0], [0, 0, 1, 0], [], []>} : vector<8x16xbf16>, vector<8x16xbf16>, vector<8x8xf32> -> vector<8x8xf32>
    %cst_27 = arith.constant dense<0xFF800000> : vector<8xf32>
    %61 = vector.multi_reduction <maximumf>, %60, %cst_27 [1] : vector<8x8xf32> to vector<8xf32>
    %62 = vector.shape_cast %61 : vector<8xf32> to vector<8x1xf32>
    %63 = vector.broadcast %62 : vector<8x1xf32> to vector<8x8xf32>
    %64 = arith.subf %60, %63 : vector<8x8xf32>
    %65 = math.exp %64 : vector<8x8xf32>
    %cst_28 = arith.constant dense<0.000000e+00> : vector<8xf32>
    %66 = vector.multi_reduction <add>, %65, %cst_28 [1] : vector<8x8xf32> to vector<8xf32>
    %67 = vector.shape_cast %66 : vector<8xf32> to vector<8x1xf32>
    %68 = tpu.reciprocal %67 {approx = true} : vector<8x1xf32> -> vector<8x1xf32>
    %69 = vector.broadcast %68 : vector<8x1xf32> to vector<8x8xf32>
    %70 = arith.mulf %65, %69 : vector<8x8xf32>
    %71 = arith.truncf %70 : vector<8x8xf32> to vector<8x8xbf16>
    %cst_29 = arith.constant dense<0.000000e+00> : vector<8x16xf32>
    %72 = tpu.matmul %71, %17, %cst_29 {dimension_numbers = #tpu.dot_dimension_numbers<[1], [0], [0], [1], [0, 0, 1, 1], [], []>} : vector<8x8xbf16>, vector<8x16xbf16>, vector<8x16xf32> -> vector<8x16xf32>
    %73 = vector.extract_strided_slice %10 {offsets = [0, 48], sizes = [8, 16], strides = [1, 1]} : vector<8x384xbf16> to vector<8x16xbf16>
    %cst_30 = arith.constant dense<0.000000e+00> : vector<8x8xf32>
    %74 = tpu.matmul %73, %14, %cst_30 {dimension_numbers = #tpu.dot_dimension_numbers<[1], [1], [0], [0], [0, 0, 1, 0], [], []>} : vector<8x16xbf16>, vector<8x16xbf16>, vector<8x8xf32> -> vector<8x8xf32>
    %cst_31 = arith.constant dense<0xFF800000> : vector<8xf32>
    %75 = vector.multi_reduction <maximumf>, %74, %cst_31 [1] : vector<8x8xf32> to vector<8xf32>
    %76 = vector.shape_cast %75 : vector<8xf32> to vector<8x1xf32>
    %77 = vector.broadcast %76 : vector<8x1xf32> to vector<8x8xf32>
    %78 = arith.subf %74, %77 : vector<8x8xf32>
    %79 = math.exp %78 : vector<8x8xf32>
    %cst_32 = arith.constant dense<0.000000e+00> : vector<8xf32>
    %80 = vector.multi_reduction <add>, %79, %cst_32 [1] : vector<8x8xf32> to vector<8xf32>
    %81 = vector.shape_cast %80 : vector<8xf32> to vector<8x1xf32>
    %82 = tpu.reciprocal %81 {approx = true} : vector<8x1xf32> -> vector<8x1xf32>
    %83 = vector.broadcast %82 : vector<8x1xf32> to vector<8x8xf32>
    %84 = arith.mulf %79, %83 : vector<8x8xf32>
    %85 = arith.truncf %84 : vector<8x8xf32> to vector<8x8xbf16>
    %cst_33 = arith.constant dense<0.000000e+00> : vector<8x16xf32>
    %86 = tpu.matmul %85, %18, %cst_33 {dimension_numbers = #tpu.dot_dimension_numbers<[1], [0], [0], [1], [0, 0, 1, 1], [], []>} : vector<8x8xbf16>, vector<8x16xbf16>, vector<8x16xf32> -> vector<8x16xf32>
    %cst_34 = arith.constant 0.000000e+00 : f32
    %87 = vector.broadcast %cst_34 : f32 to vector<8x64xf32>
    %88 = tpu.concatenate %44, %58, %72, %86, %87 in 1 : vector<8x16xf32>, vector<8x16xf32>, vector<8x16xf32>, vector<8x16xf32>, vector<8x64xf32> -> vector<8x128xf32>
    %89 = arith.truncf %88 : vector<8x128xf32> to vector<8x128xbf16>
    %c0_35 = arith.constant 0 : index
    %c0_36 = arith.constant 0 : index
    %90 = vector.load %arg4[%c0_35, %c0_36] : memref<128x128xbf16, #tpu.memory_space<vmem>>, vector<128x128xbf16>
    %cst_37 = arith.constant dense<0.000000e+00> : vector<8x128xf32>
    %91 = tpu.matmul %89, %90, %cst_37 {dimension_numbers = #tpu.dot_dimension_numbers<[1], [0], [0], [1], [0, 0, 1, 1], [], []>} : vector<8x128xbf16>, vector<128x128xbf16>, vector<8x128xf32> -> vector<8x128xf32>
    %92 = vector.shape_cast %28 : vector<128xf32> to vector<1x128xf32>
    %93 = vector.broadcast %92 : vector<1x128xf32> to vector<8x128xf32>
    %94 = arith.addf %91, %93 : vector<8x128xf32>
    %95 = arith.addf %1, %94 : vector<8x128xf32>
    %cst_38 = arith.constant dense<0.000000e+00> : vector<8xf32>
    %96 = vector.multi_reduction <add>, %95, %cst_38 [1] : vector<8x128xf32> to vector<8xf32>
    %97 = vector.shape_cast %96 : vector<8xf32> to vector<8x1xf32>
    %cst_39 = arith.constant 3.125000e-02 : f32
    %98 = vector.broadcast %cst_39 : f32 to vector<8x1xf32>
    %99 = arith.mulf %97, %98 : vector<8x1xf32>
    %100 = vector.broadcast %99 : vector<8x1xf32> to vector<8x128xf32>
    %101 = arith.subf %95, %100 : vector<8x128xf32>
    %102 = tpu.iota {dimensions = array<i32: 1>} : vector<8x128xi32>
    %c32_i32 = arith.constant 32 : i32
    %103 = vector.broadcast %c32_i32 : i32 to vector<8x128xi32>
    %104 = arith.cmpi slt, %102, %103 : vector<8x128xi32>
    %cst_40 = arith.constant 0.000000e+00 : f32
    %105 = vector.broadcast %cst_40 : f32 to vector<8x128xf32>
    %106 = arith.select %104, %101, %105 : vector<8x128xi1>, vector<8x128xf32>
    %107 = arith.mulf %106, %106 : vector<8x128xf32>
    %cst_41 = arith.constant dense<0.000000e+00> : vector<8xf32>
    %108 = vector.multi_reduction <add>, %107, %cst_41 [1] : vector<8x128xf32> to vector<8xf32>
    %109 = vector.shape_cast %108 : vector<8xf32> to vector<8x1xf32>
    %cst_42 = arith.constant 3.125000e-02 : f32
    %110 = vector.broadcast %cst_42 : f32 to vector<8x1xf32>
    %111 = arith.mulf %109, %110 : vector<8x1xf32>
    %cst_43 = arith.constant 9.99999974E-6 : f32
    %112 = vector.broadcast %cst_43 : f32 to vector<8x1xf32>
    %113 = arith.addf %111, %112 : vector<8x1xf32>
    %114 = math.rsqrt %113 : vector<8x1xf32>
    %115 = vector.broadcast %114 : vector<8x1xf32> to vector<8x128xf32>
    %116 = arith.mulf %106, %115 : vector<8x128xf32>
    %117 = vector.shape_cast %20 : vector<128xf32> to vector<1x128xf32>
    %118 = vector.broadcast %117 : vector<1x128xf32> to vector<8x128xf32>
    %119 = arith.mulf %116, %118 : vector<8x128xf32>
    %120 = vector.shape_cast %22 : vector<128xf32> to vector<1x128xf32>
    %121 = vector.broadcast %120 : vector<1x128xf32> to vector<8x128xf32>
    %122 = arith.addf %119, %121 : vector<8x128xf32>
    %123 = arith.truncf %122 : vector<8x128xf32> to vector<8x128xbf16>
    %c0_44 = arith.constant 0 : index
    %c0_45 = arith.constant 0 : index
    %124 = vector.load %arg8[%c0_44, %c0_45] : memref<128x128xbf16, #tpu.memory_space<vmem>>, vector<128x128xbf16>
    %cst_46 = arith.constant dense<0.000000e+00> : vector<8x128xf32>
    %125 = tpu.matmul %123, %124, %cst_46 {dimension_numbers = #tpu.dot_dimension_numbers<[1], [0], [0], [1], [0, 0, 1, 1], [], []>} : vector<8x128xbf16>, vector<128x128xbf16>, vector<8x128xf32> -> vector<8x128xf32>
    %c0_47 = arith.constant 0 : index
    %c0_48 = arith.constant 0 : index
    %126 = vector.load %arg9[%c0_47, %c0_48] : memref<1x128xf32, #tpu.memory_space<vmem>>, vector<1x128xf32>
    %127 = vector.shape_cast %126 : vector<1x128xf32> to vector<128xf32>
    %128 = vector.shape_cast %127 : vector<128xf32> to vector<1x128xf32>
    %129 = vector.broadcast %128 : vector<1x128xf32> to vector<8x128xf32>
    %130 = arith.addf %125, %129 : vector<8x128xf32>
    %cst_49 = arith.constant 0.000000e+00 : f32
    %131 = vector.broadcast %cst_49 : f32 to vector<8x128xf32>
    %132 = arith.maximumf %130, %131 : vector<8x128xf32>
    %133 = arith.truncf %132 : vector<8x128xf32> to vector<8x128xbf16>
    %c0_50 = arith.constant 0 : index
    %c0_51 = arith.constant 0 : index
    %134 = vector.load %arg10[%c0_50, %c0_51] : memref<128x128xbf16, #tpu.memory_space<vmem>>, vector<128x128xbf16>
    %cst_52 = arith.constant dense<0.000000e+00> : vector<8x128xf32>
    %135 = tpu.matmul %133, %134, %cst_52 {dimension_numbers = #tpu.dot_dimension_numbers<[1], [0], [0], [1], [0, 0, 1, 1], [], []>} : vector<8x128xbf16>, vector<128x128xbf16>, vector<8x128xf32> -> vector<8x128xf32>
    %136 = vector.shape_cast %30 : vector<128xf32> to vector<1x128xf32>
    %137 = vector.broadcast %136 : vector<1x128xf32> to vector<8x128xf32>
    %138 = arith.addf %135, %137 : vector<8x128xf32>
    %139 = arith.addf %122, %138 : vector<8x128xf32>
    %cst_53 = arith.constant dense<0.000000e+00> : vector<8xf32>
    %140 = vector.multi_reduction <add>, %139, %cst_53 [1] : vector<8x128xf32> to vector<8xf32>
    %141 = vector.shape_cast %140 : vector<8xf32> to vector<8x1xf32>
    %cst_54 = arith.constant 3.125000e-02 : f32
    %142 = vector.broadcast %cst_54 : f32 to vector<8x1xf32>
    %143 = arith.mulf %141, %142 : vector<8x1xf32>
    %144 = vector.broadcast %143 : vector<8x1xf32> to vector<8x128xf32>
    %145 = arith.subf %139, %144 : vector<8x128xf32>
    %146 = tpu.iota {dimensions = array<i32: 1>} : vector<8x128xi32>
    %c32_i32_55 = arith.constant 32 : i32
    %147 = vector.broadcast %c32_i32_55 : i32 to vector<8x128xi32>
    %148 = arith.cmpi slt, %146, %147 : vector<8x128xi32>
    %cst_56 = arith.constant 0.000000e+00 : f32
    %149 = vector.broadcast %cst_56 : f32 to vector<8x128xf32>
    %150 = arith.select %148, %145, %149 : vector<8x128xi1>, vector<8x128xf32>
    %151 = arith.mulf %150, %150 : vector<8x128xf32>
    %cst_57 = arith.constant dense<0.000000e+00> : vector<8xf32>
    %152 = vector.multi_reduction <add>, %151, %cst_57 [1] : vector<8x128xf32> to vector<8xf32>
    %153 = vector.shape_cast %152 : vector<8xf32> to vector<8x1xf32>
    %cst_58 = arith.constant 3.125000e-02 : f32
    %154 = vector.broadcast %cst_58 : f32 to vector<8x1xf32>
    %155 = arith.mulf %153, %154 : vector<8x1xf32>
    %cst_59 = arith.constant 9.99999974E-6 : f32
    %156 = vector.broadcast %cst_59 : f32 to vector<8x1xf32>
    %157 = arith.addf %155, %156 : vector<8x1xf32>
    %158 = math.rsqrt %157 : vector<8x1xf32>
    %159 = vector.broadcast %158 : vector<8x1xf32> to vector<8x128xf32>
    %160 = arith.mulf %150, %159 : vector<8x128xf32>
    %161 = vector.shape_cast %24 : vector<128xf32> to vector<1x128xf32>
    %162 = vector.broadcast %161 : vector<1x128xf32> to vector<8x128xf32>
    %163 = arith.mulf %160, %162 : vector<8x128xf32>
    %164 = vector.shape_cast %26 : vector<128xf32> to vector<1x128xf32>
    %165 = vector.broadcast %164 : vector<1x128xf32> to vector<8x128xf32>
    %166 = arith.addf %163, %165 : vector<8x128xf32>
    %c0_60 = arith.constant 0 : index
    %c0_61 = arith.constant 0 : index
    %c0_62 = arith.constant 0 : index
    %167 = vector.load %arg14[%c0_60, %c0_61, %c0_62] : memref<1x8x128xf32, #tpu.memory_space<vmem>>, vector<1x8x128xf32>
    %168 = vector.shape_cast %167 : vector<1x8x128xf32> to vector<8x128xf32>
    %169 = vector.shape_cast %166 : vector<8x128xf32> to vector<1x8x128xf32>
    tpu.vector_store %arg14[%c0_60, %c0_61, %c0_62], %169 {strides = array<i32>} : memref<1x8x128xf32, #tpu.memory_space<vmem>>, vector<1x8x128xf32>,
    return
  }
  func.func @transform_0(%arg0: i32) -> (i32, i32, i32) {
    %c0_i32 = arith.constant 0 : i32
    %c0_i32_0 = arith.constant 0 : i32
    %c0_i32_1 = arith.constant 0 : i32
    return %arg0, %c0_i32, %c0_i32_0 : i32, i32, i32
  }
  func.func @transform_1(%arg0: i32) -> (i32, i32) {
    %c0_i32 = arith.constant 0 : i32
    %c0_i32_0 = arith.constant 0 : i32
    %c0_i32_1 = arith.constant 0 : i32
    return %c0_i32, %c0_i32_0 : i32, i32
  }
  func.func @transform_2(%arg0: i32) -> (i32, i32) {
    %c0_i32 = arith.constant 0 : i32
    %c0_i32_0 = arith.constant 0 : i32
    %c0_i32_1 = arith.constant 0 : i32
    return %c0_i32, %c0_i32_0 : i32, i32
  }
  func.func @transform_3(%arg0: i32) -> (i32, i32) {
    %c0_i32 = arith.constant 0 : i32
    %c0_i32_0 = arith.constant 0 : i32
    %c0_i32_1 = arith.constant 0 : i32
    return %c0_i32, %c0_i32_0 : i32, i32
  }
  func.func @transform_4(%arg0: i32) -> (i32, i32) {
    %c0_i32 = arith.constant 0 : i32
    %c0_i32_0 = arith.constant 0 : i32
    %c0_i32_1 = arith.constant 0 : i32
    return %c0_i32, %c0_i32_0 : i32, i32
  }
  func.func @transform_5(%arg0: i32) -> (i32, i32) {
    %c0_i32 = arith.constant 0 : i32
    %c0_i32_0 = arith.constant 0 : i32
    %c0_i32_1 = arith.constant 0 : i32
    return %c0_i32, %c0_i32_0 : i32, i32
  }
  func.func @transform_6(%arg0: i32) -> (i32, i32) {
    %c0_i32 = arith.constant 0 : i32
    %c0_i32_0 = arith.constant 0 : i32
    %c0_i32_1 = arith.constant 0 : i32
    return %c0_i32, %c0_i32_0 : i32, i32
  }
  func.func @transform_7(%arg0: i32) -> (i32, i32) {
    %c0_i32 = arith.constant 0 : i32
    %c0_i32_0 = arith.constant 0 : i32
    %c0_i32_1 = arith.constant 0 : i32
    return %c0_i32, %c0_i32_0 : i32, i32
  }
  func.func @transform_8(%arg0: i32) -> (i32, i32) {
    %c0_i32 = arith.constant 0 : i32
    %c0_i32_0 = arith.constant 0 : i32
    %c0_i32_1 = arith.constant 0 : i32
    return %c0_i32, %c0_i32_0 : i32, i32
  }
  func.func @transform_9(%arg0: i32) -> (i32, i32) {
    %c0_i32 = arith.constant 0 : i32
    %c0_i32_0 = arith.constant 0 : i32
    %c0_i32_1 = arith.constant 0 : i32
    return %c0_i32, %c0_i32_0 : i32, i32
  }
  func.func @transform_10(%arg0: i32) -> (i32, i32) {
    %c0_i32 = arith.constant 0 : i32
    %c0_i32_0 = arith.constant 0 : i32
    %c0_i32_1 = arith.constant 0 : i32
    return %c0_i32, %c0_i32_0 : i32, i32
  }
  func.func @transform_11(%arg0: i32) -> (i32, i32) {
    %c0_i32 = arith.constant 0 : i32
    %c0_i32_0 = arith.constant 0 : i32
    %c0_i32_1 = arith.constant 0 : i32
    return %c0_i32, %c0_i32_0 : i32, i32
  }
  func.func @transform_12(%arg0: i32) -> (i32, i32) {
    %c0_i32 = arith.constant 0 : i32
    %c0_i32_0 = arith.constant 0 : i32
    %c0_i32_1 = arith.constant 0 : i32
    return %c0_i32, %c0_i32_0 : i32, i32
  }
  func.func @transform_13(%arg0: i32) -> (i32, i32, i32) {
    %c0_i32 = arith.constant 0 : i32
    %c0_i32_0 = arith.constant 0 : i32
    %c0_i32_1 = arith.constant 0 : i32
    return %arg0, %c0_i32, %c0_i32_0 : i32, i32, i32
  }
}

</mosaic_0001>

<llo_original>
// kernel: tpu_custom_call.1
$region0: #{tpu_custom_call.1}
  #allocation0 [shape = 'u32[]', space=smem, size = 0x4, offset = 0x4, fixed_abs, tag = 'smem constant byte address 0x4 - core index']
  #allocation1 [shape = 'u32[144,128]{1,0:T(1,128)}', space=vmem, size = 0x12000, scoped, tag = 'internal scratch']
  %s0 = inlined_call_operand.hbm [shape: f32[2,8,128], index: 0, kind: input, shape index: {}]
  %s1 = inlined_call_operand.hbm [shape: bf16[128,384], index: 1, kind: input, shape index: {}]
  %s2 = inlined_call_operand.vmem [shape: f32[1,384], index: 2, kind: input, shape index: {}]
  %s3 = inlined_call_operand.hbm [shape: bf16[128,128], index: 3, kind: input, shape index: {}]
  %s4 = inlined_call_operand.vmem [shape: f32[1,128], index: 4, kind: input, shape index: {}]
  %s5 = inlined_call_operand.vmem [shape: f32[1,128], index: 5, kind: input, shape index: {}]
  %s6 = inlined_call_operand.vmem [shape: f32[1,128], index: 6, kind: input, shape index: {}]
  %s7 = inlined_call_operand.hbm [shape: bf16[128,128], index: 7, kind: input, shape index: {}]
  %s8 = inlined_call_operand.vmem [shape: f32[1,128], index: 8, kind: input, shape index: {}]
  %s9 = inlined_call_operand.hbm [shape: bf16[128,128], index: 9, kind: input, shape index: {}]
  %s10 = inlined_call_operand.vmem [shape: f32[1,128], index: 10, kind: input, shape index: {}]
  %s11 = inlined_call_operand.vmem [shape: f32[1,128], index: 11, kind: input, shape index: {}]
  %s12 = inlined_call_operand.vmem [shape: f32[1,128], index: 12, kind: input, shape index: {}]
  %s13 = inlined_call_operand.hbm [shape: f32[2,8,128], index: 13, kind: output, shape index: {}]
  %s14 = sld [smem:[#allocation0]]
  $region105: #{tpu_custom_call.1} parent=0
    _
  %s16 = ssub.s32 1, %s14
  %s17 = scalar_select 0, %s16, %s14
  $region1: #{tpu_custom_call.1} parent=0
    #allocation2 [shape = 'u8[8192]{0}', space=vmem, size = 0x2000, scoped, tag = 'input window, operand 0']
    #allocation3 [shape = 's32[2]{0}', space=sflag, size = 0x8, scoped, tag = 'scoped memory for tpu_custom_call.1']
    #allocation4 [shape = 's32[2]{0}', space=sflag, size = 0x8, scoped, tag = 'scoped memory for tpu_custom_call.1']
    #allocation5 [shape = 'u8[98304]{0}', space=vmem, size = 0x18000, scoped, tag = 'input window, operand 1, single buffered']
    #allocation6 [shape = 's32[1]{0}', space=sflag, size = 0x4, scoped, tag = 'scoped memory for tpu_custom_call.1']
    #allocation7 [shape = 'u8[32768]{0}', space=vmem, size = 0x8000, scoped, tag = 'input window, operand 3, single buffered']
    #allocation8 [shape = 'u8[32768]{0}', space=vmem, size = 0x8000, scoped, tag = 'input window, operand 7, single buffered']
    #allocation9 [shape = 's32[1]{0}', space=sflag, size = 0x4, scoped, tag = 'scoped memory for tpu_custom_call.1']
    #allocation10 [shape = 'u8[32768]{0}', space=vmem, size = 0x8000, scoped, tag = 'input window, operand 9, single buffered']
    #allocation11 [shape = 'u8[8192]{0}', space=vmem, size = 0x2000, scoped, tag = 'output window, operand 0']
    %18 = vsyncpa [#allocation3], 0
    %s19 = scalar_lea.sflag [#allocation3], 1
    %20 = vsyncpa %s19, 0
    %21 = vsyncpa [#allocation6], 0
    %22 = vsyncpa [#allocation9], 0
    %23 = vsyncpa [#allocation4], 0
    %s24 = scalar_lea.sflag [#allocation4], 1
    %25 = vsyncpa %s24, 0
    loop: start=0, step=1, limit=4
    $region2: #{tpu_custom_call.1} parent=1 // loop_pre_header
      _
    $region3: #{tpu_custom_call.1} parent=1 // loop_header
      %s27 = sphi 0, %s31
      %p28 = scmp.ge.s32.totalorder %s27, 4
      %s37 = sphi 0, %s39
      %s40 = sphi 0, %s37
      %s41 = sphi 0, %s40
      %s57 = sphi 0, %s41
      %s61 = sphi 0, %s61
      %s63 = sphi 0, %s61
      %s64 = sphi 0, %s63
      %s78 = sphi 0, %s64
      %s82 = sphi 0, %s82
      %s84 = sphi 0, %s82
      %s85 = sphi 0, %s84
      %s99 = sphi 0, %s85
      %s103 = sphi 0, %s103
      %s105 = sphi 0, %s103
      %s106 = sphi 0, %s105
      %s120 = sphi 0, %s106
      %s124 = sphi 0, %s124
      %s126 = sphi 0, %s124
      %s127 = sphi 0, %s126
      %s141 = sphi 0, %s127
      %s145 = sphi 0, %s145
      %s147 = sphi 0, %s145
      %s148 = sphi 0, %s147
      %s162 = sphi 0, %s148
      %s166 = sphi 0, %s166
      %s168 = sphi 0, %s166
      %s169 = sphi 0, %s168
      %s183 = sphi 0, %s169
      %s187 = sphi 0, %s187
      %s189 = sphi 0, %s187
      %s190 = sphi 0, %s189
      %s204 = sphi 0, %s190
      %s208 = sphi 0, %s208
      %s210 = sphi 0, %s208
      %s211 = sphi 0, %s210
      %s225 = sphi 0, %s211
      %s229 = sphi 0, %s229
      %s231 = sphi 0, %s229
      %s232 = sphi 0, %s231
      %s246 = sphi 0, %s232
      %s250 = sphi 0, %s250
      %s252 = sphi 0, %s250
      %s253 = sphi 0, %s252
      %s267 = sphi 0, %s253
      %s271 = sphi 0, %s271
      %s273 = sphi 0, %s271
      %s274 = sphi 0, %s273
      %s288 = sphi 0, %s274
      %s292 = sphi 0, %s292
      %s294 = sphi 0, %s292
      %s295 = sphi 0, %s294
      %s309 = sphi 0, %s295
      %s315 = sphi 0, %s317
      %s318 = sphi 0, %s315
      %s319 = sphi 0, %s318
      %s335 = sphi 0, %s319
    $region4: #{tpu_custom_call.1} parent=1 // loop_header_branch
      %30 = sbr.rel (%p28) target = $region8
    $region5: #{tpu_custom_call.1} parent=1 // loop_body
      %s32 = ssub.s32 %s27, 1
      %s33 = ssub.s32 %s27, 2
      %s34 = sadd.s32 %s27, 1
      %s35 = ssub.s32 %s27, %s34
      %p36 = scmp.eq.s32.totalorder %s35, 0
      %s38 = sadd.s32 %s37, 1
      %s39 = scalar_select %p36, %s37, %s38
      %p42 = pneg %p36
      %p43 = scmp.eq.s32.totalorder %s27, 1
      %p44 = por %p42, %p43
      %p45 = scmp.ne.s32.totalorder %s37, %s40
      %p46 = scmp.eq.s32.totalorder %s27, 0
      %p47 = por %p45, %p46
      %p48 = scmp.ne.s32.totalorder %s37, %s40
      %p49 = scmp.eq.s32.totalorder %s32, 1
      %p50 = por %p48, %p49
      %p51 = scmp.ne.s32.totalorder %s40, %s41
      %p52 = scmp.eq.s32.totalorder %s32, 0
      %p53 = por %p51, %p52
      %p54 = scmp.ne.s32.totalorder %s40, %s41
      %p55 = scmp.eq.s32.totalorder %s33, 1
      %p56 = por %p54, %p55
      %p58 = scmp.ne.s32.totalorder %s41, %s57
      %p59 = scmp.eq.s32.totalorder %s33, 0
      %p60 = por %p58, %p59
      %s62 = sadd.s32 %s61, 1
      %p65 = scmp.eq.s32.totalorder %s27, 1
      %p66 = scmp.ne.s32.totalorder %s61, %s63
      %p67 = scmp.eq.s32.totalorder %s27, 0
      %p68 = por %p66, %p67
      %p69 = scmp.ne.s32.totalorder %s61, %s63
      %p70 = scmp.eq.s32.totalorder %s32, 1
      %p71 = por %p69, %p70
      %p72 = scmp.ne.s32.totalorder %s63, %s64
      %p73 = scmp.eq.s32.totalorder %s32, 0
      %p74 = por %p72, %p73
      %p75 = scmp.ne.s32.totalorder %s63, %s64
      %p76 = scmp.eq.s32.totalorder %s33, 1
      %p77 = por %p75, %p76
      %p79 = scmp.ne.s32.totalorder %s64, %s78
      %p80 = scmp.eq.s32.totalorder %s33, 0
      %p81 = por %p79, %p80
      %s83 = sadd.s32 %s82, 1
      %p86 = scmp.eq.s32.totalorder %s27, 1
      %p87 = scmp.ne.s32.totalorder %s82, %s84
      %p88 = scmp.eq.s32.totalorder %s27, 0
      %p89 = por %p87, %p88
      %p90 = scmp.ne.s32.totalorder %s82, %s84
      %p91 = scmp.eq.s32.totalorder %s32, 1
      %p92 = por %p90, %p91
      %p93 = scmp.ne.s32.totalorder %s84, %s85
      %p94 = scmp.eq.s32.totalorder %s32, 0
      %p95 = por %p93, %p94
      %p96 = scmp.ne.s32.totalorder %s84, %s85
      %p97 = scmp.eq.s32.totalorder %s33, 1
      %p98 = por %p96, %p97
      %p100 = scmp.ne.s32.totalorder %s85, %s99
      %p101 = scmp.eq.s32.totalorder %s33, 0
      %p102 = por %p100, %p101
      %s104 = sadd.s32 %s103, 1
      %p107 = scmp.eq.s32.totalorder %s27, 1
      %p108 = scmp.ne.s32.totalorder %s103, %s105
      %p109 = scmp.eq.s32.totalorder %s27, 0
      %p110 = por %p108, %p109
      %p111 = scmp.ne.s32.totalorder %s103, %s105
      %p112 = scmp.eq.s32.totalorder %s32, 1
      %p113 = por %p111, %p112
      %p114 = scmp.ne.s32.totalorder %s105, %s106
      %p115 = scmp.eq.s32.totalorder %s32, 0
      %p116 = por %p114, %p115
      %p117 = scmp.ne.s32.totalorder %s105, %s106
      %p118 = scmp.eq.s32.totalorder %s33, 1
      %p119 = por %p117, %p118
      %p121 = scmp.ne.s32.totalorder %s106, %s120
      %p122 = scmp.eq.s32.totalorder %s33, 0
      %p123 = por %p121, %p122
      %s125 = sadd.s32 %s124, 1
      %p128 = scmp.eq.s32.totalorder %s27, 1
      %p129 = scmp.ne.s32.totalorder %s124, %s126
      %p130 = scmp.eq.s32.totalorder %s27, 0
      %p131 = por %p129, %p130
      %p132 = scmp.ne.s32.totalorder %s124, %s126
      %p133 = scmp.eq.s32.totalorder %s32, 1
      %p134 = por %p132, %p133
      %p135 = scmp.ne.s32.totalorder %s126, %s127
      %p136 = scmp.eq.s32.totalorder %s32, 0
      %p137 = por %p135, %p136
      %p138 = scmp.ne.s32.totalorder %s126, %s127
      %p139 = scmp.eq.s32.totalorder %s33, 1
      %p140 = por %p138, %p139
      %p142 = scmp.ne.s32.totalorder %s127, %s141
      %p143 = scmp.eq.s32.totalorder %s33, 0
      %p144 = por %p142, %p143
      %s146 = sadd.s32 %s145, 1
      %p149 = scmp.eq.s32.totalorder %s27, 1
      %p150 = scmp.ne.s32.totalorder %s145, %s147
      %p151 = scmp.eq.s32.totalorder %s27, 0
      %p152 = por %p150, %p151
      %p153 = scmp.ne.s32.totalorder %s145, %s147
      %p154 = scmp.eq.s32.totalorder %s32, 1
      %p155 = por %p153, %p154
      %p156 = scmp.ne.s32.totalorder %s147, %s148
      %p157 = scmp.eq.s32.totalorder %s32, 0
      %p158 = por %p156, %p157
      %p159 = scmp.ne.s32.totalorder %s147, %s148
      %p160 = scmp.eq.s32.totalorder %s33, 1
      %p161 = por %p159, %p160
      %p163 = scmp.ne.s32.totalorder %s148, %s162
      %p164 = scmp.eq.s32.totalorder %s33, 0
      %p165 = por %p163, %p164
      %s167 = sadd.s32 %s166, 1
      %p170 = scmp.eq.s32.totalorder %s27, 1
      %p171 = scmp.ne.s32.totalorder %s166, %s168
      %p172 = scmp.eq.s32.totalorder %s27, 0
      %p173 = por %p171, %p172
      %p174 = scmp.ne.s32.totalorder %s166, %s168
      %p175 = scmp.eq.s32.totalorder %s32, 1
      %p176 = por %p174, %p175
      %p177 = scmp.ne.s32.totalorder %s168, %s169
      %p178 = scmp.eq.s32.totalorder %s32, 0
      %p179 = por %p177, %p178
      %p180 = scmp.ne.s32.totalorder %s168, %s169
      %p181 = scmp.eq.s32.totalorder %s33, 1
      %p182 = por %p180, %p181
      %p184 = scmp.ne.s32.totalorder %s169, %s183
      %p185 = scmp.eq.s32.totalorder %s33, 0
      %p186 = por %p184, %p185
      %s188 = sadd.s32 %s187, 1
      %p191 = scmp.eq.s32.totalorder %s27, 1
      %p192 = scmp.ne.s32.totalorder %s187, %s189
      %p193 = scmp.eq.s32.totalorder %s27, 0
      %p194 = por %p192, %p193
      %p195 = scmp.ne.s32.totalorder %s187, %s189
      %p196 = scmp.eq.s32.totalorder %s32, 1
      %p197 = por %p195, %p196
      %p198 = scmp.ne.s32.totalorder %s189, %s190
      %p199 = scmp.eq.s32.totalorder %s32, 0
      %p200 = por %p198, %p199
      %p201 = scmp.ne.s32.totalorder %s189, %s190
      %p202 = scmp.eq.s32.totalorder %s33, 1
      %p203 = por %p201, %p202
      %p205 = scmp.ne.s32.totalorder %s190, %s204
      %p206 = scmp.eq.s32.totalorder %s33, 0
      %p207 = por %p205, %p206
      %s209 = sadd.s32 %s208, 1
      %p212 = scmp.eq.s32.totalorder %s27, 1
      %p213 = scmp.ne.s32.totalorder %s208, %s210
      %p214 = scmp.eq.s32.totalorder %s27, 0
      %p215 = por %p213, %p214
      %p216 = scmp.ne.s32.totalorder %s208, %s210
      %p217 = scmp.eq.s32.totalorder %s32, 1
      %p218 = por %p216, %p217
      %p219 = scmp.ne.s32.totalorder %s210, %s211
      %p220 = scmp.eq.s32.totalorder %s32, 0
      %p221 = por %p219, %p220
      %p222 = scmp.ne.s32.totalorder %s210, %s211
      %p223 = scmp.eq.s32.totalorder %s33, 1
      %p224 = por %p222, %p223
      %p226 = scmp.ne.s32.totalorder %s211, %s225
      %p227 = scmp.eq.s32.totalorder %s33, 0
      %p228 = por %p226, %p227
      %s230 = sadd.s32 %s229, 1
      %p233 = scmp.eq.s32.totalorder %s27, 1
      %p234 = scmp.ne.s32.totalorder %s229, %s231
      %p235 = scmp.eq.s32.totalorder %s27, 0
      %p236 = por %p234, %p235
      %p237 = scmp.ne.s32.totalorder %s229, %s231
      %p238 = scmp.eq.s32.totalorder %s32, 1
      %p239 = por %p237, %p238
      %p240 = scmp.ne.s32.totalorder %s231, %s232
      %p241 = scmp.eq.s32.totalorder %s32, 0
      %p242 = por %p240, %p241
      %p243 = scmp.ne.s32.totalorder %s231, %s232
      %p244 = scmp.eq.s32.totalorder %s33, 1
      %p245 = por %p243, %p244
      %p247 = scmp.ne.s32.totalorder %s232, %s246
      %p248 = scmp.eq.s32.totalorder %s33, 0
      %p249 = por %p247, %p248
      %s251 = sadd.s32 %s250, 1
      %p254 = scmp.eq.s32.totalorder %s27, 1
      %p255 = scmp.ne.s32.totalorder %s250, %s252
      %p256 = scmp.eq.s32.totalorder %s27, 0
      %p257 = por %p255, %p256
      %p258 = scmp.ne.s32.totalorder %s250, %s252
      %p259 = scmp.eq.s32.totalorder %s32, 1
      %p260 = por %p258, %p259
      %p261 = scmp.ne.s32.totalorder %s252, %s253
      %p262 = scmp.eq.s32.totalorder %s32, 0
      %p263 = por %p261, %p262
      %p264 = scmp.ne.s32.totalorder %s252, %s253
      %p265 = scmp.eq.s32.totalorder %s33, 1
      %p266 = por %p264, %p265
      %p268 = scmp.ne.s32.totalorder %s253, %s267
      %p269 = scmp.eq.s32.totalorder %s33, 0
      %p270 = por %p268, %p269
      %s272 = sadd.s32 %s271, 1
      %p275 = scmp.eq.s32.totalorder %s27, 1
      %p276 = scmp.ne.s32.totalorder %s271, %s273
      %p277 = scmp.eq.s32.totalorder %s27, 0
      %p278 = por %p276, %p277
      %p279 = scmp.ne.s32.totalorder %s271, %s273
      %p280 = scmp.eq.s32.totalorder %s32, 1
      %p281 = por %p279, %p280
      %p282 = scmp.ne.s32.totalorder %s273, %s274
      %p283 = scmp.eq.s32.totalorder %s32, 0
      %p284 = por %p282, %p283
      %p285 = scmp.ne.s32.totalorder %s273, %s274
      %p286 = scmp.eq.s32.totalorder %s33, 1
      %p287 = por %p285, %p286
      %p289 = scmp.ne.s32.totalorder %s274, %s288
      %p290 = scmp.eq.s32.totalorder %s33, 0
      %p291 = por %p289, %p290
      %s293 = sadd.s32 %s292, 1
      %p296 = scmp.eq.s32.totalorder %s27, 1
      %p297 = scmp.ne.s32.totalorder %s292, %s294
      %p298 = scmp.eq.s32.totalorder %s27, 0
      %p299 = por %p297, %p298
      %p300 = scmp.ne.s32.totalorder %s292, %s294
      %p301 = scmp.eq.s32.totalorder %s32, 1
      %p302 = por %p300, %p301
      %p303 = scmp.ne.s32.totalorder %s294, %s295
      %p304 = scmp.eq.s32.totalorder %s32, 0
      %p305 = por %p303, %p304
      %p306 = scmp.ne.s32.totalorder %s294, %s295
      %p307 = scmp.eq.s32.totalorder %s33, 1
      %p308 = por %p306, %p307
      %p310 = scmp.ne.s32.totalorder %s295, %s309
      %p311 = scmp.eq.s32.totalorder %s33, 0
      %p312 = por %p310, %p311
      %s313 = ssub.s32 %s27, %s34
      %p314 = scmp.eq.s32.totalorder %s313, 0
      %s316 = sadd.s32 %s315, 1
      %s317 = scalar_select %p314, %s315, %s316
      %p320 = pneg %p314
      %p321 = scmp.eq.s32.totalorder %s27, 1
      %p322 = por %p320, %p321
      %p323 = scmp.ne.s32.totalorder %s315, %s318
      %p324 = scmp.eq.s32.totalorder %s27, 0
      %p325 = por %p323, %p324
      %p326 = scmp.ne.s32.totalorder %s315, %s318
      %p327 = scmp.eq.s32.totalorder %s32, 1
      %p328 = por %p326, %p327
      %p329 = scmp.ne.s32.totalorder %s318, %s319
      %p330 = scmp.eq.s32.totalorder %s32, 0
      %p331 = por %p329, %p330
      %p332 = scmp.ne.s32.totalorder %s318, %s319
      %p333 = scmp.eq.s32.totalorder %s33, 1
      %p334 = por %p332, %p333
      %p336 = scmp.ne.s32.totalorder %s319, %s335
      %p337 = scmp.eq.s32.totalorder %s33, 0
      %p338 = por %p336, %p337
      %p339 = scmp.le.s32.totalorder 1, %s27
      %p340 = scmp.lt.s32.totalorder %s27, 3
      %p341 = pnand %p339, %p340
      %p342 = pneg %p341
      // Predicated region
      $region9: #{tpu_custom_call.1} parent=5 // pred_check
        _
      $region10: #{tpu_custom_call.1} parent=5 // pred_check_branch
        %344 = sbr.rel (%p341) target = $region12
      $region11: #{tpu_custom_call.1} parent=5 // pred_region
        %s345 = ssub.s32 %s27, 1
        // Predicated region
        $region13: #{tpu_custom_call.1} parent=11 // pred_check
          %p346 = pneg %p74
        $region14: #{tpu_custom_call.1} parent=11 // pred_check_branch
          %348 = sbr.rel (%p346) target = $region16
        $region15: #{tpu_custom_call.1} parent=11 // pred_region
          %s350 = ssub.s32 3072, 3072
          %351 = vsyncadd [#allocation6], %s350
          %s352 = sshll.u32 [#allocation5], 4
          %s353 = int_to_ptr.vmem [resolvable:$true] %s352
          %358 = dma.hbm_to_vmem [thread:$0]  %s1, 3072, %s353, [#allocation6], 192, 192, 12
        $region16: #{tpu_custom_call.1} parent=11 // pred_fallthru
          _
        // Predicated region
        $region17: #{tpu_custom_call.1} parent=11 // pred_check
          %p359 = pneg %p95
        $region18: #{tpu_custom_call.1} parent=11 // pred_check_branch
          %361 = sbr.rel (%p359) target = $region20
        $region19: #{tpu_custom_call.1} parent=11 // pred_region
          _
        $region20: #{tpu_custom_call.1} parent=11 // pred_fallthru
          _
        // Predicated region
        $region21: #{tpu_custom_call.1} parent=11 // pred_check
          %p362 = pneg %p116
        $region22: #{tpu_custom_call.1} parent=11 // pred_check_branch
          %364 = sbr.rel (%p362) target = $region24
        $region23: #{tpu_custom_call.1} parent=11 // pred_region
          %s366 = ssub.s32 1024, 1024
          %367 = vsyncadd [#allocation6], %s366
          %s368 = sshll.u32 [#allocation7], 4
          %s369 = int_to_ptr.vmem [resolvable:$true] %s368
          %374 = dma.hbm_to_vmem [thread:$0]  %s3, 1024, %s369, [#allocation6], 64, 64, 4
        $region24: #{tpu_custom_call.1} parent=11 // pred_fallthru
          _
        // Predicated region
        $region25: #{tpu_custom_call.1} parent=11 // pred_check
          %p375 = pneg %p137
        $region26: #{tpu_custom_call.1} parent=11 // pred_check_branch
          %377 = sbr.rel (%p375) target = $region28
        $region27: #{tpu_custom_call.1} parent=11 // pred_region
          _
        $region28: #{tpu_custom_call.1} parent=11 // pred_fallthru
          _
        // Predicated region
        $region29: #{tpu_custom_call.1} parent=11 // pred_check
          %p378 = pneg %p158
        $region30: #{tpu_custom_call.1} parent=11 // pred_check_branch
          %380 = sbr.rel (%p378) target = $region32
        $region31: #{tpu_custom_call.1} parent=11 // pred_region
          _
        $region32: #{tpu_custom_call.1} parent=11 // pred_fallthru
          _
        // Predicated region
        $region33: #{tpu_custom_call.1} parent=11 // pred_check
          %p381 = pneg %p179
        $region34: #{tpu_custom_call.1} parent=11 // pred_check_branch
          %383 = sbr.rel (%p381) target = $region36
        $region35: #{tpu_custom_call.1} parent=11 // pred_region
          _
        $region36: #{tpu_custom_call.1} parent=11 // pred_fallthru
          _
        // Predicated region
        $region37: #{tpu_custom_call.1} parent=11 // pred_check
          %p384 = pneg %p200
        $region38: #{tpu_custom_call.1} parent=11 // pred_check_branch
          %386 = sbr.rel (%p384) target = $region40
        $region39: #{tpu_custom_call.1} parent=11 // pred_region
          %s388 = ssub.s32 1024, 1024
          %389 = vsyncadd [#allocation9], %s388
          %s390 = sshll.u32 [#allocation8], 4
          %s391 = int_to_ptr.vmem [resolvable:$true] %s390
          %396 = dma.hbm_to_vmem [thread:$0]  %s7, 1024, %s391, [#allocation9], 64, 64, 4
        $region40: #{tpu_custom_call.1} parent=11 // pred_fallthru
          _
        // Predicated region
        $region41: #{tpu_custom_call.1} parent=11 // pred_check
          %p397 = pneg %p221
        $region42: #{tpu_custom_call.1} parent=11 // pred_check_branch
          %399 = sbr.rel (%p397) target = $region44
        $region43: #{tpu_custom_call.1} parent=11 // pred_region
          _
        $region44: #{tpu_custom_call.1} parent=11 // pred_fallthru
          _
        // Predicated region
        $region45: #{tpu_custom_call.1} parent=11 // pred_check
          %p400 = pneg %p242
        $region46: #{tpu_custom_call.1} parent=11 // pred_check_branch
          %402 = sbr.rel (%p400) target = $region48
        $region47: #{tpu_custom_call.1} parent=11 // pred_region
          %s404 = ssub.s32 1024, 1024
          %405 = vsyncadd [#allocation9], %s404
          %s406 = sshll.u32 [#allocation10], 4
          %s407 = int_to_ptr.vmem [resolvable:$true] %s406
          %412 = dma.hbm_to_vmem [thread:$0]  %s9, 1024, %s407, [#allocation9], 64, 64, 4
        $region48: #{tpu_custom_call.1} parent=11 // pred_fallthru
          _
        // Predicated region
        $region49: #{tpu_custom_call.1} parent=11 // pred_check
          %p413 = pneg %p263
        $region50: #{tpu_custom_call.1} parent=11 // pred_check_branch
          %415 = sbr.rel (%p413) target = $region52
        $region51: #{tpu_custom_call.1} parent=11 // pred_region
          _
        $region52: #{tpu_custom_call.1} parent=11 // pred_fallthru
          _
        // Predicated region
        $region53: #{tpu_custom_call.1} parent=11 // pred_check
          %p416 = pneg %p284
        $region54: #{tpu_custom_call.1} parent=11 // pred_check_branch
          %418 = sbr.rel (%p416) target = $region56
        $region55: #{tpu_custom_call.1} parent=11 // pred_region
          _
        $region56: #{tpu_custom_call.1} parent=11 // pred_fallthru
          _
        // Predicated region
        $region57: #{tpu_custom_call.1} parent=11 // pred_check
          %p419 = pneg %p305
        $region58: #{tpu_custom_call.1} parent=11 // pred_check_branch
          %421 = sbr.rel (%p419) target = $region60
        $region59: #{tpu_custom_call.1} parent=11 // pred_region
          _
        $region60: #{tpu_custom_call.1} parent=11 // pred_fallthru
          _
      $region12: #{tpu_custom_call.1} parent=5 // pred_fallthru
        _
      %p422 = scmp.lt.s32.totalorder %s27, 2
      // Predicated region
      $region61: #{tpu_custom_call.1} parent=5 // pred_check
        %p423 = pneg %p422
      $region62: #{tpu_custom_call.1} parent=5 // pred_check_branch
        %425 = sbr.rel (%p423) target = $region64
      $region63: #{tpu_custom_call.1} parent=5 // pred_region
        // Predicated region
        $region65: #{tpu_custom_call.1} parent=63 // pred_check
          %p426 = pneg %p47
        $region66: #{tpu_custom_call.1} parent=63 // pred_check_branch
          %428 = sbr.rel (%p426) target = $region68
        $region67: #{tpu_custom_call.1} parent=63 // pred_region
          %s429 = sand.u32 %s37, 1
          %s430 = scalar_lea.sflag [#allocation3], %s429
          %s431 = sand.u32 %s37, 1
          %s432 = smul.addr %s431, 8
          %s433 = scalar_lea.vmem [#allocation2], %s432
          %s435 = ssub.s32 128, 128
          %436 = vsyncadd %s430, %s435
          %s437 = smul.addr %s27, 128
          %s438 = scalar_lea.hbm %s0, %s437
          %s440 = sshll.u32 %s433, 4
          %s441 = int_to_ptr.vmem [resolvable:$true] %s440
          %443 = dma.hbm_to_vmem [thread:$0]  %s438, 128, %s441, %s430
        $region68: #{tpu_custom_call.1} parent=63 // pred_fallthru
          _
      $region64: #{tpu_custom_call.1} parent=5 // pred_fallthru
        _
      %p444 = scmp.le.s32.totalorder 1, %s27
      %p445 = scmp.lt.s32.totalorder %s27, 3
      %p446 = pnand %p444, %p445
      %p447 = pneg %p446
      // Predicated region
      $region69: #{tpu_custom_call.1} parent=5 // pred_check
        _
      $region70: #{tpu_custom_call.1} parent=5 // pred_check_branch
        %449 = sbr.rel (%p446) target = $region72
      $region71: #{tpu_custom_call.1} parent=5 // pred_region
        %s450 = ssub.s32 %s27, 1
        %s451 = sand.u32 %s40, 1
        %s452 = scalar_lea.sflag [#allocation3], %s451
        %s453 = sand.u32 %s40, 1
        %s454 = smul.addr %s453, 8
        %s455 = scalar_lea.vmem [#allocation2], %s454
        // Predicated region
        $region73: #{tpu_custom_call.1} parent=71 // pred_check
          %p456 = pneg %p53
        $region74: #{tpu_custom_call.1} parent=71 // pred_check_branch
          %458 = sbr.rel (%p456) target = $region76
        $region75: #{tpu_custom_call.1} parent=71 // pred_region
          %459 = dma.done %s452, 128
        $region76: #{tpu_custom_call.1} parent=71 // pred_fallthru
          _
        // Predicated region
        $region77: #{tpu_custom_call.1} parent=71 // pred_check
          %p460 = pneg %p74
        $region78: #{tpu_custom_call.1} parent=71 // pred_check_branch
          %462 = sbr.rel (%p460) target = $region80
        $region79: #{tpu_custom_call.1} parent=71 // pred_region
          %463 = dma.done [#allocation6], 3072
        $region80: #{tpu_custom_call.1} parent=71 // pred_fallthru
          _
        // Predicated region
        $region81: #{tpu_custom_call.1} parent=71 // pred_check
          %p464 = pneg %p116
        $region82: #{tpu_custom_call.1} parent=71 // pred_check_branch
          %466 = sbr.rel (%p464) target = $region84
        $region83: #{tpu_custom_call.1} parent=71 // pred_region
          %467 = dma.done [#allocation6], 1024
        $region84: #{tpu_custom_call.1} parent=71 // pred_fallthru
          _
        // Predicated region
        $region85: #{tpu_custom_call.1} parent=71 // pred_check
          %p468 = pneg %p200
        $region86: #{tpu_custom_call.1} parent=71 // pred_check_branch
          %470 = sbr.rel (%p468) target = $region88
        $region87: #{tpu_custom_call.1} parent=71 // pred_region
          %471 = dma.done [#allocation9], 1024
        $region88: #{tpu_custom_call.1} parent=71 // pred_fallthru
          _
        // Predicated region
        $region89: #{tpu_custom_call.1} parent=71 // pred_check
          %p472 = pneg %p242
        $region90: #{tpu_custom_call.1} parent=71 // pred_check_branch
          %474 = sbr.rel (%p472) target = $region92
        $region91: #{tpu_custom_call.1} parent=71 // pred_region
          %475 = dma.done [#allocation9], 1024
        $region92: #{tpu_custom_call.1} parent=71 // pred_fallthru
          _
        %s476 = sand.u32 %s40, 1
        %s477 = scalar_lea.sflag [#allocation3], %s476
        %s478 = sand.u32 %s40, 1
        %s479 = smul.addr %s478, 8
        %s480 = scalar_lea.vmem [#allocation2], %s479
        %p481 = pneg %p53
        %p482 = pneg %p50
        %p483 = pneg %p74
        %p484 = pneg %p71
        %p485 = pneg %p95
        %p486 = pneg %p92
        %p487 = pneg %p116
        %p488 = pneg %p113
        %p489 = pneg %p137
        %p490 = pneg %p134
        %p491 = pneg %p158
        %p492 = pneg %p155
        %p493 = pneg %p179
        %p494 = pneg %p176
        %p495 = pneg %p200
        %p496 = pneg %p197
        %p497 = pneg %p221
        %p498 = pneg %p218
        %p499 = pneg %p242
        %p500 = pneg %p239
        %p501 = pneg %p263
        %p502 = pneg %p260
        %p503 = pneg %p284
        %p504 = pneg %p281
        %p505 = pneg %p305
        %p506 = pneg %p302
        %p507 = pneg %p331
        %p508 = pneg %p328
        %s509 = sand.u32 %s318, 1
        %s510 = scalar_lea.sflag [#allocation4], %s509
        %s511 = sand.u32 %s318, 1
        %s512 = smul.addr %s511, 8
        %s513 = scalar_lea.vmem [#allocation11], %s512
        %v515 = vld [vmem:[%s455] sm:$0xff]
        %v516 = vpack.c.bf16 %v515, %v515
        %v517 = vld [vmem:[#allocation5] sm:$0xff]
        %v518 = vld [vmem:[#allocation5 + $0x8] sm:$0xf]
        %v519 = vld [vmem:[#allocation5 + $0xc] sm:$0xff]
        %v520 = vld [vmem:[#allocation5 + $0x14] sm:$0xf]
        %v521 = vld [vmem:[#allocation5 + $0x18] sm:$0xff]
        %v522 = vld [vmem:[#allocation5 + $0x20] sm:$0xf]
        %v523 = vld [vmem:[#allocation5 + $0x24] sm:$0xff]
        %v524 = vld [vmem:[#allocation5 + $0x2c] sm:$0xf]
        %v525 = vld [vmem:[#allocation5 + $0x30] sm:$0xff]
        %v526 = vld [vmem:[#allocation5 + $0x38] sm:$0xf]
        %v527 = vld [vmem:[#allocation5 + $0x3c] sm:$0xff]
        %v528 = vld [vmem:[#allocation5 + $0x44] sm:$0xf]
        %v529 = vld [vmem:[#allocation5 + $0x48] sm:$0xff]
        %v530 = vld [vmem:[#allocation5 + $0x50] sm:$0xf]
        %v531 = vld [vmem:[#allocation5 + $0x54] sm:$0xff]
        %v532 = vld [vmem:[#allocation5 + $0x5c] sm:$0xf]
        %v533 = vld [vmem:[#allocation5 + $0x60] sm:$0xff]
        %v534 = vld [vmem:[#allocation5 + $0x68] sm:$0xf]
        %v535 = vld [vmem:[#allocation5 + $0x6c] sm:$0xff]
        %v536 = vld [vmem:[#allocation5 + $0x74] sm:$0xf]
        %v537 = vld [vmem:[#allocation5 + $0x78] sm:$0xff]
        %v538 = vld [vmem:[#allocation5 + $0x80] sm:$0xf]
        %v539 = vld [vmem:[#allocation5 + $0x84] sm:$0xff]
        %v540 = vld [vmem:[#allocation5 + $0x8c] sm:$0xf]
        %v541 = vld [vmem:[#allocation5 + $0x90] sm:$0xff]
        %v542 = vld [vmem:[#allocation5 + $0x98] sm:$0xf]
        %v543 = vld [vmem:[#allocation5 + $0x9c] sm:$0xff]
        %v544 = vld [vmem:[#allocation5 + $0xa4] sm:$0xf]
        %v545 = vld [vmem:[#allocation5 + $0xa8] sm:$0xff]
        %v546 = vld [vmem:[#allocation5 + $0xb0] sm:$0xf]
        %v547 = vld [vmem:[#allocation5 + $0xb4] sm:$0xff]
        %v548 = vld [vmem:[#allocation5 + $0xbc] sm:$0xf]
        %v549 = vld [vmem:[%s2] sm:$0x7]
        %v551 = vlaneseq
        %v552 = vshrl.u32 %v551, 7
        %v553 = vsub.s32 0, %v552
        %v554 = vrot.slane %v549, %v553
        %v555 = vlaneseq
        %v556 = vshrl.u32 %v555, 7
        %v557 = vsub.s32 1, %v556
        %v558 = vrot.slane %v549, %v557
        %v559 = vlaneseq
        %v560 = vshrl.u32 %v559, 7
        %v561 = vsub.s32 2, %v560
        %v562 = vrot.slane %v549, %v561
        %v598 = vunpack.c.l.b16 %v517
        %v599 = vunpack.c.h.b16 %v517
        %v600 = vunpack.c.l.b16 %v518
        %v601 = vunpack.c.l.b16 %v519
        %v602 = vunpack.c.h.b16 %v519
        %v603 = vunpack.c.l.b16 %v520
        %v604 = vunpack.c.l.b16 %v521
        %v605 = vunpack.c.h.b16 %v521
        %v606 = vunpack.c.l.b16 %v522
        %v607 = vunpack.c.l.b16 %v523
        %v608 = vunpack.c.h.b16 %v523
        %v609 = vunpack.c.l.b16 %v524
        %v610 = vunpack.c.l.b16 %v525
        %v611 = vunpack.c.h.b16 %v525
        %v612 = vunpack.c.l.b16 %v526
        %v613 = vunpack.c.l.b16 %v527
        %v614 = vunpack.c.h.b16 %v527
        %v615 = vunpack.c.l.b16 %v528
        %v616 = vunpack.c.l.b16 %v529
        %v617 = vunpack.c.h.b16 %v529
        %v618 = vunpack.c.l.b16 %v530
        %v619 = vunpack.c.l.b16 %v531
        %v620 = vunpack.c.h.b16 %v531
        %v621 = vunpack.c.l.b16 %v532
        %v622 = vunpack.c.l.b16 %v533
        %v623 = vunpack.c.h.b16 %v533
        %v624 = vunpack.c.l.b16 %v534
        %v625 = vunpack.c.l.b16 %v535
        %v626 = vunpack.c.h.b16 %v535
        %v627 = vunpack.c.l.b16 %v536
        %v628 = vunpack.c.l.b16 %v537
        %v629 = vunpack.c.h.b16 %v537
        %v630 = vunpack.c.l.b16 %v538
        %v631 = vunpack.c.l.b16 %v539
        %v632 = vunpack.c.h.b16 %v539
        %v633 = vunpack.c.l.b16 %v540
        %v634 = vunpack.c.l.b16 %v541
        %v635 = vunpack.c.h.b16 %v541
        %v636 = vunpack.c.l.b16 %v542
        %v637 = vunpack.c.l.b16 %v543
        %v638 = vunpack.c.h.b16 %v543
        %v639 = vunpack.c.l.b16 %v544
        %v640 = vunpack.c.l.b16 %v545
        %v641 = vunpack.c.h.b16 %v545
        %v642 = vunpack.c.l.b16 %v546
        %v643 = vunpack.c.l.b16 %v547
        %v644 = vunpack.c.h.b16 %v547
        %v645 = vunpack.c.l.b16 %v548
        %v646 = vpack.c.b16 %v601, %v598
        %v647 = vpack.c.b16 %v602, %v599
        %v648 = vpack.c.b16 %v603, %v600
        %v649 = vpack.c.b16 %v607, %v604
        %v650 = vpack.c.b16 %v608, %v605
        %v651 = vpack.c.b16 %v609, %v606
        %v652 = vpack.c.b16 %v613, %v610
        %v653 = vpack.c.b16 %v614, %v611
        %v654 = vpack.c.b16 %v615, %v612
        %v655 = vpack.c.b16 %v619, %v616
        %v656 = vpack.c.b16 %v620, %v617
        %v657 = vpack.c.b16 %v621, %v618
        %v658 = vpack.c.b16 %v625, %v622
        %v659 = vpack.c.b16 %v626, %v623
        %v660 = vpack.c.b16 %v627, %v624
        %v661 = vpack.c.b16 %v631, %v628
        %v662 = vpack.c.b16 %v632, %v629
        %v663 = vpack.c.b16 %v633, %v630
        %v664 = vpack.c.b16 %v637, %v634
        %v665 = vpack.c.b16 %v638, %v635
        %v666 = vpack.c.b16 %v639, %v636
        %v667 = vpack.c.b16 %v643, %v640
        %v668 = vpack.c.b16 %v644, %v641
        %v669 = vpack.c.b16 %v645, %v642
        %694 = vmatprep.subr.bf16.mxu0 %v668
        %695 = vmatpush1.bf16.msra.mxu0 %v667
        %696 = vmatprep.subr.bf16.mxu0 %v665
        %697 = vmatpush1.bf16.msra.mxu0 %v664
        %698 = vmatprep.subr.bf16.mxu0 %v662
        %699 = vmatpush1.bf16.msra.mxu0 %v661
        %700 = vmatprep.subr.bf16.mxu0 %v659
        %701 = vmatpush1.bf16.msra.mxu0 %v658
        %702 = vmatprep.subr.bf16.mxu0 %v656
        %703 = vmatpush1.bf16.msra.mxu0 %v655
        %704 = vmatprep.subr.bf16.mxu0 %v653
        %705 = vmatpush1.bf16.msra.mxu0 %v652
        %706 = vmatprep.subr.bf16.mxu0 %v650
        %707 = vmatpush1.bf16.msra.mxu0 %v649
        %708 = vmatprep.subr.bf16.mxu0 %v647
        %709 = vmatpush1.bf16.msra.mxu0 %v646
        %710 = vmatprep.subr.bf16.mxu0 0
        %711 = vmatpush2.bf16.msra.mxu0 0
        %712 = vmatprep.subr.bf16.mxu0 0
        %713 = vmatpush2.bf16.msra.mxu0 0
        %714 = vmatprep.subr.bf16.mxu0 0
        %715 = vmatpush2.bf16.msra.mxu0 0
        %716 = vmatprep.subr.bf16.mxu0 0
        %717 = vmatpush2.bf16.msra.mxu0 0
        %718 = vmatprep.subr.bf16.mxu0 0
        %719 = vmatpush2.bf16.msra.mxu0 0
        %720 = vmatprep.subr.bf16.mxu0 0
        %721 = vmatpush2.bf16.msra.mxu0 0
        %722 = vmatprep.subr.bf16.mxu0 0
        %723 = vmatpush2.bf16.msra.mxu0 0
        %724 = vmatprep.subr.bf16.mxu0 0
        %725 = vmatpush2.bf16.msra.mxu0 0
        %726 = vmatprep.mubr.bf16.mxu0 0
        %727 = vmatmul.mubr.bf16.gmra.mxu0 %v516
        %v728 = vpop.f32.mrf.mxu0
        %v729 = vadd.f32 %v554, %v728
        %v730 = vpop.f32.mrf.mxu0
        %v731 = vadd.f32 %v558, %v730
        %v732 = vpop.f32.mrf.mxu0
        %v733 = vpop.f32.mrf.mxu0
        %734 = vdwg.mxu0
        %735 = vmatprep.subr.bf16.mxu0 0
        %736 = vmatpush1.bf16.msra.mxu0 %v669
        %737 = vmatprep.subr.bf16.mxu0 0
        %738 = vmatpush1.bf16.msra.mxu0 %v666
        %739 = vmatprep.subr.bf16.mxu0 0
        %740 = vmatpush1.bf16.msra.mxu0 %v663
        %741 = vmatprep.subr.bf16.mxu0 0
        %742 = vmatpush1.bf16.msra.mxu0 %v660
        %743 = vmatprep.subr.bf16.mxu0 0
        %744 = vmatpush1.bf16.msra.mxu0 %v657
        %745 = vmatprep.subr.bf16.mxu0 0
        %746 = vmatpush1.bf16.msra.mxu0 %v654
        %747 = vmatprep.subr.bf16.mxu0 0
        %748 = vmatpush1.bf16.msra.mxu0 %v651
        %749 = vmatprep.subr.bf16.mxu0 0
        %750 = vmatpush1.bf16.msra.mxu0 %v648
        %751 = vmatprep.subr.bf16.mxu0 0
        %752 = vmatpush2.bf16.msra.mxu0 0
        %753 = vmatprep.subr.bf16.mxu0 0
        %754 = vmatpush2.bf16.msra.mxu0 0
        %755 = vmatprep.subr.bf16.mxu0 0
        %756 = vmatpush2.bf16.msra.mxu0 0
        %757 = vmatprep.subr.bf16.mxu0 0
        %758 = vmatpush2.bf16.msra.mxu0 0
        %759 = vmatprep.subr.bf16.mxu0 0
        %760 = vmatpush2.bf16.msra.mxu0 0
        %761 = vmatprep.subr.bf16.mxu0 0
        %762 = vmatpush2.bf16.msra.mxu0 0
        %763 = vmatprep.subr.bf16.mxu0 0
        %764 = vmatpush2.bf16.msra.mxu0 0
        %765 = vmatprep.subr.bf16.mxu0 0
        %766 = vmatpush2.bf16.msra.mxu0 0
        %767 = vmatprep.mubr.bf16.mxu0 0
        %768 = vmatmul.mubr.bf16.gmra.mxu0 %v516
        %v769 = vpop.f32.mrf.mxu0
        %v770 = vadd.f32 %v562, %v769
        %v771 = vpop.f32.mrf.mxu0
        %v772 = vpop.f32.mrf.mxu0
        %v773 = vpop.f32.mrf.mxu0
        %774 = vdwg.mxu0
        %v775 = vpack.c.bf16 %v729, %v729
        %v776 = vpack.c.bf16 %v731, %v731
        %v777 = vpack.c.bf16 %v770, %v770
        %v778 = vld [vmem:[%s5] sm:$0x1]
        %v779 = vld [vmem:[%s6] sm:$0x1]
        %v780 = vld [vmem:[%s11] sm:$0x1]
        %v781 = vld [vmem:[%s12] sm:$0x1]
        %v782 = vld [vmem:[%s4] sm:$0x1]
        %v783 = vld [vmem:[%s10] sm:$0x1]
        %vm784 = vcmask 130048
        %v786 = vsel %vm784, %v775, 0
        %v789 = vsel %vm784, %v776, 0
        %791 = vmatprep.subr.bf16.mxu0 0
        %792 = vmatpush1.bf16.xpose.msra.mxu0 0
        %793 = vmatprep.subr.bf16.mxu0 0
        %794 = vmatpush1.bf16.xpose.msra.mxu0 0
        %795 = vmatprep.subr.bf16.mxu0 0
        %796 = vmatpush1.bf16.xpose.msra.mxu0 0
        %797 = vmatprep.subr.bf16.mxu0 0
        %798 = vmatpush1.bf16.xpose.msra.mxu0 0
        %799 = vmatprep.subr.bf16.mxu0 0
        %800 = vmatpush1.bf16.xpose.msra.mxu0 0
        %801 = vmatprep.subr.bf16.mxu0 0
        %802 = vmatpush1.bf16.xpose.msra.mxu0 0
        %803 = vmatprep.subr.bf16.mxu0 0
        %804 = vmatpush1.bf16.xpose.msra.mxu0 0
        %805 = vmatprep.subr.bf16.mxu0 0
        %806 = vmatpush1.bf16.xpose.msra.mxu0 %v789
        %807 = vmatprep.subr.bf16.mxu0 0
        %808 = vmatpush2.bf16.xpose.msra.mxu0 0
        %809 = vmatprep.subr.bf16.mxu0 0
        %810 = vmatpush2.bf16.xpose.msra.mxu0 0
        %811 = vmatprep.subr.bf16.mxu0 0
        %812 = vmatpush2.bf16.xpose.msra.mxu0 0
        %813 = vmatprep.subr.bf16.mxu0 0
        %814 = vmatpush2.bf16.xpose.msra.mxu0 0
        %815 = vmatprep.subr.bf16.mxu0 0
        %816 = vmatpush2.bf16.xpose.msra.mxu0 0
        %817 = vmatprep.subr.bf16.mxu0 0
        %818 = vmatpush2.bf16.xpose.msra.mxu0 0
        %819 = vmatprep.subr.bf16.mxu0 0
        %820 = vmatpush2.bf16.xpose.msra.mxu0 0
        %821 = vmatprep.subr.bf16.mxu0 0
        %822 = vmatpush2.bf16.xpose.msra.mxu0 0
        %823 = vmatprep.mubr.bf16.mxu0 0
        %824 = vmatmul.mubr.bf16.gmra.mxu0 %v786
        %v825 = vpop.f32.mrf.mxu0
        %v826 = vadd.f32 0.0, %v825
        %v827 = vpop.f32.mrf.mxu0
        %v828 = vpop.f32.mrf.mxu0
        %v829 = vpop.f32.mrf.mxu0
        %830 = vdwg.mxu0
        %vm831 = vcmask 64512
        %v832 = vsel %vm831, %v826, -inf
        %833 = vmax.xlane.f32.xlu0 %v832
        %v834 = vpop.xlane.xlu0 %833
        %v835 = vsub.f32 %v826, %v834
        %v836 = vmul.f32 %v835, 1.442695
        %v837 = vpow.pop %v836
        %v838 = vsel %vm831, %v837, 0.0
        %839 = vadd.xlane.f32.xlu0 %v838
        %v840 = vpop.xlane.xlu0 %839
        %v841 = vrcp.pop %v840
        %v842 = vmul.f32 %v837, %v841
        %v843 = vpack.c.bf16 %v842, %v842
        %v845 = vsel %vm831, %v843, 0
        %vm847 = vcmask 1043456
        %v849 = vsel %vm847, %v777, 0
        %851 = vmatprep.subr.bf16.mxu0 0
        %852 = vmatpush1.bf16.msra.mxu0 0
        %853 = vmatprep.subr.bf16.mxu0 0
        %854 = vmatpush1.bf16.msra.mxu0 0
        %855 = vmatprep.subr.bf16.mxu0 0
        %856 = vmatpush1.bf16.msra.mxu0 0
        %857 = vmatprep.subr.bf16.mxu0 0
        %858 = vmatpush1.bf16.msra.mxu0 0
        %859 = vmatprep.subr.bf16.mxu0 0
        %860 = vmatpush1.bf16.msra.mxu0 0
        %861 = vmatprep.subr.bf16.mxu0 0
        %862 = vmatpush1.bf16.msra.mxu0 0
        %863 = vmatprep.subr.bf16.mxu0 0
        %864 = vmatpush1.bf16.msra.mxu0 0
        %865 = vmatprep.subr.bf16.mxu0 0
        %866 = vmatpush1.bf16.msra.mxu0 %v849
        %867 = vmatprep.subr.bf16.mxu0 0
        %868 = vmatpush2.bf16.msra.mxu0 0
        %869 = vmatprep.subr.bf16.mxu0 0
        %870 = vmatpush2.bf16.msra.mxu0 0
        %871 = vmatprep.subr.bf16.mxu0 0
        %872 = vmatpush2.bf16.msra.mxu0 0
        %873 = vmatprep.subr.bf16.mxu0 0
        %874 = vmatpush2.bf16.msra.mxu0 0
        %875 = vmatprep.subr.bf16.mxu0 0
        %876 = vmatpush2.bf16.msra.mxu0 0
        %877 = vmatprep.subr.bf16.mxu0 0
        %878 = vmatpush2.bf16.msra.mxu0 0
        %879 = vmatprep.subr.bf16.mxu0 0
        %880 = vmatpush2.bf16.msra.mxu0 0
        %881 = vmatprep.subr.bf16.mxu0 0
        %882 = vmatpush2.bf16.msra.mxu0 0
        %883 = vmatprep.mubr.bf16.mxu0 0
        %884 = vmatmul.mubr.bf16.gmra.mxu0 %v845
        %v885 = vpop.f32.mrf.mxu0
        %v886 = vadd.f32 0.0, %v885
        %v887 = vpop.f32.mrf.mxu0
        %v888 = vpop.f32.mrf.mxu0
        %v889 = vpop.f32.mrf.mxu0
        %890 = vdwg.mxu0
        %892 = vrot.lane.b32.xlu0 %v775, 112
        %v893 = vpop.permute.xlu0 %892
        %895 = vrot.lane.b32.xlu0 %v776, 112
        %v896 = vpop.permute.xlu0 %895
        %v898 = vsel %vm784, %v893, 0
        %v901 = vsel %vm784, %v896, 0
        %903 = vmatprep.subr.bf16.mxu0 0
        %904 = vmatpush1.bf16.xpose.msra.mxu0 0
        %905 = vmatprep.subr.bf16.mxu0 0
        %906 = vmatpush1.bf16.xpose.msra.mxu0 0
        %907 = vmatprep.subr.bf16.mxu0 0
        %908 = vmatpush1.bf16.xpose.msra.mxu0 0
        %909 = vmatprep.subr.bf16.mxu0 0
        %910 = vmatpush1.bf16.xpose.msra.mxu0 0
        %911 = vmatprep.subr.bf16.mxu0 0
        %912 = vmatpush1.bf16.xpose.msra.mxu0 0
        %913 = vmatprep.subr.bf16.mxu0 0
        %914 = vmatpush1.bf16.xpose.msra.mxu0 0
        %915 = vmatprep.subr.bf16.mxu0 0
        %916 = vmatpush1.bf16.xpose.msra.mxu0 0
        %917 = vmatprep.subr.bf16.mxu0 0
        %918 = vmatpush1.bf16.xpose.msra.mxu0 %v901
        %919 = vmatprep.subr.bf16.mxu0 0
        %920 = vmatpush2.bf16.xpose.msra.mxu0 0
        %921 = vmatprep.subr.bf16.mxu0 0
        %922 = vmatpush2.bf16.xpose.msra.mxu0 0
        %923 = vmatprep.subr.bf16.mxu0 0
        %924 = vmatpush2.bf16.xpose.msra.mxu0 0
        %925 = vmatprep.subr.bf16.mxu0 0
        %926 = vmatpush2.bf16.xpose.msra.mxu0 0
        %927 = vmatprep.subr.bf16.mxu0 0
        %928 = vmatpush2.bf16.xpose.msra.mxu0 0
        %929 = vmatprep.subr.bf16.mxu0 0
        %930 = vmatpush2.bf16.xpose.msra.mxu0 0
        %931 = vmatprep.subr.bf16.mxu0 0
        %932 = vmatpush2.bf16.xpose.msra.mxu0 0
        %933 = vmatprep.subr.bf16.mxu0 0
        %934 = vmatpush2.bf16.xpose.msra.mxu0 0
        %935 = vmatprep.mubr.bf16.mxu0 0
        %936 = vmatmul.mubr.bf16.gmra.mxu0 %v898
        %v937 = vpop.f32.mrf.mxu0
        %v938 = vadd.f32 0.0, %v937
        %v939 = vpop.f32.mrf.mxu0
        %v940 = vpop.f32.mrf.mxu0
        %v941 = vpop.f32.mrf.mxu0
        %942 = vdwg.mxu0
        %v943 = vsel %vm831, %v938, -inf
        %944 = vmax.xlane.f32.xlu0 %v943
        %v945 = vpop.xlane.xlu0 %944
        %v946 = vsub.f32 %v938, %v945
        %v947 = vmul.f32 %v946, 1.442695
        %v948 = vpow.pop %v947
        %v949 = vsel %vm831, %v948, 0.0
        %950 = vadd.xlane.f32.xlu0 %v949
        %v951 = vpop.xlane.xlu0 %950
        %v952 = vrcp.pop %v951
        %v953 = vmul.f32 %v948, %v952
        %v954 = vpack.c.bf16 %v953, %v953
        %956 = vrot.lane.b32.xlu0 %v777, 112
        %v957 = vpop.permute.xlu0 %956
        %v959 = vsel %vm831, %v954, 0
        %v962 = vsel %vm847, %v957, 0
        %964 = vmatprep.subr.bf16.mxu0 0
        %965 = vmatpush1.bf16.msra.mxu0 0
        %966 = vmatprep.subr.bf16.mxu0 0
        %967 = vmatpush1.bf16.msra.mxu0 0
        %968 = vmatprep.subr.bf16.mxu0 0
        %969 = vmatpush1.bf16.msra.mxu0 0
        %970 = vmatprep.subr.bf16.mxu0 0
        %971 = vmatpush1.bf16.msra.mxu0 0
        %972 = vmatprep.subr.bf16.mxu0 0
        %973 = vmatpush1.bf16.msra.mxu0 0
        %974 = vmatprep.subr.bf16.mxu0 0
        %975 = vmatpush1.bf16.msra.mxu0 0
        %976 = vmatprep.subr.bf16.mxu0 0
        %977 = vmatpush1.bf16.msra.mxu0 0
        %978 = vmatprep.subr.bf16.mxu0 0
        %979 = vmatpush1.bf16.msra.mxu0 %v962
        %980 = vmatprep.subr.bf16.mxu0 0
        %981 = vmatpush2.bf16.msra.mxu0 0
        %982 = vmatprep.subr.bf16.mxu0 0
        %983 = vmatpush2.bf16.msra.mxu0 0
        %984 = vmatprep.subr.bf16.mxu0 0
        %985 = vmatpush2.bf16.msra.mxu0 0
        %986 = vmatprep.subr.bf16.mxu0 0
        %987 = vmatpush2.bf16.msra.mxu0 0
        %988 = vmatprep.subr.bf16.mxu0 0
        %989 = vmatpush2.bf16.msra.mxu0 0
        %990 = vmatprep.subr.bf16.mxu0 0
        %991 = vmatpush2.bf16.msra.mxu0 0
        %992 = vmatprep.subr.bf16.mxu0 0
        %993 = vmatpush2.bf16.msra.mxu0 0
        %994 = vmatprep.subr.bf16.mxu0 0
        %995 = vmatpush2.bf16.msra.mxu0 0
        %996 = vmatprep.mubr.bf16.mxu0 0
        %997 = vmatmul.mubr.bf16.gmra.mxu0 %v959
        %v998 = vpop.f32.mrf.mxu0
        %v999 = vadd.f32 0.0, %v998
        %v1000 = vpop.f32.mrf.mxu0
        %v1001 = vpop.f32.mrf.mxu0
        %v1002 = vpop.f32.mrf.mxu0
        %1003 = vdwg.mxu0
        %1004 = vrot.lane.b32.xlu0 %v775, 96
        %v1005 = vpop.permute.xlu0 %1004
        %1006 = vrot.lane.b32.xlu0 %v776, 96
        %v1007 = vpop.permute.xlu0 %1006
        %v1009 = vsel %vm784, %v1005, 0
        %v1012 = vsel %vm784, %v1007, 0
        %1014 = vmatprep.subr.bf16.mxu0 0
        %1015 = vmatpush1.bf16.xpose.msra.mxu0 0
        %1016 = vmatprep.subr.bf16.mxu0 0
        %1017 = vmatpush1.bf16.xpose.msra.mxu0 0
        %1018 = vmatprep.subr.bf16.mxu0 0
        %1019 = vmatpush1.bf16.xpose.msra.mxu0 0
        %1020 = vmatprep.subr.bf16.mxu0 0
        %1021 = vmatpush1.bf16.xpose.msra.mxu0 0
        %1022 = vmatprep.subr.bf16.mxu0 0
        %1023 = vmatpush1.bf16.xpose.msra.mxu0 0
        %1024 = vmatprep.subr.bf16.mxu0 0
        %1025 = vmatpush1.bf16.xpose.msra.mxu0 0
        %1026 = vmatprep.subr.bf16.mxu0 0
        %1027 = vmatpush1.bf16.xpose.msra.mxu0 0
        %1028 = vmatprep.subr.bf16.mxu0 0
        %1029 = vmatpush1.bf16.xpose.msra.mxu0 %v1012
        %1030 = vmatprep.subr.bf16.mxu0 0
        %1031 = vmatpush2.bf16.xpose.msra.mxu0 0
        %1032 = vmatprep.subr.bf16.mxu0 0
        %1033 = vmatpush2.bf16.xpose.msra.mxu0 0
        %1034 = vmatprep.subr.bf16.mxu0 0
        %1035 = vmatpush2.bf16.xpose.msra.mxu0 0
        %1036 = vmatprep.subr.bf16.mxu0 0
        %1037 = vmatpush2.bf16.xpose.msra.mxu0 0
        %1038 = vmatprep.subr.bf16.mxu0 0
        %1039 = vmatpush2.bf16.xpose.msra.mxu0 0
        %1040 = vmatprep.subr.bf16.mxu0 0
        %1041 = vmatpush2.bf16.xpose.msra.mxu0 0
        %1042 = vmatprep.subr.bf16.mxu0 0
        %1043 = vmatpush2.bf16.xpose.msra.mxu0 0
        %1044 = vmatprep.subr.bf16.mxu0 0
        %1045 = vmatpush2.bf16.xpose.msra.mxu0 0
        %1046 = vmatprep.mubr.bf16.mxu0 0
        %1047 = vmatmul.mubr.bf16.gmra.mxu0 %v1009
        %v1048 = vpop.f32.mrf.mxu0
        %v1049 = vadd.f32 0.0, %v1048
        %v1050 = vpop.f32.mrf.mxu0
        %v1051 = vpop.f32.mrf.mxu0
        %v1052 = vpop.f32.mrf.mxu0
        %1053 = vdwg.mxu0
        %v1054 = vsel %vm831, %v1049, -inf
        %1055 = vmax.xlane.f32.xlu0 %v1054
        %v1056 = vpop.xlane.xlu0 %1055
        %v1057 = vsub.f32 %v1049, %v1056
        %v1058 = vmul.f32 %v1057, 1.442695
        %v1059 = vpow.pop %v1058
        %v1060 = vsel %vm831, %v1059, 0.0
        %1061 = vadd.xlane.f32.xlu0 %v1060
        %v1062 = vpop.xlane.xlu0 %1061
        %v1063 = vrcp.pop %v1062
        %v1064 = vmul.f32 %v1059, %v1063
        %v1065 = vpack.c.bf16 %v1064, %v1064
        %1066 = vrot.lane.b32.xlu0 %v777, 96
        %v1067 = vpop.permute.xlu0 %1066
        %v1069 = vsel %vm831, %v1065, 0
        %v1072 = vsel %vm847, %v1067, 0
        %1074 = vmatprep.subr.bf16.mxu0 0
        %1075 = vmatpush1.bf16.msra.mxu0 0
        %1076 = vmatprep.subr.bf16.mxu0 0
        %1077 = vmatpush1.bf16.msra.mxu0 0
        %1078 = vmatprep.subr.bf16.mxu0 0
        %1079 = vmatpush1.bf16.msra.mxu0 0
        %1080 = vmatprep.subr.bf16.mxu0 0
        %1081 = vmatpush1.bf16.msra.mxu0 0
        %1082 = vmatprep.subr.bf16.mxu0 0
        %1083 = vmatpush1.bf16.msra.mxu0 0
        %1084 = vmatprep.subr.bf16.mxu0 0
        %1085 = vmatpush1.bf16.msra.mxu0 0
        %1086 = vmatprep.subr.bf16.mxu0 0
        %1087 = vmatpush1.bf16.msra.mxu0 0
        %1088 = vmatprep.subr.bf16.mxu0 0
        %1089 = vmatpush1.bf16.msra.mxu0 %v1072
        %1090 = vmatprep.subr.bf16.mxu0 0
        %1091 = vmatpush2.bf16.msra.mxu0 0
        %1092 = vmatprep.subr.bf16.mxu0 0
        %1093 = vmatpush2.bf16.msra.mxu0 0
        %1094 = vmatprep.subr.bf16.mxu0 0
        %1095 = vmatpush2.bf16.msra.mxu0 0
        %1096 = vmatprep.subr.bf16.mxu0 0
        %1097 = vmatpush2.bf16.msra.mxu0 0
        %1098 = vmatprep.subr.bf16.mxu0 0
        %1099 = vmatpush2.bf16.msra.mxu0 0
        %1100 = vmatprep.subr.bf16.mxu0 0
        %1101 = vmatpush2.bf16.msra.mxu0 0
        %1102 = vmatprep.subr.bf16.mxu0 0
        %1103 = vmatpush2.bf16.msra.mxu0 0
        %1104 = vmatprep.subr.bf16.mxu0 0
        %1105 = vmatpush2.bf16.msra.mxu0 0
        %1106 = vmatprep.mubr.bf16.mxu0 0
        %1107 = vmatmul.mubr.bf16.gmra.mxu0 %v1069
        %v1108 = vpop.f32.mrf.mxu0
        %v1109 = vadd.f32 0.0, %v1108
        %v1110 = vpop.f32.mrf.mxu0
        %v1111 = vpop.f32.mrf.mxu0
        %v1112 = vpop.f32.mrf.mxu0
        %1113 = vdwg.mxu0
        %1114 = vrot.lane.b32.xlu0 %v775, 80
        %v1115 = vpop.permute.xlu0 %1114
        %1116 = vrot.lane.b32.xlu0 %v776, 80
        %v1117 = vpop.permute.xlu0 %1116
        %v1119 = vsel %vm784, %v1115, 0
        %v1122 = vsel %vm784, %v1117, 0
        %1124 = vmatprep.subr.bf16.mxu0 0
        %1125 = vmatpush1.bf16.xpose.msra.mxu0 0
        %1126 = vmatprep.subr.bf16.mxu0 0
        %1127 = vmatpush1.bf16.xpose.msra.mxu0 0
        %1128 = vmatprep.subr.bf16.mxu0 0
        %1129 = vmatpush1.bf16.xpose.msra.mxu0 0
        %1130 = vmatprep.subr.bf16.mxu0 0
        %1131 = vmatpush1.bf16.xpose.msra.mxu0 0
        %1132 = vmatprep.subr.bf16.mxu0 0
        %1133 = vmatpush1.bf16.xpose.msra.mxu0 0
        %1134 = vmatprep.subr.bf16.mxu0 0
        %1135 = vmatpush1.bf16.xpose.msra.mxu0 0
        %1136 = vmatprep.subr.bf16.mxu0 0
        %1137 = vmatpush1.bf16.xpose.msra.mxu0 0
        %1138 = vmatprep.subr.bf16.mxu0 0
        %1139 = vmatpush1.bf16.xpose.msra.mxu0 %v1122
        %1140 = vmatprep.subr.bf16.mxu0 0
        %1141 = vmatpush2.bf16.xpose.msra.mxu0 0
        %1142 = vmatprep.subr.bf16.mxu0 0
        %1143 = vmatpush2.bf16.xpose.msra.mxu0 0
        %1144 = vmatprep.subr.bf16.mxu0 0
        %1145 = vmatpush2.bf16.xpose.msra.mxu0 0
        %1146 = vmatprep.subr.bf16.mxu0 0
        %1147 = vmatpush2.bf16.xpose.msra.mxu0 0
        %1148 = vmatprep.subr.bf16.mxu0 0
        %1149 = vmatpush2.bf16.xpose.msra.mxu0 0
        %1150 = vmatprep.subr.bf16.mxu0 0
        %1151 = vmatpush2.bf16.xpose.msra.mxu0 0
        %1152 = vmatprep.subr.bf16.mxu0 0
        %1153 = vmatpush2.bf16.xpose.msra.mxu0 0
        %1154 = vmatprep.subr.bf16.mxu0 0
        %1155 = vmatpush2.bf16.xpose.msra.mxu0 0
        %1156 = vmatprep.mubr.bf16.mxu0 0
        %1157 = vmatmul.mubr.bf16.gmra.mxu0 %v1119
        %v1158 = vpop.f32.mrf.mxu0
        %v1159 = vadd.f32 0.0, %v1158
        %v1160 = vpop.f32.mrf.mxu0
        %v1161 = vpop.f32.mrf.mxu0
        %v1162 = vpop.f32.mrf.mxu0
        %1163 = vdwg.mxu0
        %v1164 = vsel %vm831, %v1159, -inf
        %1165 = vmax.xlane.f32.xlu0 %v1164
        %v1166 = vpop.xlane.xlu0 %1165
        %v1167 = vsub.f32 %v1159, %v1166
        %v1168 = vmul.f32 %v1167, 1.442695
        %v1169 = vpow.pop %v1168
        %v1170 = vsel %vm831, %v1169, 0.0
        %1171 = vadd.xlane.f32.xlu0 %v1170
        %v1172 = vpop.xlane.xlu0 %1171
        %v1173 = vrcp.pop %v1172
        %v1174 = vmul.f32 %v1169, %v1173
        %v1175 = vpack.c.bf16 %v1174, %v1174
        %1176 = vrot.lane.b32.xlu0 %v777, 80
        %v1177 = vpop.permute.xlu0 %1176
        %v1179 = vsel %vm831, %v1175, 0
        %v1182 = vsel %vm847, %v1177, 0
        %1184 = vmatprep.subr.bf16.mxu0 0
        %1185 = vmatpush1.bf16.msra.mxu0 0
        %1186 = vmatprep.subr.bf16.mxu0 0
        %1187 = vmatpush1.bf16.msra.mxu0 0
        %1188 = vmatprep.subr.bf16.mxu0 0
        %1189 = vmatpush1.bf16.msra.mxu0 0
        %1190 = vmatprep.subr.bf16.mxu0 0
        %1191 = vmatpush1.bf16.msra.mxu0 0
        %1192 = vmatprep.subr.bf16.mxu0 0
        %1193 = vmatpush1.bf16.msra.mxu0 0
        %1194 = vmatprep.subr.bf16.mxu0 0
        %1195 = vmatpush1.bf16.msra.mxu0 0
        %1196 = vmatprep.subr.bf16.mxu0 0
        %1197 = vmatpush1.bf16.msra.mxu0 0
        %1198 = vmatprep.subr.bf16.mxu0 0
        %1199 = vmatpush1.bf16.msra.mxu0 %v1182
        %1200 = vmatprep.subr.bf16.mxu0 0
        %1201 = vmatpush2.bf16.msra.mxu0 0
        %1202 = vmatprep.subr.bf16.mxu0 0
        %1203 = vmatpush2.bf16.msra.mxu0 0
        %1204 = vmatprep.subr.bf16.mxu0 0
        %1205 = vmatpush2.bf16.msra.mxu0 0
        %1206 = vmatprep.subr.bf16.mxu0 0
        %1207 = vmatpush2.bf16.msra.mxu0 0
        %1208 = vmatprep.subr.bf16.mxu0 0
        %1209 = vmatpush2.bf16.msra.mxu0 0
        %1210 = vmatprep.subr.bf16.mxu0 0
        %1211 = vmatpush2.bf16.msra.mxu0 0
        %1212 = vmatprep.subr.bf16.mxu0 0
        %1213 = vmatpush2.bf16.msra.mxu0 0
        %1214 = vmatprep.subr.bf16.mxu0 0
        %1215 = vmatpush2.bf16.msra.mxu0 0
        %1216 = vmatprep.mubr.bf16.mxu0 0
        %1217 = vmatmul.mubr.bf16.gmra.mxu0 %v1179
        %v1218 = vpop.f32.mrf.mxu0
        %v1219 = vadd.f32 0.0, %v1218
        %v1220 = vpop.f32.mrf.mxu0
        %v1221 = vpop.f32.mrf.mxu0
        %v1222 = vpop.f32.mrf.mxu0
        %1223 = vdwg.mxu0
        %1225 = vrot.lane.b32.xlu0 %v999, 16
        %v1226 = vpop.permute.xlu0 %1225
        %1229 = vrot.lane.b32.xlu0 %v1109, 32
        %v1230 = vpop.permute.xlu0 %1229
        %1233 = vrot.lane.b32.xlu0 %v1219, 48
        %v1234 = vpop.permute.xlu0 %1233
        %v1236 = vsel %vm784, %v886, %v1226
        %vm1237 = vcmask 261120
        %v1238 = vsel %vm1237, %v1236, %v1230
        %vm1239 = vcmask 392192
        %v1240 = vsel %vm1239, %v1238, %v1234
        %vm1241 = vcmask 523264
        %v1242 = vsel %vm1241, %v1240, 0.0
        %v1243 = vpack.c.bf16 %v1242, %v1242
        %v1244 = vld [vmem:[#allocation7] sm:$0xf]
        %v1245 = vld [vmem:[#allocation7 + $0x4] sm:$0xf]
        %v1246 = vld [vmem:[#allocation7 + $0x8] sm:$0xf]
        %v1247 = vld [vmem:[#allocation7 + $0xc] sm:$0xf]
        %v1248 = vld [vmem:[#allocation7 + $0x10] sm:$0xf]
        %v1249 = vld [vmem:[#allocation7 + $0x14] sm:$0xf]
        %v1250 = vld [vmem:[#allocation7 + $0x18] sm:$0xf]
        %v1251 = vld [vmem:[#allocation7 + $0x1c] sm:$0xf]
        %v1252 = vld [vmem:[#allocation7 + $0x20] sm:$0xf]
        %v1253 = vld [vmem:[#allocation7 + $0x24] sm:$0xf]
        %v1254 = vld [vmem:[#allocation7 + $0x28] sm:$0xf]
        %v1255 = vld [vmem:[#allocation7 + $0x2c] sm:$0xf]
        %v1256 = vld [vmem:[#allocation7 + $0x30] sm:$0xf]
        %v1257 = vld [vmem:[#allocation7 + $0x34] sm:$0xf]
        %v1258 = vld [vmem:[#allocation7 + $0x38] sm:$0xf]
        %v1259 = vld [vmem:[#allocation7 + $0x3c] sm:$0xf]
        %v1261 = vlaneseq
        %v1262 = vshrl.u32 %v1261, 7
        %v1263 = vsub.s32 0, %v1262
        %v1264 = vrot.slane %v782, %v1263
        %v1282 = vunpack.c.l.b16 %v1244
        %v1283 = vunpack.c.l.b16 %v1245
        %v1284 = vunpack.c.l.b16 %v1246
        %v1285 = vunpack.c.l.b16 %v1247
        %v1286 = vunpack.c.l.b16 %v1248
        %v1287 = vunpack.c.l.b16 %v1249
        %v1288 = vunpack.c.l.b16 %v1250
        %v1289 = vunpack.c.l.b16 %v1251
        %v1290 = vunpack.c.l.b16 %v1252
        %v1291 = vunpack.c.l.b16 %v1253
        %v1292 = vunpack.c.l.b16 %v1254
        %v1293 = vunpack.c.l.b16 %v1255
        %v1294 = vunpack.c.l.b16 %v1256
        %v1295 = vunpack.c.l.b16 %v1257
        %v1296 = vunpack.c.l.b16 %v1258
        %v1297 = vunpack.c.l.b16 %v1259
        %v1298 = vpack.c.b16 %v1283, %v1282
        %v1299 = vpack.c.b16 %v1285, %v1284
        %v1300 = vpack.c.b16 %v1287, %v1286
        %v1301 = vpack.c.b16 %v1289, %v1288
        %v1302 = vpack.c.b16 %v1291, %v1290
        %v1303 = vpack.c.b16 %v1293, %v1292
        %v1304 = vpack.c.b16 %v1295, %v1294
        %v1305 = vpack.c.b16 %v1297, %v1296
        %1314 = vmatprep.subr.bf16.mxu0 0
        %1315 = vmatpush1.bf16.msra.mxu0 %v1305
        %1316 = vmatprep.subr.bf16.mxu0 0
        %1317 = vmatpush1.bf16.msra.mxu0 %v1304
        %1318 = vmatprep.subr.bf16.mxu0 0
        %1319 = vmatpush1.bf16.msra.mxu0 %v1303
        %1320 = vmatprep.subr.bf16.mxu0 0
        %1321 = vmatpush1.bf16.msra.mxu0 %v1302
        %1322 = vmatprep.subr.bf16.mxu0 0
        %1323 = vmatpush1.bf16.msra.mxu0 %v1301
        %1324 = vmatprep.subr.bf16.mxu0 0
        %1325 = vmatpush1.bf16.msra.mxu0 %v1300
        %1326 = vmatprep.subr.bf16.mxu0 0
        %1327 = vmatpush1.bf16.msra.mxu0 %v1299
        %1328 = vmatprep.subr.bf16.mxu0 0
        %1329 = vmatpush1.bf16.msra.mxu0 %v1298
        %1330 = vmatprep.subr.bf16.mxu0 0
        %1331 = vmatpush2.bf16.msra.mxu0 0
        %1332 = vmatprep.subr.bf16.mxu0 0
        %1333 = vmatpush2.bf16.msra.mxu0 0
        %1334 = vmatprep.subr.bf16.mxu0 0
        %1335 = vmatpush2.bf16.msra.mxu0 0
        %1336 = vmatprep.subr.bf16.mxu0 0
        %1337 = vmatpush2.bf16.msra.mxu0 0
        %1338 = vmatprep.subr.bf16.mxu0 0
        %1339 = vmatpush2.bf16.msra.mxu0 0
        %1340 = vmatprep.subr.bf16.mxu0 0
        %1341 = vmatpush2.bf16.msra.mxu0 0
        %1342 = vmatprep.subr.bf16.mxu0 0
        %1343 = vmatpush2.bf16.msra.mxu0 0
        %1344 = vmatprep.subr.bf16.mxu0 0
        %1345 = vmatpush2.bf16.msra.mxu0 0
        %1346 = vmatprep.mubr.bf16.mxu0 0
        %1347 = vmatmul.mubr.bf16.gmra.mxu0 %v1243
        %v1348 = vpop.f32.mrf.mxu0
        %v1349 = vadd.f32 %v1264, %v1348
        %v1350 = vpop.f32.mrf.mxu0
        %v1351 = vpop.f32.mrf.mxu0
        %v1352 = vpop.f32.mrf.mxu0
        %1353 = vdwg.mxu0
        %v1354 = vadd.f32 %v515, %v1349
        %1355 = vadd.xlane.f32.xlu0 %v1354
        %v1356 = vpop.xlane.xlu0 %1355
        %v1357 = vmul.f32 %v1356, 0.03125
        %v1358 = vsub.f32 %v1354, %v1357
        %v1359 = vlaneseq
        %v1360 = vand.u32 %v1359, 127
        %vm1361 = vcmp.lt.s32.totalorder %v1360, 32
        %v1362 = vsel %vm1361, %v1358, 0.0
        %v1363 = vmul.f32 %v1362, %v1362
        %1364 = vadd.xlane.f32.xlu0 %v1363
        %v1365 = vpop.xlane.xlu0 %1364
        %v1366 = vmul.f32 %v1365, 0.03125
        %v1367 = vadd.f32 %v1366, 1e-05
        %v1368 = vrsqrt.pop %v1367
        %v1369 = vmul.f32 %v1362, %v1368
        %v1371 = vlaneseq
        %v1372 = vshrl.u32 %v1371, 7
        %v1373 = vsub.s32 0, %v1372
        %v1374 = vrot.slane %v778, %v1373
        %v1376 = vmul.f32 %v1369, %v1374
        %v1378 = vlaneseq
        %v1379 = vshrl.u32 %v1378, 7
        %v1380 = vsub.s32 0, %v1379
        %v1381 = vrot.slane %v779, %v1380
        %v1383 = vadd.f32 %v1376, %v1381
        %v1384 = vpack.c.bf16 %v1383, %v1383
        %v1385 = vld [vmem:[#allocation8] sm:$0xf]
        %v1386 = vld [vmem:[#allocation8 + $0x4] sm:$0xf]
        %v1387 = vld [vmem:[#allocation8 + $0x8] sm:$0xf]
        %v1388 = vld [vmem:[#allocation8 + $0xc] sm:$0xf]
        %v1389 = vld [vmem:[#allocation8 + $0x10] sm:$0xf]
        %v1390 = vld [vmem:[#allocation8 + $0x14] sm:$0xf]
        %v1391 = vld [vmem:[#allocation8 + $0x18] sm:$0xf]
        %v1392 = vld [vmem:[#allocation8 + $0x1c] sm:$0xf]
        %v1393 = vld [vmem:[#allocation8 + $0x20] sm:$0xf]
        %v1394 = vld [vmem:[#allocation8 + $0x24] sm:$0xf]
        %v1395 = vld [vmem:[#allocation8 + $0x28] sm:$0xf]
        %v1396 = vld [vmem:[#allocation8 + $0x2c] sm:$0xf]
        %v1397 = vld [vmem:[#allocation8 + $0x30] sm:$0xf]
        %v1398 = vld [vmem:[#allocation8 + $0x34] sm:$0xf]
        %v1399 = vld [vmem:[#allocation8 + $0x38] sm:$0xf]
        %v1400 = vld [vmem:[#allocation8 + $0x3c] sm:$0xf]
        %v1401 = vld [vmem:[%s8] sm:$0x1]
        %v1403 = vlaneseq
        %v1404 = vshrl.u32 %v1403, 7
        %v1405 = vsub.s32 0, %v1404
        %v1406 = vrot.slane %v1401, %v1405
        %v1424 = vunpack.c.l.b16 %v1385
        %v1425 = vunpack.c.l.b16 %v1386
        %v1426 = vunpack.c.l.b16 %v1387
        %v1427 = vunpack.c.l.b16 %v1388
        %v1428 = vunpack.c.l.b16 %v1389
        %v1429 = vunpack.c.l.b16 %v1390
        %v1430 = vunpack.c.l.b16 %v1391
        %v1431 = vunpack.c.l.b16 %v1392
        %v1432 = vunpack.c.l.b16 %v1393
        %v1433 = vunpack.c.l.b16 %v1394
        %v1434 = vunpack.c.l.b16 %v1395
        %v1435 = vunpack.c.l.b16 %v1396
        %v1436 = vunpack.c.l.b16 %v1397
        %v1437 = vunpack.c.l.b16 %v1398
        %v1438 = vunpack.c.l.b16 %v1399
        %v1439 = vunpack.c.l.b16 %v1400
        %v1440 = vpack.c.b16 %v1425, %v1424
        %v1441 = vpack.c.b16 %v1427, %v1426
        %v1442 = vpack.c.b16 %v1429, %v1428
        %v1443 = vpack.c.b16 %v1431, %v1430
        %v1444 = vpack.c.b16 %v1433, %v1432
        %v1445 = vpack.c.b16 %v1435, %v1434
        %v1446 = vpack.c.b16 %v1437, %v1436
        %v1447 = vpack.c.b16 %v1439, %v1438
        %1456 = vmatprep.subr.bf16.mxu0 0
        %1457 = vmatpush1.bf16.msra.mxu0 %v1447
        %1458 = vmatprep.subr.bf16.mxu0 0
        %1459 = vmatpush1.bf16.msra.mxu0 %v1446
        %1460 = vmatprep.subr.bf16.mxu0 0
        %1461 = vmatpush1.bf16.msra.mxu0 %v1445
        %1462 = vmatprep.subr.bf16.mxu0 0
        %1463 = vmatpush1.bf16.msra.mxu0 %v1444
        %1464 = vmatprep.subr.bf16.mxu0 0
        %1465 = vmatpush1.bf16.msra.mxu0 %v1443
        %1466 = vmatprep.subr.bf16.mxu0 0
        %1467 = vmatpush1.bf16.msra.mxu0 %v1442
        %1468 = vmatprep.subr.bf16.mxu0 0
        %1469 = vmatpush1.bf16.msra.mxu0 %v1441
        %1470 = vmatprep.subr.bf16.mxu0 0
        %1471 = vmatpush1.bf16.msra.mxu0 %v1440
        %1472 = vmatprep.subr.bf16.mxu0 0
        %1473 = vmatpush2.bf16.msra.mxu0 0
        %1474 = vmatprep.subr.bf16.mxu0 0
        %1475 = vmatpush2.bf16.msra.mxu0 0
        %1476 = vmatprep.subr.bf16.mxu0 0
        %1477 = vmatpush2.bf16.msra.mxu0 0
        %1478 = vmatprep.subr.bf16.mxu0 0
        %1479 = vmatpush2.bf16.msra.mxu0 0
        %1480 = vmatprep.subr.bf16.mxu0 0
        %1481 = vmatpush2.bf16.msra.mxu0 0
        %1482 = vmatprep.subr.bf16.mxu0 0
        %1483 = vmatpush2.bf16.msra.mxu0 0
        %1484 = vmatprep.subr.bf16.mxu0 0
        %1485 = vmatpush2.bf16.msra.mxu0 0
        %1486 = vmatprep.subr.bf16.mxu0 0
        %1487 = vmatpush2.bf16.msra.mxu0 0
        %1488 = vmatprep.mubr.bf16.mxu0 0
        %1489 = vmatmul.mubr.bf16.gmra.mxu0 %v1384
        %v1490 = vpop.f32.mrf.mxu0
        %v1491 = vadd.f32 %v1406, %v1490
        %v1492 = vpop.f32.mrf.mxu0
        %v1493 = vpop.f32.mrf.mxu0
        %v1494 = vpop.f32.mrf.mxu0
        %1495 = vdwg.mxu0
        %v1496 = vmax.f32 %v1491, 0.0
        %v1497 = vpack.c.bf16 %v1496, %v1496
        %v1498 = vld [vmem:[#allocation10] sm:$0xf]
        %v1499 = vld [vmem:[#allocation10 + $0x4] sm:$0xf]
        %v1500 = vld [vmem:[#allocation10 + $0x8] sm:$0xf]
        %v1501 = vld [vmem:[#allocation10 + $0xc] sm:$0xf]
        %v1502 = vld [vmem:[#allocation10 + $0x10] sm:$0xf]
        %v1503 = vld [vmem:[#allocation10 + $0x14] sm:$0xf]
        %v1504 = vld [vmem:[#allocation10 + $0x18] sm:$0xf]
        %v1505 = vld [vmem:[#allocation10 + $0x1c] sm:$0xf]
        %v1506 = vld [vmem:[#allocation10 + $0x20] sm:$0xf]
        %v1507 = vld [vmem:[#allocation10 + $0x24] sm:$0xf]
        %v1508 = vld [vmem:[#allocation10 + $0x28] sm:$0xf]
        %v1509 = vld [vmem:[#allocation10 + $0x2c] sm:$0xf]
        %v1510 = vld [vmem:[#allocation10 + $0x30] sm:$0xf]
        %v1511 = vld [vmem:[#allocation10 + $0x34] sm:$0xf]
        %v1512 = vld [vmem:[#allocation10 + $0x38] sm:$0xf]
        %v1513 = vld [vmem:[#allocation10 + $0x3c] sm:$0xf]
        %v1515 = vlaneseq
        %v1516 = vshrl.u32 %v1515, 7
        %v1517 = vsub.s32 0, %v1516
        %v1518 = vrot.slane %v783, %v1517
        %v1536 = vunpack.c.l.b16 %v1498
        %v1537 = vunpack.c.l.b16 %v1499
        %v1538 = vunpack.c.l.b16 %v1500
        %v1539 = vunpack.c.l.b16 %v1501
        %v1540 = vunpack.c.l.b16 %v1502
        %v1541 = vunpack.c.l.b16 %v1503
        %v1542 = vunpack.c.l.b16 %v1504
        %v1543 = vunpack.c.l.b16 %v1505
        %v1544 = vunpack.c.l.b16 %v1506
        %v1545 = vunpack.c.l.b16 %v1507
        %v1546 = vunpack.c.l.b16 %v1508
        %v1547 = vunpack.c.l.b16 %v1509
        %v1548 = vunpack.c.l.b16 %v1510
        %v1549 = vunpack.c.l.b16 %v1511
        %v1550 = vunpack.c.l.b16 %v1512
        %v1551 = vunpack.c.l.b16 %v1513
        %v1552 = vpack.c.b16 %v1537, %v1536
        %v1553 = vpack.c.b16 %v1539, %v1538
        %v1554 = vpack.c.b16 %v1541, %v1540
        %v1555 = vpack.c.b16 %v1543, %v1542
        %v1556 = vpack.c.b16 %v1545, %v1544
        %v1557 = vpack.c.b16 %v1547, %v1546
        %v1558 = vpack.c.b16 %v1549, %v1548
        %v1559 = vpack.c.b16 %v1551, %v1550
        %1568 = vmatprep.subr.bf16.mxu0 0
        %1569 = vmatpush1.bf16.msra.mxu0 %v1559
        %1570 = vmatprep.subr.bf16.mxu0 0
        %1571 = vmatpush1.bf16.msra.mxu0 %v1558
        %1572 = vmatprep.subr.bf16.mxu0 0
        %1573 = vmatpush1.bf16.msra.mxu0 %v1557
        %1574 = vmatprep.subr.bf16.mxu0 0
        %1575 = vmatpush1.bf16.msra.mxu0 %v1556
        %1576 = vmatprep.subr.bf16.mxu0 0
        %1577 = vmatpush1.bf16.msra.mxu0 %v1555
        %1578 = vmatprep.subr.bf16.mxu0 0
        %1579 = vmatpush1.bf16.msra.mxu0 %v1554
        %1580 = vmatprep.subr.bf16.mxu0 0
        %1581 = vmatpush1.bf16.msra.mxu0 %v1553
        %1582 = vmatprep.subr.bf16.mxu0 0
        %1583 = vmatpush1.bf16.msra.mxu0 %v1552
        %1584 = vmatprep.subr.bf16.mxu0 0
        %1585 = vmatpush2.bf16.msra.mxu0 0
        %1586 = vmatprep.subr.bf16.mxu0 0
        %1587 = vmatpush2.bf16.msra.mxu0 0
        %1588 = vmatprep.subr.bf16.mxu0 0
        %1589 = vmatpush2.bf16.msra.mxu0 0
        %1590 = vmatprep.subr.bf16.mxu0 0
        %1591 = vmatpush2.bf16.msra.mxu0 0
        %1592 = vmatprep.subr.bf16.mxu0 0
        %1593 = vmatpush2.bf16.msra.mxu0 0
        %1594 = vmatprep.subr.bf16.mxu0 0
        %1595 = vmatpush2.bf16.msra.mxu0 0
        %1596 = vmatprep.subr.bf16.mxu0 0
        %1597 = vmatpush2.bf16.msra.mxu0 0
        %1598 = vmatprep.subr.bf16.mxu0 0
        %1599 = vmatpush2.bf16.msra.mxu0 0
        %1600 = vmatprep.mubr.bf16.mxu0 0
        %1601 = vmatmul.mubr.bf16.gmra.mxu0 %v1497
        %v1602 = vpop.f32.mrf.mxu0
        %v1603 = vadd.f32 %v1518, %v1602
        %v1604 = vpop.f32.mrf.mxu0
        %v1605 = vpop.f32.mrf.mxu0
        %v1606 = vpop.f32.mrf.mxu0
        %1607 = vdwg.mxu0
        %v1608 = vadd.f32 %v1383, %v1603
        %1609 = vadd.xlane.f32.xlu0 %v1608
        %v1610 = vpop.xlane.xlu0 %1609
        %v1611 = vmul.f32 %v1610, 0.03125
        %v1612 = vsub.f32 %v1608, %v1611
        %v1613 = vsel %vm1361, %v1612, 0.0
        %v1614 = vmul.f32 %v1613, %v1613
        %1615 = vadd.xlane.f32.xlu0 %v1614
        %v1616 = vpop.xlane.xlu0 %1615
        %v1617 = vmul.f32 %v1616, 0.03125
        %v1618 = vadd.f32 %v1617, 1e-05
        %v1619 = vrsqrt.pop %v1618
        %v1620 = vmul.f32 %v1613, %v1619
        %v1622 = vlaneseq
        %v1623 = vshrl.u32 %v1622, 7
        %v1624 = vsub.s32 0, %v1623
        %v1625 = vrot.slane %v780, %v1624
        %v1627 = vmul.f32 %v1620, %v1625
        %v1629 = vlaneseq
        %v1630 = vshrl.u32 %v1629, 7
        %v1631 = vsub.s32 0, %v1630
        %v1632 = vrot.slane %v781, %v1631
        %v1634 = vadd.f32 %v1627, %v1632
        %1635 = vst [vmem:[%s513] sm:$0xff] %v1634
        %s1636 = sand.u32 %s318, 1
        %s1637 = scalar_lea.sflag [#allocation4], %s1636
        %s1638 = sand.u32 %s318, 1
        %s1639 = smul.addr %s1638, 8
        %s1640 = scalar_lea.vmem [#allocation11], %s1639
        // Predicated region
        $region93: #{tpu_custom_call.1} parent=71 // pred_check
          %p1641 = pneg %p328
        $region94: #{tpu_custom_call.1} parent=71 // pred_check_branch
          %1643 = sbr.rel (%p1641) target = $region96
        $region95: #{tpu_custom_call.1} parent=71 // pred_region
          %s1645 = ssub.s32 128, 128
          %1646 = vsyncadd %s1637, %s1645
          %s1647 = smul.addr %s32, 128
          %s1648 = scalar_lea.hbm %s13, %s1647
          %s1650 = sshll.u32 %s1640, 4
          %s1651 = int_to_ptr.vmem [resolvable:$true] %s1650
          %1653 = dma.vmem_to_hbm [thread:$0]  %s1651, 128, %s1648, %s1637
        $region96: #{tpu_custom_call.1} parent=71 // pred_fallthru
          _
      $region72: #{tpu_custom_call.1} parent=5 // pred_fallthru
        _
      %p1654 = scmp.le.s32.totalorder 2, %s27
      // Predicated region
      $region97: #{tpu_custom_call.1} parent=5 // pred_check
        %p1655 = pneg %p1654
      $region98: #{tpu_custom_call.1} parent=5 // pred_check_branch
        %1657 = sbr.rel (%p1655) target = $region100
      $region99: #{tpu_custom_call.1} parent=5 // pred_region
        %s1658 = ssub.s32 %s27, 2
        // Predicated region
        $region101: #{tpu_custom_call.1} parent=99 // pred_check
          %p1659 = pneg %p334
        $region102: #{tpu_custom_call.1} parent=99 // pred_check_branch
          %1661 = sbr.rel (%p1659) target = $region104
        $region103: #{tpu_custom_call.1} parent=99 // pred_region
          %s1662 = sand.u32 %s319, 1
          %s1663 = scalar_lea.sflag [#allocation4], %s1662
          %s1664 = sand.u32 %s319, 1
          %s1665 = smul.addr %s1664, 8
          %s1666 = scalar_lea.vmem [#allocation11], %s1665
          %1667 = dma.done %s1663, 128
        $region104: #{tpu_custom_call.1} parent=99 // pred_fallthru
          _
      $region100: #{tpu_custom_call.1} parent=5 // pred_fallthru
        _
    $region6: #{tpu_custom_call.1} parent=1 // loop_footer
      %s31 = sadd.s32 1, %s27
    $region7: #{tpu_custom_call.1} parent=1 // loop_footer_branch
      %26 = sbr.rel target = $region3
    $region8: #{tpu_custom_call.1} parent=1 // loop_exit
      _
    %1668 = vsyncpa [#allocation3], 1
    %s1669 = scalar_lea.sflag [#allocation3], 1
    %1670 = vsyncpa %s1669, 1
    %1671 = vsyncpa [#allocation6], 1
    %1672 = vsyncpa [#allocation9], 1
    %1673 = vsyncpa [#allocation4], 1
    %s1674 = scalar_lea.sflag [#allocation4], 1
    %1675 = vsyncpa %s1674, 1

// kernel: tpu_custom_call.1
$region0: #{tpu_custom_call.1}
  #allocation0 [shape = 'u32[]', space=smem, size = 0x4, offset = 0x4, fixed_abs, tag = 'smem constant byte address 0x4 - core index']
  #allocation1 [shape = 'u32[144,128]{1,0:T(1,128)}', space=vmem, size = 0x12000, scoped, tag = 'internal scratch']
  %s0 = inlined_call_operand.hbm [shape: f32[2,8,128], index: 0, kind: input, shape index: {}]
  %s1 = inlined_call_operand.hbm [shape: bf16[128,384], index: 1, kind: input, shape index: {}]
  %s2 = inlined_call_operand.vmem [shape: f32[1,384], index: 2, kind: input, shape index: {}]
  %s3 = inlined_call_operand.hbm [shape: bf16[128,128], index: 3, kind: input, shape index: {}]
  %s4 = inlined_call_operand.vmem [shape: f32[1,128], index: 4, kind: input, shape index: {}]
  %s5 = inlined_call_operand.vmem [shape: f32[1,128], index: 5, kind: input, shape index: {}]
  %s6 = inlined_call_operand.vmem [shape: f32[1,128], index: 6, kind: input, shape index: {}]
  %s7 = inlined_call_operand.hbm [shape: bf16[128,128], index: 7, kind: input, shape index: {}]
  %s8 = inlined_call_operand.vmem [shape: f32[1,128], index: 8, kind: input, shape index: {}]
  %s9 = inlined_call_operand.hbm [shape: bf16[128,128], index: 9, kind: input, shape index: {}]
  %s10 = inlined_call_operand.vmem [shape: f32[1,128], index: 10, kind: input, shape index: {}]
  %s11 = inlined_call_operand.vmem [shape: f32[1,128], index: 11, kind: input, shape index: {}]
  %s12 = inlined_call_operand.vmem [shape: f32[1,128], index: 12, kind: input, shape index: {}]
  %s13 = inlined_call_operand.hbm [shape: f32[2,8,128], index: 13, kind: output, shape index: {}]
  %s14 = sld [smem:[#allocation0]]
  $region105: #{tpu_custom_call.1} parent=0
    _
  %s16 = ssub.s32 1, %s14
  %s17 = scalar_select 0, %s16, %s14
  $region1: #{tpu_custom_call.1} parent=0
    #allocation2 [shape = 'u8[8192]{0}', space=vmem, size = 0x2000, scoped, tag = 'input window, operand 0']
    #allocation3 [shape = 's32[2]{0}', space=sflag, size = 0x8, scoped, tag = 'scoped memory for tpu_custom_call.1']
    #allocation4 [shape = 's32[2]{0}', space=sflag, size = 0x8, scoped, tag = 'scoped memory for tpu_custom_call.1']
    #allocation5 [shape = 'u8[98304]{0}', space=vmem, size = 0x18000, scoped, tag = 'input window, operand 1, single buffered']
    #allocation6 [shape = 's32[1]{0}', space=sflag, size = 0x4, scoped, tag = 'scoped memory for tpu_custom_call.1']
    #allocation7 [shape = 'u8[32768]{0}', space=vmem, size = 0x8000, scoped, tag = 'input window, operand 3, single buffered']
    #allocation8 [shape = 'u8[32768]{0}', space=vmem, size = 0x8000, scoped, tag = 'input window, operand 7, single buffered']
    #allocation9 [shape = 's32[1]{0}', space=sflag, size = 0x4, scoped, tag = 'scoped memory for tpu_custom_call.1']
    #allocation10 [shape = 'u8[32768]{0}', space=vmem, size = 0x8000, scoped, tag = 'input window, operand 9, single buffered']
    #allocation11 [shape = 'u8[8192]{0}', space=vmem, size = 0x2000, scoped, tag = 'output window, operand 0']
    %18 = vsyncpa [#allocation3], 0
    %s19 = scalar_lea.sflag [#allocation3], 1
    %20 = vsyncpa %s19, 0
    %21 = vsyncpa [#allocation6], 0
    %22 = vsyncpa [#allocation9], 0
    %23 = vsyncpa [#allocation4], 0
    %s24 = scalar_lea.sflag [#allocation4], 1
    %25 = vsyncpa %s24, 0
    loop: start=0, step=1, limit=4
    $region2: #{tpu_custom_call.1} parent=1 // loop_pre_header
      _
    $region3: #{tpu_custom_call.1} parent=1 // loop_header
      %s27 = sphi 0, %s31
      %p28 = scmp.ge.s32.totalorder %s27, 4
      %s37 = sphi 0, %s39
      %s40 = sphi 0, %s37
      %s41 = sphi 0, %s40
      %s57 = sphi 0, %s41
      %s61 = sphi 0, %s61
      %s63 = sphi 0, %s61
      %s64 = sphi 0, %s63
      %s78 = sphi 0, %s64
      %s82 = sphi 0, %s82
      %s84 = sphi 0, %s82
      %s85 = sphi 0, %s84
      %s99 = sphi 0, %s85
      %s103 = sphi 0, %s103
      %s105 = sphi 0, %s103
      %s106 = sphi 0, %s105
      %s120 = sphi 0, %s106
      %s124 = sphi 0, %s124
      %s126 = sphi 0, %s124
      %s127 = sphi 0, %s126
      %s141 = sphi 0, %s127
      %s145 = sphi 0, %s145
      %s147 = sphi 0, %s145
      %s148 = sphi 0, %s147
      %s162 = sphi 0, %s148
      %s166 = sphi 0, %s166
      %s168 = sphi 0, %s166
      %s169 = sphi 0, %s168
      %s183 = sphi 0, %s169
      %s187 = sphi 0, %s187
      %s189 = sphi 0, %s187
      %s190 = sphi 0, %s189
      %s204 = sphi 0, %s190
      %s208 = sphi 0, %s208
      %s210 = sphi 0, %s208
      %s211 = sphi 0, %s210
      %s225 = sphi 0, %s211
      %s229 = sphi 0, %s229
      %s231 = sphi 0, %s229
      %s232 = sphi 0, %s231
      %s246 = sphi 0, %s232
      %s250 = sphi 0, %s250
      %s252 = sphi 0, %s250
      %s253 = sphi 0, %s252
      %s267 = sphi 0, %s253
      %s271 = sphi 0, %s271
      %s273 = sphi 0, %s271
      %s274 = sphi 0, %s273
      %s288 = sphi 0, %s274
      %s292 = sphi 0, %s292
      %s294 = sphi 0, %s292
      %s295 = sphi 0, %s294
      %s309 = sphi 0, %s295
      %s315 = sphi 0, %s317
      %s318 = sphi 0, %s315
      %s319 = sphi 0, %s318
      %s335 = sphi 0, %s319
    $region4: #{tpu_custom_call.1} parent=1 // loop_header_branch
      %30 = sbr.rel (%p28) target = $region8
    $region5: #{tpu_custom_call.1} parent=1 // loop_body
      %s32 = ssub.s32 %s27, 1
      %s33 = ssub.s32 %s27, 2
      %s34 = sadd.s32 %s27, 1
      %s35 = ssub.s32 %s27, %s34
      %p36 = scmp.eq.s32.totalorder %s35, 0
      %s38 = sadd.s32 %s37, 1
      %s39 = scalar_select %p36, %s37, %s38
      %p42 = pneg %p36
      %p43 = scmp.eq.s32.totalorder %s27, 1
      %p44 = por %p42, %p43
      %p45 = scmp.ne.s32.totalorder %s37, %s40
      %p46 = scmp.eq.s32.totalorder %s27, 0
      %p47 = por %p45, %p46
      %p48 = scmp.ne.s32.totalorder %s37, %s40
      %p49 = scmp.eq.s32.totalorder %s32, 1
      %p50 = por %p48, %p49
      %p51 = scmp.ne.s32.totalorder %s40, %s41
      %p52 = scmp.eq.s32.totalorder %s32, 0
      %p53 = por %p51, %p52
      %p54 = scmp.ne.s32.totalorder %s40, %s41
      %p55 = scmp.eq.s32.totalorder %s33, 1
      %p56 = por %p54, %p55
      %p58 = scmp.ne.s32.totalorder %s41, %s57
      %p59 = scmp.eq.s32.totalorder %s33, 0
      %p60 = por %p58, %p59
      %s62 = sadd.s32 %s61, 1
      %p65 = scmp.eq.s32.totalorder %s27, 1
      %p66 = scmp.ne.s32.totalorder %s61, %s63
      %p67 = scmp.eq.s32.totalorder %s27, 0
      %p68 = por %p66, %p67
      %p69 = scmp.ne.s32.totalorder %s61, %s63
      %p70 = scmp.eq.s32.totalorder %s32, 1
      %p71 = por %p69, %p70
      %p72 = scmp.ne.s32.totalorder %s63, %s64
      %p73 = scmp.eq.s32.totalorder %s32, 0
      %p74 = por %p72, %p73
      %p75 = scmp.ne.s32.totalorder %s63, %s64
      %p76 = scmp.eq.s32.totalorder %s33, 1
      %p77 = por %p75, %p76
      %p79 = scmp.ne.s32.totalorder %s64, %s78
      %p80 = scmp.eq.s32.totalorder %s33, 0
      %p81 = por %p79, %p80
      %s83 = sadd.s32 %s82, 1
      %p86 = scmp.eq.s32.totalorder %s27, 1
      %p87 = scmp.ne.s32.totalorder %s82, %s84
      %p88 = scmp.eq.s32.totalorder %s27, 0
      %p89 = por %p87, %p88
      %p90 = scmp.ne.s32.totalorder %s82, %s84
      %p91 = scmp.eq.s32.totalorder %s32, 1
      %p92 = por %p90, %p91
      %p93 = scmp.ne.s32.totalorder %s84, %s85
      %p94 = scmp.eq.s32.totalorder %s32, 0
      %p95 = por %p93, %p94
      %p96 = scmp.ne.s32.totalorder %s84, %s85
      %p97 = scmp.eq.s32.totalorder %s33, 1
      %p98 = por %p96, %p97
      %p100 = scmp.ne.s32.totalorder %s85, %s99
      %p101 = scmp.eq.s32.totalorder %s33, 0
      %p102 = por %p100, %p101
      %s104 = sadd.s32 %s103, 1
      %p107 = scmp.eq.s32.totalorder %s27, 1
      %p108 = scmp.ne.s32.totalorder %s103, %s105
      %p109 = scmp.eq.s32.totalorder %s27, 0
      %p110 = por %p108, %p109
      %p111 = scmp.ne.s32.totalorder %s103, %s105
      %p112 = scmp.eq.s32.totalorder %s32, 1
      %p113 = por %p111, %p112
      %p114 = scmp.ne.s32.totalorder %s105, %s106
      %p115 = scmp.eq.s32.totalorder %s32, 0
      %p116 = por %p114, %p115
      %p117 = scmp.ne.s32.totalorder %s105, %s106
      %p118 = scmp.eq.s32.totalorder %s33, 1
      %p119 = por %p117, %p118
      %p121 = scmp.ne.s32.totalorder %s106, %s120
      %p122 = scmp.eq.s32.totalorder %s33, 0
      %p123 = por %p121, %p122
      %s125 = sadd.s32 %s124, 1
      %p128 = scmp.eq.s32.totalorder %s27, 1
      %p129 = scmp.ne.s32.totalorder %s124, %s126
      %p130 = scmp.eq.s32.totalorder %s27, 0
      %p131 = por %p129, %p130
      %p132 = scmp.ne.s32.totalorder %s124, %s126
      %p133 = scmp.eq.s32.totalorder %s32, 1
      %p134 = por %p132, %p133
      %p135 = scmp.ne.s32.totalorder %s126, %s127
      %p136 = scmp.eq.s32.totalorder %s32, 0
      %p137 = por %p135, %p136
      %p138 = scmp.ne.s32.totalorder %s126, %s127
      %p139 = scmp.eq.s32.totalorder %s33, 1
      %p140 = por %p138, %p139
      %p142 = scmp.ne.s32.totalorder %s127, %s141
      %p143 = scmp.eq.s32.totalorder %s33, 0
      %p144 = por %p142, %p143
      %s146 = sadd.s32 %s145, 1
      %p149 = scmp.eq.s32.totalorder %s27, 1
      %p150 = scmp.ne.s32.totalorder %s145, %s147
      %p151 = scmp.eq.s32.totalorder %s27, 0
      %p152 = por %p150, %p151
      %p153 = scmp.ne.s32.totalorder %s145, %s147
      %p154 = scmp.eq.s32.totalorder %s32, 1
      %p155 = por %p153, %p154
      %p156 = scmp.ne.s32.totalorder %s147, %s148
      %p157 = scmp.eq.s32.totalorder %s32, 0
      %p158 = por %p156, %p157
      %p159 = scmp.ne.s32.totalorder %s147, %s148
      %p160 = scmp.eq.s32.totalorder %s33, 1
      %p161 = por %p159, %p160
      %p163 = scmp.ne.s32.totalorder %s148, %s162
      %p164 = scmp.eq.s32.totalorder %s33, 0
      %p165 = por %p163, %p164
      %s167 = sadd.s32 %s166, 1
      %p170 = scmp.eq.s32.totalorder %s27, 1
      %p171 = scmp.ne.s32.totalorder %s166, %s168
      %p172 = scmp.eq.s32.totalorder %s27, 0
      %p173 = por %p171, %p172
      %p174 = scmp.ne.s32.totalorder %s166, %s168
      %p175 = scmp.eq.s32.totalorder %s32, 1
      %p176 = por %p174, %p175
      %p177 = scmp.ne.s32.totalorder %s168, %s169
      %p178 = scmp.eq.s32.totalorder %s32, 0
      %p179 = por %p177, %p178
      %p180 = scmp.ne.s32.totalorder %s168, %s169
      %p181 = scmp.eq.s32.totalorder %s33, 1
      %p182 = por %p180, %p181
      %p184 = scmp.ne.s32.totalorder %s169, %s183
      %p185 = scmp.eq.s32.totalorder %s33, 0
      %p186 = por %p184, %p185
      %s188 = sadd.s32 %s187, 1
      %p191 = scmp.eq.s32.totalorder %s27, 1
      %p192 = scmp.ne.s32.totalorder %s187, %s189
      %p193 = scmp.eq.s32.totalorder %s27, 0
      %p194 = por %p192, %p193
      %p195 = scmp.ne.s32.totalorder %s187, %s189
      %p196 = scmp.eq.s32.totalorder %s32, 1
      %p197 = por %p195, %p196
      %p198 = scmp.ne.s32.totalorder %s189, %s190
      %p199 = scmp.eq.s32.totalorder %s32, 0
      %p200 = por %p198, %p199
      %p201 = scmp.ne.s32.totalorder %s189, %s190
      %p202 = scmp.eq.s32.totalorder %s33, 1
      %p203 = por %p201, %p202
      %p205 = scmp.ne.s32.totalorder %s190, %s204
      %p206 = scmp.eq.s32.totalorder %s33, 0
      %p207 = por %p205, %p206
      %s209 = sadd.s32 %s208, 1
      %p212 = scmp.eq.s32.totalorder %s27, 1
      %p213 = scmp.ne.s32.totalorder %s208, %s210
      %p214 = scmp.eq.s32.totalorder %s27, 0
      %p215 = por %p213, %p214
      %p216 = scmp.ne.s32.totalorder %s208, %s210
      %p217 = scmp.eq.s32.totalorder %s32, 1
      %p218 = por %p216, %p217
      %p219 = scmp.ne.s32.totalorder %s210, %s211
      %p220 = scmp.eq.s32.totalorder %s32, 0
      %p221 = por %p219, %p220
      %p222 = scmp.ne.s32.totalorder %s210, %s211
      %p223 = scmp.eq.s32.totalorder %s33, 1
      %p224 = por %p222, %p223
      %p226 = scmp.ne.s32.totalorder %s211, %s225
      %p227 = scmp.eq.s32.totalorder %s33, 0
      %p228 = por %p226, %p227
      %s230 = sadd.s32 %s229, 1
      %p233 = scmp.eq.s32.totalorder %s27, 1
      %p234 = scmp.ne.s32.totalorder %s229, %s231
      %p235 = scmp.eq.s32.totalorder %s27, 0
      %p236 = por %p234, %p235
      %p237 = scmp.ne.s32.totalorder %s229, %s231
      %p238 = scmp.eq.s32.totalorder %s32, 1
      %p239 = por %p237, %p238
      %p240 = scmp.ne.s32.totalorder %s231, %s232
      %p241 = scmp.eq.s32.totalorder %s32, 0
      %p242 = por %p240, %p241
      %p243 = scmp.ne.s32.totalorder %s231, %s232
      %p244 = scmp.eq.s32.totalorder %s33, 1
      %p245 = por %p243, %p244
      %p247 = scmp.ne.s32.totalorder %s232, %s246
      %p248 = scmp.eq.s32.totalorder %s33, 0
      %p249 = por %p247, %p248
      %s251 = sadd.s32 %s250, 1
      %p254 = scmp.eq.s32.totalorder %s27, 1
      %p255 = scmp.ne.s32.totalorder %s250, %s252
      %p256 = scmp.eq.s32.totalorder %s27, 0
      %p257 = por %p255, %p256
      %p258 = scmp.ne.s32.totalorder %s250, %s252
      %p259 = scmp.eq.s32.totalorder %s32, 1
      %p260 = por %p258, %p259
      %p261 = scmp.ne.s32.totalorder %s252, %s253
      %p262 = scmp.eq.s32.totalorder %s32, 0
      %p263 = por %p261, %p262
      %p264 = scmp.ne.s32.totalorder %s252, %s253
      %p265 = scmp.eq.s32.totalorder %s33, 1
      %p266 = por %p264, %p265
      %p268 = scmp.ne.s32.totalorder %s253, %s267
      %p269 = scmp.eq.s32.totalorder %s33, 0
      %p270 = por %p268, %p269
      %s272 = sadd.s32 %s271, 1
      %p275 = scmp.eq.s32.totalorder %s27, 1
      %p276 = scmp.ne.s32.totalorder %s271, %s273
      %p277 = scmp.eq.s32.totalorder %s27, 0
      %p278 = por %p276, %p277
      %p279 = scmp.ne.s32.totalorder %s271, %s273
      %p280 = scmp.eq.s32.totalorder %s32, 1
      %p281 = por %p279, %p280
      %p282 = scmp.ne.s32.totalorder %s273, %s274
      %p283 = scmp.eq.s32.totalorder %s32, 0
      %p284 = por %p282, %p283
      %p285 = scmp.ne.s32.totalorder %s273, %s274
      %p286 = scmp.eq.s32.totalorder %s33, 1
      %p287 = por %p285, %p286
      %p289 = scmp.ne.s32.totalorder %s274, %s288
      %p290 = scmp.eq.s32.totalorder %s33, 0
      %p291 = por %p289, %p290
      %s293 = sadd.s32 %s292, 1
      %p296 = scmp.eq.s32.totalorder %s27, 1
      %p297 = scmp.ne.s32.totalorder %s292, %s294
      %p298 = scmp.eq.s32.totalorder %s27, 0
      %p299 = por %p297, %p298
      %p300 = scmp.ne.s32.totalorder %s292, %s294
      %p301 = scmp.eq.s32.totalorder %s32, 1
      %p302 = por %p300, %p301
      %p303 = scmp.ne.s32.totalorder %s294, %s295
      %p304 = scmp.eq.s32.totalorder %s32, 0
      %p305 = por %p303, %p304
      %p306 = scmp.ne.s32.totalorder %s294, %s295
      %p307 = scmp.eq.s32.totalorder %s33, 1
      %p308 = por %p306, %p307
      %p310 = scmp.ne.s32.totalorder %s295, %s309
      %p311 = scmp.eq.s32.totalorder %s33, 0
      %p312 = por %p310, %p311
      %s313 = ssub.s32 %s27, %s34
      %p314 = scmp.eq.s32.totalorder %s313, 0
      %s316 = sadd.s32 %s315, 1
      %s317 = scalar_select %p314, %s315, %s316
      %p320 = pneg %p314
      %p321 = scmp.eq.s32.totalorder %s27, 1
      %p322 = por %p320, %p321
      %p323 = scmp.ne.s32.totalorder %s315, %s318
      %p324 = scmp.eq.s32.totalorder %s27, 0
      %p325 = por %p323, %p324
      %p326 = scmp.ne.s32.totalorder %s315, %s318
      %p327 = scmp.eq.s32.totalorder %s32, 1
      %p328 = por %p326, %p327
      %p329 = scmp.ne.s32.totalorder %s318, %s319
      %p330 = scmp.eq.s32.totalorder %s32, 0
      %p331 = por %p329, %p330
      %p332 = scmp.ne.s32.totalorder %s318, %s319
      %p333 = scmp.eq.s32.totalorder %s33, 1
      %p334 = por %p332, %p333
      %p336 = scmp.ne.s32.totalorder %s319, %s335
      %p337 = scmp.eq.s32.totalorder %s33, 0
      %p338 = por %p336, %p337
      %p339 = scmp.le.s32.totalorder 1, %s27
      %p340 = scmp.lt.s32.totalorder %s27, 3
      %p341 = pnand %p339, %p340
      %p342 = pneg %p341
      // Predicated region
      $region9: #{tpu_custom_call.1} parent=5 // pred_check
        _
      $region10: #{tpu_custom_call.1} parent=5 // pred_check_branch
        %344 = sbr.rel (%p341) target = $region12
      $region11: #{tpu_custom_call.1} parent=5 // pred_region
        %s345 = ssub.s32 %s27, 1
        // Predicated region
        $region13: #{tpu_custom_call.1} parent=11 // pred_check
          %p346 = pneg %p74
        $region14: #{tpu_custom_call.1} parent=11 // pred_check_branch
          %348 = sbr.rel (%p346) target = $region16
        $region15: #{tpu_custom_call.1} parent=11 // pred_region
          %s350 = ssub.s32 3072, 3072
          %351 = vsyncadd [#allocation6], %s350
          %s352 = sshll.u32 [#allocation5], 4
          %s353 = int_to_ptr.vmem [resolvable:$true] %s352
          %358 = dma.hbm_to_vmem [thread:$0]  %s1, 3072, %s353, [#allocation6], 192, 192, 12
        $region16: #{tpu_custom_call.1} parent=11 // pred_fallthru
          _
        // Predicated region
        $region17: #{tpu_custom_call.1} parent=11 // pred_check
          %p359 = pneg %p95
        $region18: #{tpu_custom_call.1} parent=11 // pred_check_branch
          %361 = sbr.rel (%p359) target = $region20
        $region19: #{tpu_custom_call.1} parent=11 // pred_region
          _
        $region20: #{tpu_custom_call.1} parent=11 // pred_fallthru
          _
        // Predicated region
        $region21: #{tpu_custom_call.1} parent=11 // pred_check
          %p362 = pneg %p116
        $region22: #{tpu_custom_call.1} parent=11 // pred_check_branch
          %364 = sbr.rel (%p362) target = $region24
        $region23: #{tpu_custom_call.1} parent=11 // pred_region
          %s366 = ssub.s32 1024, 1024
          %367 = vsyncadd [#allocation6], %s366
          %s368 = sshll.u32 [#allocation7], 4
          %s369 = int_to_ptr.vmem [resolvable:$true] %s368
          %374 = dma.hbm_to_vmem [thread:$0]  %s3, 1024, %s369, [#allocation6], 64, 64, 4
        $region24: #{tpu_custom_call.1} parent=11 // pred_fallthru
          _
        // Predicated region
        $region25: #{tpu_custom_call.1} parent=11 // pred_check
          %p375 = pneg %p137
        $region26: #{tpu_custom_call.1} parent=11 // pred_check_branch
          %377 = sbr.rel (%p375) target = $region28
        $region27: #{tpu_custom_call.1} parent=11 // pred_region
          _
        $region28: #{tpu_custom_call.1} parent=11 // pred_fallthru
          _
        // Predicated region
        $region29: #{tpu_custom_call.1} parent=11 // pred_check
          %p378 = pneg %p158
        $region30: #{tpu_custom_call.1} parent=11 // pred_check_branch
          %380 = sbr.rel (%p378) target = $region32
        $region31: #{tpu_custom_call.1} parent=11 // pred_region
          _
        $region32: #{tpu_custom_call.1} parent=11 // pred_fallthru
          _
        // Predicated region
        $region33: #{tpu_custom_call.1} parent=11 // pred_check
          %p381 = pneg %p179
        $region34: #{tpu_custom_call.1} parent=11 // pred_check_branch
          %383 = sbr.rel (%p381) target = $region36
        $region35: #{tpu_custom_call.1} parent=11 // pred_region
          _
        $region36: #{tpu_custom_call.1} parent=11 // pred_fallthru
          _
        // Predicated region
        $region37: #{tpu_custom_call.1} parent=11 // pred_check
          %p384 = pneg %p200
        $region38: #{tpu_custom_call.1} parent=11 // pred_check_branch
          %386 = sbr.rel (%p384) target = $region40
        $region39: #{tpu_custom_call.1} parent=11 // pred_region
          %s388 = ssub.s32 1024, 1024
          %389 = vsyncadd [#allocation9], %s388
          %s390 = sshll.u32 [#allocation8], 4
          %s391 = int_to_ptr.vmem [resolvable:$true] %s390
          %396 = dma.hbm_to_vmem [thread:$0]  %s7, 1024, %s391, [#allocation9], 64, 64, 4
        $region40: #{tpu_custom_call.1} parent=11 // pred_fallthru
          _
        // Predicated region
        $region41: #{tpu_custom_call.1} parent=11 // pred_check
          %p397 = pneg %p221
        $region42: #{tpu_custom_call.1} parent=11 // pred_check_branch
          %399 = sbr.rel (%p397) target = $region44
        $region43: #{tpu_custom_call.1} parent=11 // pred_region
          _
        $region44: #{tpu_custom_call.1} parent=11 // pred_fallthru
          _
        // Predicated region
        $region45: #{tpu_custom_call.1} parent=11 // pred_check
          %p400 = pneg %p242
        $region46: #{tpu_custom_call.1} parent=11 // pred_check_branch
          %402 = sbr.rel (%p400) target = $region48
        $region47: #{tpu_custom_call.1} parent=11 // pred_region
          %s404 = ssub.s32 1024, 1024
          %405 = vsyncadd [#allocation9], %s404
          %s406 = sshll.u32 [#allocation10], 4
          %s407 = int_to_ptr.vmem [resolvable:$true] %s406
          %412 = dma.hbm_to_vmem [thread:$0]  %s9, 1024, %s407, [#allocation9], 64, 64, 4
        $region48: #{tpu_custom_call.1} parent=11 // pred_fallthru
          _
        // Predicated region
        $region49: #{tpu_custom_call.1} parent=11 // pred_check
          %p413 = pneg %p263
        $region50: #{tpu_custom_call.1} parent=11 // pred_check_branch
          %415 = sbr.rel (%p413) target = $region52
        $region51: #{tpu_custom_call.1} parent=11 // pred_region
          _
        $region52: #{tpu_custom_call.1} parent=11 // pred_fallthru
          _
        // Predicated region
        $region53: #{tpu_custom_call.1} parent=11 // pred_check
          %p416 = pneg %p284
        $region54: #{tpu_custom_call.1} parent=11 // pred_check_branch
          %418 = sbr.rel (%p416) target = $region56
        $region55: #{tpu_custom_call.1} parent=11 // pred_region
          _
        $region56: #{tpu_custom_call.1} parent=11 // pred_fallthru
          _
        // Predicated region
        $region57: #{tpu_custom_call.1} parent=11 // pred_check
          %p419 = pneg %p305
        $region58: #{tpu_custom_call.1} parent=11 // pred_check_branch
          %421 = sbr.rel (%p419) target = $region60
        $region59: #{tpu_custom_call.1} parent=11 // pred_region
          _
        $region60: #{tpu_custom_call.1} parent=11 // pred_fallthru
          _
      $region12: #{tpu_custom_call.1} parent=5 // pred_fallthru
        _
      %p422 = scmp.lt.s32.totalorder %s27, 2
      // Predicated region
      $region61: #{tpu_custom_call.1} parent=5 // pred_check
        %p423 = pneg %p422
      $region62: #{tpu_custom_call.1} parent=5 // pred_check_branch
        %425 = sbr.rel (%p423) target = $region64
      $region63: #{tpu_custom_call.1} parent=5 // pred_region
        // Predicated region
        $region65: #{tpu_custom_call.1} parent=63 // pred_check
          %p426 = pneg %p47
        $region66: #{tpu_custom_call.1} parent=63 // pred_check_branch
          %428 = sbr.rel (%p426) target = $region68
        $region67: #{tpu_custom_call.1} parent=63 // pred_region
          %s429 = sand.u32 %s37, 1
          %s430 = scalar_lea.sflag [#allocation3], %s429
          %s431 = sand.u32 %s37, 1
          %s432 = smul.addr %s431, 8
          %s433 = scalar_lea.vmem [#allocation2], %s432
          %s435 = ssub.s32 128, 128
          %436 = vsyncadd %s430, %s435
          %s437 = smul.addr %s27, 128
          %s438 = scalar_lea.hbm %s0, %s437
          %s440 = sshll.u32 %s433, 4
          %s441 = int_to_ptr.vmem [resolvable:$true] %s440
          %443 = dma.hbm_to_vmem [thread:$0]  %s438, 128, %s441, %s430
        $region68: #{tpu_custom_call.1} parent=63 // pred_fallthru
          _
      $region64: #{tpu_custom_call.1} parent=5 // pred_fallthru
        _
      %p444 = scmp.le.s32.totalorder 1, %s27
      %p445 = scmp.lt.s32.totalorder %s27, 3
      %p446 = pnand %p444, %p445
      %p447 = pneg %p446
      // Predicated region
      $region69: #{tpu_custom_call.1} parent=5 // pred_check
        _
      $region70: #{tpu_custom_call.1} parent=5 // pred_check_branch
        %449 = sbr.rel (%p446) target = $region72
      $region71: #{tpu_custom_call.1} parent=5 // pred_region
        %s450 = ssub.s32 %s27, 1
        %s451 = sand.u32 %s40, 1
        %s452 = scalar_lea.sflag [#allocation3], %s451
        %s453 = sand.u32 %s40, 1
        %s454 = smul.addr %s453, 8
        %s455 = scalar_lea.vmem [#allocation2], %s454
        // Predicated region
        $region73: #{tpu_custom_call.1} parent=71 // pred_check
          %p456 = pneg %p53
        $region74: #{tpu_custom_call.1} parent=71 // pred_check_branch
          %458 = sbr.rel (%p456) target = $region76
        $region75: #{tpu_custom_call.1} parent=71 // pred_region
          %459 = dma.done %s452, 128
        $region76: #{tpu_custom_call.1} parent=71 // pred_fallthru
          _
        // Predicated region
        $region77: #{tpu_custom_call.1} parent=71 // pred_check
          %p460 = pneg %p74
        $region78: #{tpu_custom_call.1} parent=71 // pred_check_branch
          %462 = sbr.rel (%p460) target = $region80
        $region79: #{tpu_custom_call.1} parent=71 // pred_region
          %463 = dma.done [#allocation6], 3072
        $region80: #{tpu_custom_call.1} parent=71 // pred_fallthru
          _
        // Predicated region
        $region81: #{tpu_custom_call.1} parent=71 // pred_check
          %p464 = pneg %p116
        $region82: #{tpu_custom_call.1} parent=71 // pred_check_branch
          %466 = sbr.rel (%p464) target = $region84
        $region83: #{tpu_custom_call.1} parent=71 // pred_region
          %467 = dma.done [#allocation6], 1024
        $region84: #{tpu_custom_call.1} parent=71 // pred_fallthru
          _
        // Predicated region
        $region85: #{tpu_custom_call.1} parent=71 // pred_check
          %p468 = pneg %p200
        $region86: #{tpu_custom_call.1} parent=71 // pred_check_branch
          %470 = sbr.rel (%p468) target = $region88
        $region87: #{tpu_custom_call.1} parent=71 // pred_region
          %471 = dma.done [#allocation9], 1024
        $region88: #{tpu_custom_call.1} parent=71 // pred_fallthru
          _
        // Predicated region
        $region89: #{tpu_custom_call.1} parent=71 // pred_check
          %p472 = pneg %p242
        $region90: #{tpu_custom_call.1} parent=71 // pred_check_branch
          %474 = sbr.rel (%p472) target = $region92
        $region91: #{tpu_custom_call.1} parent=71 // pred_region
          %475 = dma.done [#allocation9], 1024
        $region92: #{tpu_custom_call.1} parent=71 // pred_fallthru
          _
        %s476 = sand.u32 %s40, 1
        %s477 = scalar_lea.sflag [#allocation3], %s476
        %s478 = sand.u32 %s40, 1
        %s479 = smul.addr %s478, 8
        %s480 = scalar_lea.vmem [#allocation2], %s479
        %p481 = pneg %p53
        %p482 = pneg %p50
        %p483 = pneg %p74
        %p484 = pneg %p71
        %p485 = pneg %p95
        %p486 = pneg %p92
        %p487 = pneg %p116
        %p488 = pneg %p113
        %p489 = pneg %p137
        %p490 = pneg %p134
        %p491 = pneg %p158
        %p492 = pneg %p155
        %p493 = pneg %p179
        %p494 = pneg %p176
        %p495 = pneg %p200
        %p496 = pneg %p197
        %p497 = pneg %p221
        %p498 = pneg %p218
        %p499 = pneg %p242
        %p500 = pneg %p239
        %p501 = pneg %p263
        %p502 = pneg %p260
        %p503 = pneg %p284
        %p504 = pneg %p281
        %p505 = pneg %p305
        %p506 = pneg %p302
        %p507 = pneg %p331
        %p508 = pneg %p328
        %s509 = sand.u32 %s318, 1
        %s510 = scalar_lea.sflag [#allocation4], %s509
        %s511 = sand.u32 %s318, 1
        %s512 = smul.addr %s511, 8
        %s513 = scalar_lea.vmem [#allocation11], %s512
        %v515 = vld [vmem:[%s455] sm:$0xff]
        %v516 = vpack.c.bf16 %v515, %v515
        %v517 = vld [vmem:[#allocation5] sm:$0xff]
        %v518 = vld [vmem:[#allocation5 + $0x8] sm:$0xf]
        %v519 = vld [vmem:[#allocation5 + $0xc] sm:$0xff]
        %v520 = vld [vmem:[#allocation5 + $0x14] sm:$0xf]
        %v521 = vld [vmem:[#allocation5 + $0x18] sm:$0xff]
        %v522 = vld [vmem:[#allocation5 + $0x20] sm:$0xf]
        %v523 = vld [vmem:[#allocation5 + $0x24] sm:$0xff]
        %v524 = vld [vmem:[#allocation5 + $0x2c] sm:$0xf]
        %v525 = vld [vmem:[#allocation5 + $0x30] sm:$0xff]
        %v526 = vld [vmem:[#allocation5 + $0x38] sm:$0xf]
        %v527 = vld [vmem:[#allocation5 + $0x3c] sm:$0xff]
        %v528 = vld [vmem:[#allocation5 + $0x44] sm:$0xf]
        %v529 = vld [vmem:[#allocation5 + $0x48] sm:$0xff]
        %v530 = vld [vmem:[#allocation5 + $0x50] sm:$0xf]
        %v531 = vld [vmem:[#allocation5 + $0x54] sm:$0xff]
        %v532 = vld [vmem:[#allocation5 + $0x5c] sm:$0xf]
        %v533 = vld [vmem:[#allocation5 + $0x60] sm:$0xff]
        %v534 = vld [vmem:[#allocation5 + $0x68] sm:$0xf]
        %v535 = vld [vmem:[#allocation5 + $0x6c] sm:$0xff]
        %v536 = vld [vmem:[#allocation5 + $0x74] sm:$0xf]
        %v537 = vld [vmem:[#allocation5 + $0x78] sm:$0xff]
        %v538 = vld [vmem:[#allocation5 + $0x80] sm:$0xf]
        %v539 = vld [vmem:[#allocation5 + $0x84] sm:$0xff]
        %v540 = vld [vmem:[#allocation5 + $0x8c] sm:$0xf]
        %v541 = vld [vmem:[#allocation5 + $0x90] sm:$0xff]
        %v542 = vld [vmem:[#allocation5 + $0x98] sm:$0xf]
        %v543 = vld [vmem:[#allocation5 + $0x9c] sm:$0xff]
        %v544 = vld [vmem:[#allocation5 + $0xa4] sm:$0xf]
        %v545 = vld [vmem:[#allocation5 + $0xa8] sm:$0xff]
        %v546 = vld [vmem:[#allocation5 + $0xb0] sm:$0xf]
        %v547 = vld [vmem:[#allocation5 + $0xb4] sm:$0xff]
        %v548 = vld [vmem:[#allocation5 + $0xbc] sm:$0xf]
        %v549 = vld [vmem:[%s2] sm:$0x7]
        %v551 = vlaneseq
        %v552 = vshrl.u32 %v551, 7
        %v553 = vsub.s32 0, %v552
        %v554 = vrot.slane %v549, %v553
        %v555 = vlaneseq
        %v556 = vshrl.u32 %v555, 7
        %v557 = vsub.s32 1, %v556
        %v558 = vrot.slane %v549, %v557
        %v559 = vlaneseq
        %v560 = vshrl.u32 %v559, 7
        %v561 = vsub.s32 2, %v560
        %v562 = vrot.slane %v549, %v561
        %v598 = vunpack.c.l.b16 %v517
        %v599 = vunpack.c.h.b16 %v517
        %v600 = vunpack.c.l.b16 %v518
        %v601 = vunpack.c.l.b16 %v519
        %v602 = vunpack.c.h.b16 %v519
        %v603 = vunpack.c.l.b16 %v520
        %v604 = vunpack.c.l.b16 %v521
        %v605 = vunpack.c.h.b16 %v521
        %v606 = vunpack.c.l.b16 %v522
        %v607 = vunpack.c.l.b16 %v523
        %v608 = vunpack.c.h.b16 %v523
        %v609 = vunpack.c.l.b16 %v524
        %v610 = vunpack.c.l.b16 %v525
        %v611 = vunpack.c.h.b16 %v525
        %v612 = vunpack.c.l.b16 %v526
        %v613 = vunpack.c.l.b16 %v527
        %v614 = vunpack.c.h.b16 %v527
        %v615 = vunpack.c.l.b16 %v528
        %v616 = vunpack.c.l.b16 %v529
        %v617 = vunpack.c.h.b16 %v529
        %v618 = vunpack.c.l.b16 %v530
        %v619 = vunpack.c.l.b16 %v531
        %v620 = vunpack.c.h.b16 %v531
        %v621 = vunpack.c.l.b16 %v532
        %v622 = vunpack.c.l.b16 %v533
        %v623 = vunpack.c.h.b16 %v533
        %v624 = vunpack.c.l.b16 %v534
        %v625 = vunpack.c.l.b16 %v535
        %v626 = vunpack.c.h.b16 %v535
        %v627 = vunpack.c.l.b16 %v536
        %v628 = vunpack.c.l.b16 %v537
        %v629 = vunpack.c.h.b16 %v537
        %v630 = vunpack.c.l.b16 %v538
        %v631 = vunpack.c.l.b16 %v539
        %v632 = vunpack.c.h.b16 %v539
        %v633 = vunpack.c.l.b16 %v540
        %v634 = vunpack.c.l.b16 %v541
        %v635 = vunpack.c.h.b16 %v541
        %v636 = vunpack.c.l.b16 %v542
        %v637 = vunpack.c.l.b16 %v543
        %v638 = vunpack.c.h.b16 %v543
        %v639 = vunpack.c.l.b16 %v544
        %v640 = vunpack.c.l.b16 %v545
        %v641 = vunpack.c.h.b16 %v545
        %v642 = vunpack.c.l.b16 %v546
        %v643 = vunpack.c.l.b16 %v547
        %v644 = vunpack.c.h.b16 %v547
        %v645 = vunpack.c.l.b16 %v548
        %v646 = vpack.c.b16 %v601, %v598
        %v647 = vpack.c.b16 %v602, %v599
        %v648 = vpack.c.b16 %v603, %v600
        %v649 = vpack.c.b16 %v607, %v604
        %v650 = vpack.c.b16 %v608, %v605
        %v651 = vpack.c.b16 %v609, %v606
        %v652 = vpack.c.b16 %v613, %v610
        %v653 = vpack.c.b16 %v614, %v611
        %v654 = vpack.c.b16 %v615, %v612
        %v655 = vpack.c.b16 %v619, %v616
        %v656 = vpack.c.b16 %v620, %v617
        %v657 = vpack.c.b16 %v621, %v618
        %v658 = vpack.c.b16 %v625, %v622
        %v659 = vpack.c.b16 %v626, %v623
        %v660 = vpack.c.b16 %v627, %v624
        %v661 = vpack.c.b16 %v631, %v628
        %v662 = vpack.c.b16 %v632, %v629
        %v663 = vpack.c.b16 %v633, %v630
        %v664 = vpack.c.b16 %v637, %v634
        %v665 = vpack.c.b16 %v638, %v635
        %v666 = vpack.c.b16 %v639, %v636
        %v667 = vpack.c.b16 %v643, %v640
        %v668 = vpack.c.b16 %v644, %v641
        %v669 = vpack.c.b16 %v645, %v642
        %694 = vmatprep.subr.bf16.mxu0 %v668
        %695 = vmatpush1.bf16.msra.mxu0 %v667
        %696 = vmatprep.subr.bf16.mxu0 %v665
        %697 = vmatpush1.bf16.msra.mxu0 %v664
        %698 = vmatprep.subr.bf16.mxu0 %v662
        %699 = vmatpush1.bf16.msra.mxu0 %v661
        %700 = vmatprep.subr.bf16.mxu0 %v659
        %701 = vmatpush1.bf16.msra.mxu0 %v658
        %702 = vmatprep.subr.bf16.mxu0 %v656
        %703 = vmatpush1.bf16.msra.mxu0 %v655
        %704 = vmatprep.subr.bf16.mxu0 %v653
        %705 = vmatpush1.bf16.msra.mxu0 %v652
        %706 = vmatprep.subr.bf16.mxu0 %v650
        %707 = vmatpush1.bf16.msra.mxu0 %v649
        %708 = vmatprep.subr.bf16.mxu0 %v647
        %709 = vmatpush1.bf16.msra.mxu0 %v646
        %710 = vmatprep.subr.bf16.mxu0 0
        %711 = vmatpush2.bf16.msra.mxu0 0
        %712 = vmatprep.subr.bf16.mxu0 0
        %713 = vmatpush2.bf16.msra.mxu0 0
        %714 = vmatprep.subr.bf16.mxu0 0
        %715 = vmatpush2.bf16.msra.mxu0 0
        %716 = vmatprep.subr.bf16.mxu0 0
        %717 = vmatpush2.bf16.msra.mxu0 0
        %718 = vmatprep.subr.bf16.mxu0 0
        %719 = vmatpush2.bf16.msra.mxu0 0
        %720 = vmatprep.subr.bf16.mxu0 0
        %721 = vmatpush2.bf16.msra.mxu0 0
        %722 = vmatprep.subr.bf16.mxu0 0
        %723 = vmatpush2.bf16.msra.mxu0 0
        %724 = vmatprep.subr.bf16.mxu0 0
        %725 = vmatpush2.bf16.msra.mxu0 0
        %726 = vmatprep.mubr.bf16.mxu0 0
        %727 = vmatmul.mubr.bf16.gmra.mxu0 %v516
        %v728 = vpop.f32.mrf.mxu0
        %v729 = vadd.f32 %v554, %v728
        %v730 = vpop.f32.mrf.mxu0
        %v731 = vadd.f32 %v558, %v730
        %v732 = vpop.f32.mrf.mxu0
        %v733 = vpop.f32.mrf.mxu0
        %734 = vdwg.mxu0
        %735 = vmatprep.subr.bf16.mxu0 0
        %736 = vmatpush1.bf16.msra.mxu0 %v669
        %737 = vmatprep.subr.bf16.mxu0 0
        %738 = vmatpush1.bf16.msra.mxu0 %v666
        %739 = vmatprep.subr.bf16.mxu0 0
        %740 = vmatpush1.bf16.msra.mxu0 %v663
        %741 = vmatprep.subr.bf16.mxu0 0
        %742 = vmatpush1.bf16.msra.mxu0 %v660
        %743 = vmatprep.subr.bf16.mxu0 0
        %744 = vmatpush1.bf16.msra.mxu0 %v657
        %745 = vmatprep.subr.bf16.mxu0 0
        %746 = vmatpush1.bf16.msra.mxu0 %v654
        %747 = vmatprep.subr.bf16.mxu0 0
        %748 = vmatpush1.bf16.msra.mxu0 %v651
        %749 = vmatprep.subr.bf16.mxu0 0
        %750 = vmatpush1.bf16.msra.mxu0 %v648
        %751 = vmatprep.subr.bf16.mxu0 0
        %752 = vmatpush2.bf16.msra.mxu0 0
        %753 = vmatprep.subr.bf16.mxu0 0
        %754 = vmatpush2.bf16.msra.mxu0 0
        %755 = vmatprep.subr.bf16.mxu0 0
        %756 = vmatpush2.bf16.msra.mxu0 0
        %757 = vmatprep.subr.bf16.mxu0 0
        %758 = vmatpush2.bf16.msra.mxu0 0
        %759 = vmatprep.subr.bf16.mxu0 0
        %760 = vmatpush2.bf16.msra.mxu0 0
        %761 = vmatprep.subr.bf16.mxu0 0
        %762 = vmatpush2.bf16.msra.mxu0 0
        %763 = vmatprep.subr.bf16.mxu0 0
        %764 = vmatpush2.bf16.msra.mxu0 0
        %765 = vmatprep.subr.bf16.mxu0 0
        %766 = vmatpush2.bf16.msra.mxu0 0
        %767 = vmatprep.mubr.bf16.mxu0 0
        %768 = vmatmul.mubr.bf16.gmra.mxu0 %v516
        %v769 = vpop.f32.mrf.mxu0
        %v770 = vadd.f32 %v562, %v769
        %v771 = vpop.f32.mrf.mxu0
        %v772 = vpop.f32.mrf.mxu0
        %v773 = vpop.f32.mrf.mxu0
        %774 = vdwg.mxu0
        %v775 = vpack.c.bf16 %v729, %v729
        %v776 = vpack.c.bf16 %v731, %v731
        %v777 = vpack.c.bf16 %v770, %v770
        %v778 = vld [vmem:[%s5] sm:$0x1]
        %v779 = vld [vmem:[%s6] sm:$0x1]
        %v780 = vld [vmem:[%s11] sm:$0x1]
        %v781 = vld [vmem:[%s12] sm:$0x1]
        %v782 = vld [vmem:[%s4] sm:$0x1]
        %v783 = vld [vmem:[%s10] sm:$0x1]
        %vm784 = vcmask 130048
        %v786 = vsel %vm784, %v775, 0
        %v789 = vsel %vm784, %v776, 0
        %791 = vmatprep.subr.bf16.mxu0 0
        %792 = vmatpush1.bf16.xpose.msra.mxu0 0
        %793 = vmatprep.subr.bf16.mxu0 0
        %794 = vmatpush1.bf16.xpose.msra.mxu0 0
        %795 = vmatprep.subr.bf16.mxu0 0
        %796 = vmatpush1.bf16.xpose.msra.mxu0 0
        %797 = vmatprep.subr.bf16.mxu0 0
        %798 = vmatpush1.bf16.xpose.msra.mxu0 0
        %799 = vmatprep.subr.bf16.mxu0 0
        %800 = vmatpush1.bf16.xpose.msra.mxu0 0
        %801 = vmatprep.subr.bf16.mxu0 0
        %802 = vmatpush1.bf16.xpose.msra.mxu0 0
        %803 = vmatprep.subr.bf16.mxu0 0
        %804 = vmatpush1.bf16.xpose.msra.mxu0 0
        %805 = vmatprep.subr.bf16.mxu0 0
        %806 = vmatpush1.bf16.xpose.msra.mxu0 %v789
        %807 = vmatprep.subr.bf16.mxu0 0
        %808 = vmatpush2.bf16.xpose.msra.mxu0 0
        %809 = vmatprep.subr.bf16.mxu0 0
        %810 = vmatpush2.bf16.xpose.msra.mxu0 0
        %811 = vmatprep.subr.bf16.mxu0 0
        %812 = vmatpush2.bf16.xpose.msra.mxu0 0
        %813 = vmatprep.subr.bf16.mxu0 0
        %814 = vmatpush2.bf16.xpose.msra.mxu0 0
        %815 = vmatprep.subr.bf16.mxu0 0
        %816 = vmatpush2.bf16.xpose.msra.mxu0 0
        %817 = vmatprep.subr.bf16.mxu0 0
        %818 = vmatpush2.bf16.xpose.msra.mxu0 0
        %819 = vmatprep.subr.bf16.mxu0 0
        %820 = vmatpush2.bf16.xpose.msra.mxu0 0
        %821 = vmatprep.subr.bf16.mxu0 0
        %822 = vmatpush2.bf16.xpose.msra.mxu0 0
        %823 = vmatprep.mubr.bf16.mxu0 0
        %824 = vmatmul.mubr.bf16.gmra.mxu0 %v786
        %v825 = vpop.f32.mrf.mxu0
        %v826 = vadd.f32 0.0, %v825
        %v827 = vpop.f32.mrf.mxu0
        %v828 = vpop.f32.mrf.mxu0
        %v829 = vpop.f32.mrf.mxu0
        %830 = vdwg.mxu0
        %vm831 = vcmask 64512
        %v832 = vsel %vm831, %v826, -inf
        %833 = vmax.xlane.f32.xlu0 %v832
        %v834 = vpop.xlane.xlu0 %833
        %v835 = vsub.f32 %v826, %v834
        %v836 = vmul.f32 %v835, 1.442695
        %v837 = vpow.pop %v836
        %v838 = vsel %vm831, %v837, 0.0
        %839 = vadd.xlane.f32.xlu0 %v838
        %v840 = vpop.xlane.xlu0 %839
        %v841 = vrcp.pop %v840
        %v842 = vmul.f32 %v837, %v841
        %v843 = vpack.c.bf16 %v842, %v842
        %v845 = vsel %vm831, %v843, 0
        %vm847 = vcmask 1043456
        %v849 = vsel %vm847, %v777, 0
        %851 = vmatprep.subr.bf16.mxu0 0
        %852 = vmatpush1.bf16.msra.mxu0 0
        %853 = vmatprep.subr.bf16.mxu0 0
        %854 = vmatpush1.bf16.msra.mxu0 0
        %855 = vmatprep.subr.bf16.mxu0 0
        %856 = vmatpush1.bf16.msra.mxu0 0
        %857 = vmatprep.subr.bf16.mxu0 0
        %858 = vmatpush1.bf16.msra.mxu0 0
        %859 = vmatprep.subr.bf16.mxu0 0
        %860 = vmatpush1.bf16.msra.mxu0 0
        %861 = vmatprep.subr.bf16.mxu0 0
        %862 = vmatpush1.bf16.msra.mxu0 0
        %863 = vmatprep.subr.bf16.mxu0 0
        %864 = vmatpush1.bf16.msra.mxu0 0
        %865 = vmatprep.subr.bf16.mxu0 0
        %866 = vmatpush1.bf16.msra.mxu0 %v849
        %867 = vmatprep.subr.bf16.mxu0 0
        %868 = vmatpush2.bf16.msra.mxu0 0
        %869 = vmatprep.subr.bf16.mxu0 0
        %870 = vmatpush2.bf16.msra.mxu0 0
        %871 = vmatprep.subr.bf16.mxu0 0
        %872 = vmatpush2.bf16.msra.mxu0 0
        %873 = vmatprep.subr.bf16.mxu0 0
        %874 = vmatpush2.bf16.msra.mxu0 0
        %875 = vmatprep.subr.bf16.mxu0 0
        %876 = vmatpush2.bf16.msra.mxu0 0
        %877 = vmatprep.subr.bf16.mxu0 0
        %878 = vmatpush2.bf16.msra.mxu0 0
        %879 = vmatprep.subr.bf16.mxu0 0
        %880 = vmatpush2.bf16.msra.mxu0 0
        %881 = vmatprep.subr.bf16.mxu0 0
        %882 = vmatpush2.bf16.msra.mxu0 0
        %883 = vmatprep.mubr.bf16.mxu0 0
        %884 = vmatmul.mubr.bf16.gmra.mxu0 %v845
        %v885 = vpop.f32.mrf.mxu0
        %v886 = vadd.f32 0.0, %v885
        %v887 = vpop.f32.mrf.mxu0
        %v888 = vpop.f32.mrf.mxu0
        %v889 = vpop.f32.mrf.mxu0
        %890 = vdwg.mxu0
        %892 = vrot.lane.b32.xlu0 %v775, 112
        %v893 = vpop.permute.xlu0 %892
        %895 = vrot.lane.b32.xlu0 %v776, 112
        %v896 = vpop.permute.xlu0 %895
        %v898 = vsel %vm784, %v893, 0
        %v901 = vsel %vm784, %v896, 0
        %903 = vmatprep.subr.bf16.mxu0 0
        %904 = vmatpush1.bf16.xpose.msra.mxu0 0
        %905 = vmatprep.subr.bf16.mxu0 0
        %906 = vmatpush1.bf16.xpose.msra.mxu0 0
        %907 = vmatprep.subr.bf16.mxu0 0
        %908 = vmatpush1.bf16.xpose.msra.mxu0 0
        %909 = vmatprep.subr.bf16.mxu0 0
        %910 = vmatpush1.bf16.xpose.msra.mxu0 0
        %911 = vmatprep.subr.bf16.mxu0 0
        %912 = vmatpush1.bf16.xpose.msra.mxu0 0
        %913 = vmatprep.subr.bf16.mxu0 0
        %914 = vmatpush1.bf16.xpose.msra.mxu0 0
        %915 = vmatprep.subr.bf16.mxu0 0
        %916 = vmatpush1.bf16.xpose.msra.mxu0 0
        %917 = vmatprep.subr.bf16.mxu0 0
        %918 = vmatpush1.bf16.xpose.msra.mxu0 %v901
        %919 = vmatprep.subr.bf16.mxu0 0
        %920 = vmatpush2.bf16.xpose.msra.mxu0 0
        %921 = vmatprep.subr.bf16.mxu0 0
        %922 = vmatpush2.bf16.xpose.msra.mxu0 0
        %923 = vmatprep.subr.bf16.mxu0 0
        %924 = vmatpush2.bf16.xpose.msra.mxu0 0
        %925 = vmatprep.subr.bf16.mxu0 0
        %926 = vmatpush2.bf16.xpose.msra.mxu0 0
        %927 = vmatprep.subr.bf16.mxu0 0
        %928 = vmatpush2.bf16.xpose.msra.mxu0 0
        %929 = vmatprep.subr.bf16.mxu0 0
        %930 = vmatpush2.bf16.xpose.msra.mxu0 0
        %931 = vmatprep.subr.bf16.mxu0 0
        %932 = vmatpush2.bf16.xpose.msra.mxu0 0
        %933 = vmatprep.subr.bf16.mxu0 0
        %934 = vmatpush2.bf16.xpose.msra.mxu0 0
        %935 = vmatprep.mubr.bf16.mxu0 0
        %936 = vmatmul.mubr.bf16.gmra.mxu0 %v898
        %v937 = vpop.f32.mrf.mxu0
        %v938 = vadd.f32 0.0, %v937
        %v939 = vpop.f32.mrf.mxu0
        %v940 = vpop.f32.mrf.mxu0
        %v941 = vpop.f32.mrf.mxu0
        %942 = vdwg.mxu0
        %v943 = vsel %vm831, %v938, -inf
        %944 = vmax.xlane.f32.xlu0 %v943
        %v945 = vpop.xlane.xlu0 %944
        %v946 = vsub.f32 %v938, %v945
        %v947 = vmul.f32 %v946, 1.442695
        %v948 = vpow.pop %v947
        %v949 = vsel %vm831, %v948, 0.0
        %950 = vadd.xlane.f32.xlu0 %v949
        %v951 = vpop.xlane.xlu0 %950
        %v952 = vrcp.pop %v951
        %v953 = vmul.f32 %v948, %v952
        %v954 = vpack.c.bf16 %v953, %v953
        %956 = vrot.lane.b32.xlu0 %v777, 112
        %v957 = vpop.permute.xlu0 %956
        %v959 = vsel %vm831, %v954, 0
        %v962 = vsel %vm847, %v957, 0
        %964 = vmatprep.subr.bf16.mxu0 0
        %965 = vmatpush1.bf16.msra.mxu0 0
        %966 = vmatprep.subr.bf16.mxu0 0
        %967 = vmatpush1.bf16.msra.mxu0 0
        %968 = vmatprep.subr.bf16.mxu0 0
        %969 = vmatpush1.bf16.msra.mxu0 0
        %970 = vmatprep.subr.bf16.mxu0 0
        %971 = vmatpush1.bf16.msra.mxu0 0
        %972 = vmatprep.subr.bf16.mxu0 0
        %973 = vmatpush1.bf16.msra.mxu0 0
        %974 = vmatprep.subr.bf16.mxu0 0
        %975 = vmatpush1.bf16.msra.mxu0 0
        %976 = vmatprep.subr.bf16.mxu0 0
        %977 = vmatpush1.bf16.msra.mxu0 0
        %978 = vmatprep.subr.bf16.mxu0 0
        %979 = vmatpush1.bf16.msra.mxu0 %v962
        %980 = vmatprep.subr.bf16.mxu0 0
        %981 = vmatpush2.bf16.msra.mxu0 0
        %982 = vmatprep.subr.bf16.mxu0 0
        %983 = vmatpush2.bf16.msra.mxu0 0
        %984 = vmatprep.subr.bf16.mxu0 0
        %985 = vmatpush2.bf16.msra.mxu0 0
        %986 = vmatprep.subr.bf16.mxu0 0
        %987 = vmatpush2.bf16.msra.mxu0 0
        %988 = vmatprep.subr.bf16.mxu0 0
        %989 = vmatpush2.bf16.msra.mxu0 0
        %990 = vmatprep.subr.bf16.mxu0 0
        %991 = vmatpush2.bf16.msra.mxu0 0
        %992 = vmatprep.subr.bf16.mxu0 0
        %993 = vmatpush2.bf16.msra.mxu0 0
        %994 = vmatprep.subr.bf16.mxu0 0
        %995 = vmatpush2.bf16.msra.mxu0 0
        %996 = vmatprep.mubr.bf16.mxu0 0
        %997 = vmatmul.mubr.bf16.gmra.mxu0 %v959
        %v998 = vpop.f32.mrf.mxu0
        %v999 = vadd.f32 0.0, %v998
        %v1000 = vpop.f32.mrf.mxu0
        %v1001 = vpop.f32.mrf.mxu0
        %v1002 = vpop.f32.mrf.mxu0
        %1003 = vdwg.mxu0
        %1004 = vrot.lane.b32.xlu0 %v775, 96
        %v1005 = vpop.permute.xlu0 %1004
        %1006 = vrot.lane.b32.xlu0 %v776, 96
        %v1007 = vpop.permute.xlu0 %1006
        %v1009 = vsel %vm784, %v1005, 0
        %v1012 = vsel %vm784, %v1007, 0
        %1014 = vmatprep.subr.bf16.mxu0 0
        %1015 = vmatpush1.bf16.xpose.msra.mxu0 0
        %1016 = vmatprep.subr.bf16.mxu0 0
        %1017 = vmatpush1.bf16.xpose.msra.mxu0 0
        %1018 = vmatprep.subr.bf16.mxu0 0
        %1019 = vmatpush1.bf16.xpose.msra.mxu0 0
        %1020 = vmatprep.subr.bf16.mxu0 0
        %1021 = vmatpush1.bf16.xpose.msra.mxu0 0
        %1022 = vmatprep.subr.bf16.mxu0 0
        %1023 = vmatpush1.bf16.xpose.msra.mxu0 0
        %1024 = vmatprep.subr.bf16.mxu0 0
        %1025 = vmatpush1.bf16.xpose.msra.mxu0 0
        %1026 = vmatprep.subr.bf16.mxu0 0
        %1027 = vmatpush1.bf16.xpose.msra.mxu0 0
        %1028 = vmatprep.subr.bf16.mxu0 0
        %1029 = vmatpush1.bf16.xpose.msra.mxu0 %v1012
        %1030 = vmatprep.subr.bf16.mxu0 0
        %1031 = vmatpush2.bf16.xpose.msra.mxu0 0
        %1032 = vmatprep.subr.bf16.mxu0 0
        %1033 = vmatpush2.bf16.xpose.msra.mxu0 0
        %1034 = vmatprep.subr.bf16.mxu0 0
        %1035 = vmatpush2.bf16.xpose.msra.mxu0 0
        %1036 = vmatprep.subr.bf16.mxu0 0
        %1037 = vmatpush2.bf16.xpose.msra.mxu0 0
        %1038 = vmatprep.subr.bf16.mxu0 0
        %1039 = vmatpush2.bf16.xpose.msra.mxu0 0
        %1040 = vmatprep.subr.bf16.mxu0 0
        %1041 = vmatpush2.bf16.xpose.msra.mxu0 0
        %1042 = vmatprep.subr.bf16.mxu0 0
        %1043 = vmatpush2.bf16.xpose.msra.mxu0 0
        %1044 = vmatprep.subr.bf16.mxu0 0
        %1045 = vmatpush2.bf16.xpose.msra.mxu0 0
        %1046 = vmatprep.mubr.bf16.mxu0 0
        %1047 = vmatmul.mubr.bf16.gmra.mxu0 %v1009
        %v1048 = vpop.f32.mrf.mxu0
        %v1049 = vadd.f32 0.0, %v1048
        %v1050 = vpop.f32.mrf.mxu0
        %v1051 = vpop.f32.mrf.mxu0
        %v1052 = vpop.f32.mrf.mxu0
        %1053 = vdwg.mxu0
        %v1054 = vsel %vm831, %v1049, -inf
        %1055 = vmax.xlane.f32.xlu0 %v1054
        %v1056 = vpop.xlane.xlu0 %1055
        %v1057 = vsub.f32 %v1049, %v1056
        %v1058 = vmul.f32 %v1057, 1.442695
        %v1059 = vpow.pop %v1058
        %v1060 = vsel %vm831, %v1059, 0.0
        %1061 = vadd.xlane.f32.xlu0 %v1060
        %v1062 = vpop.xlane.xlu0 %1061
        %v1063 = vrcp.pop %v1062
        %v1064 = vmul.f32 %v1059, %v1063
        %v1065 = vpack.c.bf16 %v1064, %v1064
        %1066 = vrot.lane.b32.xlu0 %v777, 96
        %v1067 = vpop.permute.xlu0 %1066
        %v1069 = vsel %vm831, %v1065, 0
        %v1072 = vsel %vm847, %v1067, 0
        %1074 = vmatprep.subr.bf16.mxu0 0
        %1075 = vmatpush1.bf16.msra.mxu0 0
        %1076 = vmatprep.subr.bf16.mxu0 0
        %1077 = vmatpush1.bf16.msra.mxu0 0
        %1078 = vmatprep.subr.bf16.mxu0 0
        %1079 = vmatpush1.bf16.msra.mxu0 0
        %1080 = vmatprep.subr.bf16.mxu0 0
        %1081 = vmatpush1.bf16.msra.mxu0 0
        %1082 = vmatprep.subr.bf16.mxu0 0
        %1083 = vmatpush1.bf16.msra.mxu0 0
        %1084 = vmatprep.subr.bf16.mxu0 0
        %1085 = vmatpush1.bf16.msra.mxu0 0
        %1086 = vmatprep.subr.bf16.mxu0 0
        %1087 = vmatpush1.bf16.msra.mxu0 0
        %1088 = vmatprep.subr.bf16.mxu0 0
        %1089 = vmatpush1.bf16.msra.mxu0 %v1072
        %1090 = vmatprep.subr.bf16.mxu0 0
        %1091 = vmatpush2.bf16.msra.mxu0 0
        %1092 = vmatprep.subr.bf16.mxu0 0
        %1093 = vmatpush2.bf16.msra.mxu0 0
        %1094 = vmatprep.subr.bf16.mxu0 0
        %1095 = vmatpush2.bf16.msra.mxu0 0
        %1096 = vmatprep.subr.bf16.mxu0 0
        %1097 = vmatpush2.bf16.msra.mxu0 0
        %1098 = vmatprep.subr.bf16.mxu0 0
        %1099 = vmatpush2.bf16.msra.mxu0 0
        %1100 = vmatprep.subr.bf16.mxu0 0
        %1101 = vmatpush2.bf16.msra.mxu0 0
        %1102 = vmatprep.subr.bf16.mxu0 0
        %1103 = vmatpush2.bf16.msra.mxu0 0
        %1104 = vmatprep.subr.bf16.mxu0 0
        %1105 = vmatpush2.bf16.msra.mxu0 0
        %1106 = vmatprep.mubr.bf16.mxu0 0
        %1107 = vmatmul.mubr.bf16.gmra.mxu0 %v1069
        %v1108 = vpop.f32.mrf.mxu0
        %v1109 = vadd.f32 0.0, %v1108
        %v1110 = vpop.f32.mrf.mxu0
        %v1111 = vpop.f32.mrf.mxu0
        %v1112 = vpop.f32.mrf.mxu0
        %1113 = vdwg.mxu0
        %1114 = vrot.lane.b32.xlu0 %v775, 80
        %v1115 = vpop.permute.xlu0 %1114
        %1116 = vrot.lane.b32.xlu0 %v776, 80
        %v1117 = vpop.permute.xlu0 %1116
        %v1119 = vsel %vm784, %v1115, 0
        %v1122 = vsel %vm784, %v1117, 0
        %1124 = vmatprep.subr.bf16.mxu0 0
        %1125 = vmatpush1.bf16.xpose.msra.mxu0 0
        %1126 = vmatprep.subr.bf16.mxu0 0
        %1127 = vmatpush1.bf16.xpose.msra.mxu0 0
        %1128 = vmatprep.subr.bf16.mxu0 0
        %1129 = vmatpush1.bf16.xpose.msra.mxu0 0
        %1130 = vmatprep.subr.bf16.mxu0 0
        %1131 = vmatpush1.bf16.xpose.msra.mxu0 0
        %1132 = vmatprep.subr.bf16.mxu0 0
        %1133 = vmatpush1.bf16.xpose.msra.mxu0 0
        %1134 = vmatprep.subr.bf16.mxu0 0
        %1135 = vmatpush1.bf16.xpose.msra.mxu0 0
        %1136 = vmatprep.subr.bf16.mxu0 0
        %1137 = vmatpush1.bf16.xpose.msra.mxu0 0
        %1138 = vmatprep.subr.bf16.mxu0 0
        %1139 = vmatpush1.bf16.xpose.msra.mxu0 %v1122
        %1140 = vmatprep.subr.bf16.mxu0 0
        %1141 = vmatpush2.bf16.xpose.msra.mxu0 0
        %1142 = vmatprep.subr.bf16.mxu0 0
        %1143 = vmatpush2.bf16.xpose.msra.mxu0 0
        %1144 = vmatprep.subr.bf16.mxu0 0
        %1145 = vmatpush2.bf16.xpose.msra.mxu0 0
        %1146 = vmatprep.subr.bf16.mxu0 0
        %1147 = vmatpush2.bf16.xpose.msra.mxu0 0
        %1148 = vmatprep.subr.bf16.mxu0 0
        %1149 = vmatpush2.bf16.xpose.msra.mxu0 0
        %1150 = vmatprep.subr.bf16.mxu0 0
        %1151 = vmatpush2.bf16.xpose.msra.mxu0 0
        %1152 = vmatprep.subr.bf16.mxu0 0
        %1153 = vmatpush2.bf16.xpose.msra.mxu0 0
        %1154 = vmatprep.subr.bf16.mxu0 0
        %1155 = vmatpush2.bf16.xpose.msra.mxu0 0
        %1156 = vmatprep.mubr.bf16.mxu0 0
        %1157 = vmatmul.mubr.bf16.gmra.mxu0 %v1119
        %v1158 = vpop.f32.mrf.mxu0
        %v1159 = vadd.f32 0.0, %v1158
        %v1160 = vpop.f32.mrf.mxu0
        %v1161 = vpop.f32.mrf.mxu0
        %v1162 = vpop.f32.mrf.mxu0
        %1163 = vdwg.mxu0
        %v1164 = vsel %vm831, %v1159, -inf
        %1165 = vmax.xlane.f32.xlu0 %v1164
        %v1166 = vpop.xlane.xlu0 %1165
        %v1167 = vsub.f32 %v1159, %v1166
        %v1168 = vmul.f32 %v1167, 1.442695
        %v1169 = vpow.pop %v1168
        %v1170 = vsel %vm831, %v1169, 0.0
        %1171 = vadd.xlane.f32.xlu0 %v1170
        %v1172 = vpop.xlane.xlu0 %1171
        %v1173 = vrcp.pop %v1172
        %v1174 = vmul.f32 %v1169, %v1173
        %v1175 = vpack.c.bf16 %v1174, %v1174
        %1176 = vrot.lane.b32.xlu0 %v777, 80
        %v1177 = vpop.permute.xlu0 %1176
        %v1179 = vsel %vm831, %v1175, 0
        %v1182 = vsel %vm847, %v1177, 0
        %1184 = vmatprep.subr.bf16.mxu0 0
        %1185 = vmatpush1.bf16.msra.mxu0 0
        %1186 = vmatprep.subr.bf16.mxu0 0
        %1187 = vmatpush1.bf16.msra.mxu0 0
        %1188 = vmatprep.subr.bf16.mxu0 0
        %1189 = vmatpush1.bf16.msra.mxu0 0
        %1190 = vmatprep.subr.bf16.mxu0 0
        %1191 = vmatpush1.bf16.msra.mxu0 0
        %1192 = vmatprep.subr.bf16.mxu0 0
        %1193 = vmatpush1.bf16.msra.mxu0 0
        %1194 = vmatprep.subr.bf16.mxu0 0
        %1195 = vmatpush1.bf16.msra.mxu0 0
        %1196 = vmatprep.subr.bf16.mxu0 0
        %1197 = vmatpush1.bf16.msra.mxu0 0
        %1198 = vmatprep.subr.bf16.mxu0 0
        %1199 = vmatpush1.bf16.msra.mxu0 %v1182
        %1200 = vmatprep.subr.bf16.mxu0 0
        %1201 = vmatpush2.bf16.msra.mxu0 0
        %1202 = vmatprep.subr.bf16.mxu0 0
        %1203 = vmatpush2.bf16.msra.mxu0 0
        %1204 = vmatprep.subr.bf16.mxu0 0
        %1205 = vmatpush2.bf16.msra.mxu0 0
        %1206 = vmatprep.subr.bf16.mxu0 0
        %1207 = vmatpush2.bf16.msra.mxu0 0
        %1208 = vmatprep.subr.bf16.mxu0 0
        %1209 = vmatpush2.bf16.msra.mxu0 0
        %1210 = vmatprep.subr.bf16.mxu0 0
        %1211 = vmatpush2.bf16.msra.mxu0 0
        %1212 = vmatprep.subr.bf16.mxu0 0
        %1213 = vmatpush2.bf16.msra.mxu0 0
        %1214 = vmatprep.subr.bf16.mxu0 0
        %1215 = vmatpush2.bf16.msra.mxu0 0
        %1216 = vmatprep.mubr.bf16.mxu0 0
        %1217 = vmatmul.mubr.bf16.gmra.mxu0 %v1179
        %v1218 = vpop.f32.mrf.mxu0
        %v1219 = vadd.f32 0.0, %v1218
        %v1220 = vpop.f32.mrf.mxu0
        %v1221 = vpop.f32.mrf.mxu0
        %v1222 = vpop.f32.mrf.mxu0
        %1223 = vdwg.mxu0
        %1225 = vrot.lane.b32.xlu0 %v999, 16
        %v1226 = vpop.permute.xlu0 %1225
        %1229 = vrot.lane.b32.xlu0 %v1109, 32
        %v1230 = vpop.permute.xlu0 %1229
        %1233 = vrot.lane.b32.xlu0 %v1219, 48
        %v1234 = vpop.permute.xlu0 %1233
        %v1236 = vsel %vm784, %v886, %v1226
        %vm1237 = vcmask 261120
        %v1238 = vsel %vm1237, %v1236, %v1230
        %vm1239 = vcmask 392192
        %v1240 = vsel %vm1239, %v1238, %v1234
        %vm1241 = vcmask 523264
        %v1242 = vsel %vm1241, %v1240, 0.0
        %v1243 = vpack.c.bf16 %v1242, %v1242
        %v1244 = vld [vmem:[#allocation7] sm:$0xf]
        %v1245 = vld [vmem:[#allocation7 + $0x4] sm:$0xf]
        %v1246 = vld [vmem:[#allocation7 + $0x8] sm:$0xf]
        %v1247 = vld [vmem:[#allocation7 + $0xc] sm:$0xf]
        %v1248 = vld [vmem:[#allocation7 + $0x10] sm:$0xf]
        %v1249 = vld [vmem:[#allocation7 + $0x14] sm:$0xf]
        %v1250 = vld [vmem:[#allocation7 + $0x18] sm:$0xf]
        %v1251 = vld [vmem:[#allocation7 + $0x1c] sm:$0xf]
        %v1252 = vld [vmem:[#allocation7 + $0x20] sm:$0xf]
        %v1253 = vld [vmem:[#allocation7 + $0x24] sm:$0xf]
        %v1254 = vld [vmem:[#allocation7 + $0x28] sm:$0xf]
        %v1255 = vld [vmem:[#allocation7 + $0x2c] sm:$0xf]
        %v1256 = vld [vmem:[#allocation7 + $0x30] sm:$0xf]
        %v1257 = vld [vmem:[#allocation7 + $0x34] sm:$0xf]
        %v1258 = vld [vmem:[#allocation7 + $0x38] sm:$0xf]
        %v1259 = vld [vmem:[#allocation7 + $0x3c] sm:$0xf]
        %v1261 = vlaneseq
        %v1262 = vshrl.u32 %v1261, 7
        %v1263 = vsub.s32 0, %v1262
        %v1264 = vrot.slane %v782, %v1263
        %v1282 = vunpack.c.l.b16 %v1244
        %v1283 = vunpack.c.l.b16 %v1245
        %v1284 = vunpack.c.l.b16 %v1246
        %v1285 = vunpack.c.l.b16 %v1247
        %v1286 = vunpack.c.l.b16 %v1248
        %v1287 = vunpack.c.l.b16 %v1249
        %v1288 = vunpack.c.l.b16 %v1250
        %v1289 = vunpack.c.l.b16 %v1251
        %v1290 = vunpack.c.l.b16 %v1252
        %v1291 = vunpack.c.l.b16 %v1253
        %v1292 = vunpack.c.l.b16 %v1254
        %v1293 = vunpack.c.l.b16 %v1255
        %v1294 = vunpack.c.l.b16 %v1256
        %v1295 = vunpack.c.l.b16 %v1257
        %v1296 = vunpack.c.l.b16 %v1258
        %v1297 = vunpack.c.l.b16 %v1259
        %v1298 = vpack.c.b16 %v1283, %v1282
        %v1299 = vpack.c.b16 %v1285, %v1284
        %v1300 = vpack.c.b16 %v1287, %v1286
        %v1301 = vpack.c.b16 %v1289, %v1288
        %v1302 = vpack.c.b16 %v1291, %v1290
        %v1303 = vpack.c.b16 %v1293, %v1292
        %v1304 = vpack.c.b16 %v1295, %v1294
        %v1305 = vpack.c.b16 %v1297, %v1296
        %1314 = vmatprep.subr.bf16.mxu0 0
        %1315 = vmatpush1.bf16.msra.mxu0 %v1305
        %1316 = vmatprep.subr.bf16.mxu0 0
        %1317 = vmatpush1.bf16.msra.mxu0 %v1304
        %1318 = vmatprep.subr.bf16.mxu0 0
        %1319 = vmatpush1.bf16.msra.mxu0 %v1303
        %1320 = vmatprep.subr.bf16.mxu0 0
        %1321 = vmatpush1.bf16.msra.mxu0 %v1302
        %1322 = vmatprep.subr.bf16.mxu0 0
        %1323 = vmatpush1.bf16.msra.mxu0 %v1301
        %1324 = vmatprep.subr.bf16.mxu0 0
        %1325 = vmatpush1.bf16.msra.mxu0 %v1300
        %1326 = vmatprep.subr.bf16.mxu0 0
        %1327 = vmatpush1.bf16.msra.mxu0 %v1299
        %1328 = vmatprep.subr.bf16.mxu0 0
        %1329 = vmatpush1.bf16.msra.mxu0 %v1298
        %1330 = vmatprep.subr.bf16.mxu0 0
        %1331 = vmatpush2.bf16.msra.mxu0 0
        %1332 = vmatprep.subr.bf16.mxu0 0
        %1333 = vmatpush2.bf16.msra.mxu0 0
        %1334 = vmatprep.subr.bf16.mxu0 0
        %1335 = vmatpush2.bf16.msra.mxu0 0
        %1336 = vmatprep.subr.bf16.mxu0 0
        %1337 = vmatpush2.bf16.msra.mxu0 0
        %1338 = vmatprep.subr.bf16.mxu0 0
        %1339 = vmatpush2.bf16.msra.mxu0 0
        %1340 = vmatprep.subr.bf16.mxu0 0
        %1341 = vmatpush2.bf16.msra.mxu0 0
        %1342 = vmatprep.subr.bf16.mxu0 0
        %1343 = vmatpush2.bf16.msra.mxu0 0
        %1344 = vmatprep.subr.bf16.mxu0 0
        %1345 = vmatpush2.bf16.msra.mxu0 0
        %1346 = vmatprep.mubr.bf16.mxu0 0
        %1347 = vmatmul.mubr.bf16.gmra.mxu0 %v1243
        %v1348 = vpop.f32.mrf.mxu0
        %v1349 = vadd.f32 %v1264, %v1348
        %v1350 = vpop.f32.mrf.mxu0
        %v1351 = vpop.f32.mrf.mxu0
        %v1352 = vpop.f32.mrf.mxu0
        %1353 = vdwg.mxu0
        %v1354 = vadd.f32 %v515, %v1349
        %1355 = vadd.xlane.f32.xlu0 %v1354
        %v1356 = vpop.xlane.xlu0 %1355
        %v1357 = vmul.f32 %v1356, 0.03125
        %v1358 = vsub.f32 %v1354, %v1357
        %v1359 = vlaneseq
        %v1360 = vand.u32 %v1359, 127
        %vm1361 = vcmp.lt.s32.totalorder %v1360, 32
        %v1362 = vsel %vm1361, %v1358, 0.0
        %v1363 = vmul.f32 %v1362, %v1362
        %1364 = vadd.xlane.f32.xlu0 %v1363
        %v1365 = vpop.xlane.xlu0 %1364
        %v1366 = vmul.f32 %v1365, 0.03125
        %v1367 = vadd.f32 %v1366, 1e-05
        %v1368 = vrsqrt.pop %v1367
        %v1369 = vmul.f32 %v1362, %v1368
        %v1371 = vlaneseq
        %v1372 = vshrl.u32 %v1371, 7
        %v1373 = vsub.s32 0, %v1372
        %v1374 = vrot.slane %v778, %v1373
        %v1376 = vmul.f32 %v1369, %v1374
        %v1378 = vlaneseq
        %v1379 = vshrl.u32 %v1378, 7
        %v1380 = vsub.s32 0, %v1379
        %v1381 = vrot.slane %v779, %v1380
        %v1383 = vadd.f32 %v1376, %v1381
        %v1384 = vpack.c.bf16 %v1383, %v1383
        %v1385 = vld [vmem:[#allocation8] sm:$0xf]
        %v1386 = vld [vmem:[#allocation8 + $0x4] sm:$0xf]
        %v1387 = vld [vmem:[#allocation8 + $0x8] sm:$0xf]
        %v1388 = vld [vmem:[#allocation8 + $0xc] sm:$0xf]
        %v1389 = vld [vmem:[#allocation8 + $0x10] sm:$0xf]
        %v1390 = vld [vmem:[#allocation8 + $0x14] sm:$0xf]
        %v1391 = vld [vmem:[#allocation8 + $0x18] sm:$0xf]
        %v1392 = vld [vmem:[#allocation8 + $0x1c] sm:$0xf]
        %v1393 = vld [vmem:[#allocation8 + $0x20] sm:$0xf]
        %v1394 = vld [vmem:[#allocation8 + $0x24] sm:$0xf]
        %v1395 = vld [vmem:[#allocation8 + $0x28] sm:$0xf]
        %v1396 = vld [vmem:[#allocation8 + $0x2c] sm:$0xf]
        %v1397 = vld [vmem:[#allocation8 + $0x30] sm:$0xf]
        %v1398 = vld [vmem:[#allocation8 + $0x34] sm:$0xf]
        %v1399 = vld [vmem:[#allocation8 + $0x38] sm:$0xf]
        %v1400 = vld [vmem:[#allocation8 + $0x3c] sm:$0xf]
        %v1401 = vld [vmem:[%s8] sm:$0x1]
        %v1403 = vlaneseq
        %v1404 = vshrl.u32 %v1403, 7
        %v1405 = vsub.s32 0, %v1404
        %v1406 = vrot.slane %v1401, %v1405
        %v1424 = vunpack.c.l.b16 %v1385
        %v1425 = vunpack.c.l.b16 %v1386
        %v1426 = vunpack.c.l.b16 %v1387
        %v1427 = vunpack.c.l.b16 %v1388
        %v1428 = vunpack.c.l.b16 %v1389
        %v1429 = vunpack.c.l.b16 %v1390
        %v1430 = vunpack.c.l.b16 %v1391
        %v1431 = vunpack.c.l.b16 %v1392
        %v1432 = vunpack.c.l.b16 %v1393
        %v1433 = vunpack.c.l.b16 %v1394
        %v1434 = vunpack.c.l.b16 %v1395
        %v1435 = vunpack.c.l.b16 %v1396
        %v1436 = vunpack.c.l.b16 %v1397
        %v1437 = vunpack.c.l.b16 %v1398
        %v1438 = vunpack.c.l.b16 %v1399
        %v1439 = vunpack.c.l.b16 %v1400
        %v1440 = vpack.c.b16 %v1425, %v1424
        %v1441 = vpack.c.b16 %v1427, %v1426
        %v1442 = vpack.c.b16 %v1429, %v1428
        %v1443 = vpack.c.b16 %v1431, %v1430
        %v1444 = vpack.c.b16 %v1433, %v1432
        %v1445 = vpack.c.b16 %v1435, %v1434
        %v1446 = vpack.c.b16 %v1437, %v1436
        %v1447 = vpack.c.b16 %v1439, %v1438
        %1456 = vmatprep.subr.bf16.mxu0 0
        %1457 = vmatpush1.bf16.msra.mxu0 %v1447
        %1458 = vmatprep.subr.bf16.mxu0 0
        %1459 = vmatpush1.bf16.msra.mxu0 %v1446
        %1460 = vmatprep.subr.bf16.mxu0 0
        %1461 = vmatpush1.bf16.msra.mxu0 %v1445
        %1462 = vmatprep.subr.bf16.mxu0 0
        %1463 = vmatpush1.bf16.msra.mxu0 %v1444
        %1464 = vmatprep.subr.bf16.mxu0 0
        %1465 = vmatpush1.bf16.msra.mxu0 %v1443
        %1466 = vmatprep.subr.bf16.mxu0 0
        %1467 = vmatpush1.bf16.msra.mxu0 %v1442
        %1468 = vmatprep.subr.bf16.mxu0 0
        %1469 = vmatpush1.bf16.msra.mxu0 %v1441
        %1470 = vmatprep.subr.bf16.mxu0 0
        %1471 = vmatpush1.bf16.msra.mxu0 %v1440
        %1472 = vmatprep.subr.bf16.mxu0 0
        %1473 = vmatpush2.bf16.msra.mxu0 0
        %1474 = vmatprep.subr.bf16.mxu0 0
        %1475 = vmatpush2.bf16.msra.mxu0 0
        %1476 = vmatprep.subr.bf16.mxu0 0
        %1477 = vmatpush2.bf16.msra.mxu0 0
        %1478 = vmatprep.subr.bf16.mxu0 0
        %1479 = vmatpush2.bf16.msra.mxu0 0
        %1480 = vmatprep.subr.bf16.mxu0 0
        %1481 = vmatpush2.bf16.msra.mxu0 0
        %1482 = vmatprep.subr.bf16.mxu0 0
        %1483 = vmatpush2.bf16.msra.mxu0 0
        %1484 = vmatprep.subr.bf16.mxu0 0
        %1485 = vmatpush2.bf16.msra.mxu0 0
        %1486 = vmatprep.subr.bf16.mxu0 0
        %1487 = vmatpush2.bf16.msra.mxu0 0
        %1488 = vmatprep.mubr.bf16.mxu0 0
        %1489 = vmatmul.mubr.bf16.gmra.mxu0 %v1384
        %v1490 = vpop.f32.mrf.mxu0
        %v1491 = vadd.f32 %v1406, %v1490
        %v1492 = vpop.f32.mrf.mxu0
        %v1493 = vpop.f32.mrf.mxu0
        %v1494 = vpop.f32.mrf.mxu0
        %1495 = vdwg.mxu0
        %v1496 = vmax.f32 %v1491, 0.0
        %v1497 = vpack.c.bf16 %v1496, %v1496
        %v1498 = vld [vmem:[#allocation10] sm:$0xf]
        %v1499 = vld [vmem:[#allocation10 + $0x4] sm:$0xf]
        %v1500 = vld [vmem:[#allocation10 + $0x8] sm:$0xf]
        %v1501 = vld [vmem:[#allocation10 + $0xc] sm:$0xf]
        %v1502 = vld [vmem:[#allocation10 + $0x10] sm:$0xf]
        %v1503 = vld [vmem:[#allocation10 + $0x14] sm:$0xf]
        %v1504 = vld [vmem:[#allocation10 + $0x18] sm:$0xf]
        %v1505 = vld [vmem:[#allocation10 + $0x1c] sm:$0xf]
        %v1506 = vld [vmem:[#allocation10 + $0x20] sm:$0xf]
        %v1507 = vld [vmem:[#allocation10 + $0x24] sm:$0xf]
        %v1508 = vld [vmem:[#allocation10 + $0x28] sm:$0xf]
        %v1509 = vld [vmem:[#allocation10 + $0x2c] sm:$0xf]
        %v1510 = vld [vmem:[#allocation10 + $0x30] sm:$0xf]
        %v1511 = vld [vmem:[#allocation10 + $0x34] sm:$0xf]
        %v1512 = vld [vmem:[#allocation10 + $0x38] sm:$0xf]
        %v1513 = vld [vmem:[#allocation10 + $0x3c] sm:$0xf]
        %v1515 = vlaneseq
        %v1516 = vshrl.u32 %v1515, 7
        %v1517 = vsub.s32 0, %v1516
        %v1518 = vrot.slane %v783, %v1517
        %v1536 = vunpack.c.l.b16 %v1498
        %v1537 = vunpack.c.l.b16 %v1499
        %v1538 = vunpack.c.l.b16 %v1500
        %v1539 = vunpack.c.l.b16 %v1501
        %v1540 = vunpack.c.l.b16 %v1502
        %v1541 = vunpack.c.l.b16 %v1503
        %v1542 = vunpack.c.l.b16 %v1504
        %v1543 = vunpack.c.l.b16 %v1505
        %v1544 = vunpack.c.l.b16 %v1506
        %v1545 = vunpack.c.l.b16 %v1507
        %v1546 = vunpack.c.l.b16 %v1508
        %v1547 = vunpack.c.l.b16 %v1509
        %v1548 = vunpack.c.l.b16 %v1510
        %v1549 = vunpack.c.l.b16 %v1511
        %v1550 = vunpack.c.l.b16 %v1512
        %v1551 = vunpack.c.l.b16 %v1513
        %v1552 = vpack.c.b16 %v1537, %v1536
        %v1553 = vpack.c.b16 %v1539, %v1538
        %v1554 = vpack.c.b16 %v1541, %v1540
        %v1555 = vpack.c.b16 %v1543, %v1542
        %v1556 = vpack.c.b16 %v1545, %v1544
        %v1557 = vpack.c.b16 %v1547, %v1546
        %v1558 = vpack.c.b16 %v1549, %v1548
        %v1559 = vpack.c.b16 %v1551, %v1550
        %1568 = vmatprep.subr.bf16.mxu0 0
        %1569 = vmatpush1.bf16.msra.mxu0 %v1559
        %1570 = vmatprep.subr.bf16.mxu0 0
        %1571 = vmatpush1.bf16.msra.mxu0 %v1558
        %1572 = vmatprep.subr.bf16.mxu0 0
        %1573 = vmatpush1.bf16.msra.mxu0 %v1557
        %1574 = vmatprep.subr.bf16.mxu0 0
        %1575 = vmatpush1.bf16.msra.mxu0 %v1556
        %1576 = vmatprep.subr.bf16.mxu0 0
        %1577 = vmatpush1.bf16.msra.mxu0 %v1555
        %1578 = vmatprep.subr.bf16.mxu0 0
        %1579 = vmatpush1.bf16.msra.mxu0 %v1554
        %1580 = vmatprep.subr.bf16.mxu0 0
        %1581 = vmatpush1.bf16.msra.mxu0 %v1553
        %1582 = vmatprep.subr.bf16.mxu0 0
        %1583 = vmatpush1.bf16.msra.mxu0 %v1552
        %1584 = vmatprep.subr.bf16.mxu0 0
        %1585 = vmatpush2.bf16.msra.mxu0 0
        %1586 = vmatprep.subr.bf16.mxu0 0
        %1587 = vmatpush2.bf16.msra.mxu0 0
        %1588 = vmatprep.subr.bf16.mxu0 0
        %1589 = vmatpush2.bf16.msra.mxu0 0
        %1590 = vmatprep.subr.bf16.mxu0 0
        %1591 = vmatpush2.bf16.msra.mxu0 0
        %1592 = vmatprep.subr.bf16.mxu0 0
        %1593 = vmatpush2.bf16.msra.mxu0 0
        %1594 = vmatprep.subr.bf16.mxu0 0
        %1595 = vmatpush2.bf16.msra.mxu0 0
        %1596 = vmatprep.subr.bf16.mxu0 0
        %1597 = vmatpush2.bf16.msra.mxu0 0
        %1598 = vmatprep.subr.bf16.mxu0 0
        %1599 = vmatpush2.bf16.msra.mxu0 0
        %1600 = vmatprep.mubr.bf16.mxu0 0
        %1601 = vmatmul.mubr.bf16.gmra.mxu0 %v1497
        %v1602 = vpop.f32.mrf.mxu0
        %v1603 = vadd.f32 %v1518, %v1602
        %v1604 = vpop.f32.mrf.mxu0
        %v1605 = vpop.f32.mrf.mxu0
        %v1606 = vpop.f32.mrf.mxu0
        %1607 = vdwg.mxu0
        %v1608 = vadd.f32 %v1383, %v1603
        %1609 = vadd.xlane.f32.xlu0 %v1608
        %v1610 = vpop.xlane.xlu0 %1609
        %v1611 = vmul.f32 %v1610, 0.03125
        %v1612 = vsub.f32 %v1608, %v1611
        %v1613 = vsel %vm1361, %v1612, 0.0
        %v1614 = vmul.f32 %v1613, %v1613
        %1615 = vadd.xlane.f32.xlu0 %v1614
        %v1616 = vpop.xlane.xlu0 %1615
        %v1617 = vmul.f32 %v1616, 0.03125
        %v1618 = vadd.f32 %v1617, 1e-05
        %v1619 = vrsqrt.pop %v1618
        %v1620 = vmul.f32 %v1613, %v1619
        %v1622 = vlaneseq
        %v1623 = vshrl.u32 %v1622, 7
        %v1624 = vsub.s32 0, %v1623
        %v1625 = vrot.slane %v780, %v1624
        %v1627 = vmul.f32 %v1620, %v1625
        %v1629 = vlaneseq
        %v1630 = vshrl.u32 %v1629, 7
        %v1631 = vsub.s32 0, %v1630
        %v1632 = vrot.slane %v781, %v1631
        %v1634 = vadd.f32 %v1627, %v1632
        %1635 = vst [vmem:[%s513] sm:$0xff] %v1634
        %s1636 = sand.u32 %s318, 1
        %s1637 = scalar_lea.sflag [#allocation4], %s1636
        %s1638 = sand.u32 %s318, 1
        %s1639 = smul.addr %s1638, 8
        %s1640 = scalar_lea.vmem [#allocation11], %s1639
        // Predicated region
        $region93: #{tpu_custom_call.1} parent=71 // pred_check
          %p1641 = pneg %p328
        $region94: #{tpu_custom_call.1} parent=71 // pred_check_branch
          %1643 = sbr.rel (%p1641) target = $region96
        $region95: #{tpu_custom_call.1} parent=71 // pred_region
          %s1645 = ssub.s32 128, 128
          %1646 = vsyncadd %s1637, %s1645
          %s1647 = smul.addr %s32, 128
          %s1648 = scalar_lea.hbm %s13, %s1647
          %s1650 = sshll.u32 %s1640, 4
          %s1651 = int_to_ptr.vmem [resolvable:$true] %s1650
          %1653 = dma.vmem_to_hbm [thread:$0]  %s1651, 128, %s1648, %s1637
        $region96: #{tpu_custom_call.1} parent=71 // pred_fallthru
          _
      $region72: #{tpu_custom_call.1} parent=5 // pred_fallthru
        _
      %p1654 = scmp.le.s32.totalorder 2, %s27
      // Predicated region
      $region97: #{tpu_custom_call.1} parent=5 // pred_check
        %p1655 = pneg %p1654
      $region98: #{tpu_custom_call.1} parent=5 // pred_check_branch
        %1657 = sbr.rel (%p1655) target = $region100
      $region99: #{tpu_custom_call.1} parent=5 // pred_region
        %s1658 = ssub.s32 %s27, 2
        // Predicated region
        $region101: #{tpu_custom_call.1} parent=99 // pred_check
          %p1659 = pneg %p334
        $region102: #{tpu_custom_call.1} parent=99 // pred_check_branch
          %1661 = sbr.rel (%p1659) target = $region104
        $region103: #{tpu_custom_call.1} parent=99 // pred_region
          %s1662 = sand.u32 %s319, 1
          %s1663 = scalar_lea.sflag [#allocation4], %s1662
          %s1664 = sand.u32 %s319, 1
          %s1665 = smul.addr %s1664, 8
          %s1666 = scalar_lea.vmem [#allocation11], %s1665
          %1667 = dma.done %s1663, 128
        $region104: #{tpu_custom_call.1} parent=99 // pred_fallthru
          _
      $region100: #{tpu_custom_call.1} parent=5 // pred_fallthru
        _
    $region6: #{tpu_custom_call.1} parent=1 // loop_footer
      %s31 = sadd.s32 1, %s27
    $region7: #{tpu_custom_call.1} parent=1 // loop_footer_branch
      %26 = sbr.rel target = $region3
    $region8: #{tpu_custom_call.1} parent=1 // loop_exit
      _
    %1668 = vsyncpa [#allocation3], 1
    %s1669 = scalar_lea.sflag [#allocation3], 1
    %1670 = vsyncpa %s1669, 1
    %1671 = vsyncpa [#allocation6], 1
    %1672 = vsyncpa [#allocation9], 1
    %1673 = vsyncpa [#allocation4], 1
    %s1674 = scalar_lea.sflag [#allocation4], 1
    %1675 = vsyncpa %s1674, 1

</llo_original>
